<compile_context>
chip_gen: v6e
topology: v6e:2x2x1
jax: 0.10.0
libtpu: 0.0.40
codegen_flags: <defaults>
</compile_context>

<pallas_src>
import functools
import math

import jax
import jax.numpy as jnp
from jax.experimental import pallas as pl
from jax.experimental.pallas import tpu as pltpu

BN_EPS = 1e-5
# Eval-mode BN with freshly-initialised stats (gamma=1, beta=0, mean=0, var=1)
# is a pure scale; it is folded into the conv weights on the host.
BN_FOLD = 1.0 / math.sqrt(1.0 + BN_EPS)


def _round_up(x, m):
    return ((x + m - 1) // m) * m


# ------------------------------ Pallas kernels ------------------------------

def matmul_relu_kernel(x_ref, w_ref, o_ref):
    # 1x1 conv (eval-BN scale pre-folded into w) + ReLU on one row tile.
    acc = jnp.dot(x_ref[...], w_ref[...], preferred_element_type=jnp.float32)
    o_ref[...] = jnp.maximum(acc, 0.0).astype(o_ref.dtype)


def fused_output_kernel(y_ref, r_ref, w12_ref, w32_ref, o_ref):
    # conv1_2+BN and conv3_2+BN (residual) fused: relu(y @ W12 + res @ W32).
    acc = jnp.dot(y_ref[...], w12_ref[...], preferred_element_type=jnp.float32)
    acc = acc + jnp.dot(r_ref[...], w32_ref[...], preferred_element_type=jnp.float32)
    o_ref[...] = jnp.maximum(acc, 0.0).astype(o_ref.dtype)


def odconv3x3_kernel(src_ref, w_ref, o_ref, *, taps, ho, wo, cin):
    # One grid step == one batch element (PyTorch realises the per-batch weight via
    # groups=B).  The 3x3 (optionally strided) conv is 9 shifted bf16 MXU matmuls;
    # all ODConv attentions + eval-BN are pre-folded into the per-batch weight
    # w_ref, so the only per-pixel work is matmul + the final ReLU.  The f32
    # accumulator is kept as a value (vreg-resident at these shapes) instead of a
    # VMEM scratch to avoid 9x read-modify-write traffic.
    def tap_dot(t):
        p, qh, qw = taps[t]
        x_t = src_ref[0, p, qh:qh + ho, qw:qw + wo, :].reshape(ho * wo, cin)
        return jnp.dot(x_t, w_ref[0, t], preferred_element_type=jnp.float32)

    acc = tap_dot(0)
    for t in range(1, len(taps)):
        acc = acc + tap_dot(t)
    o_ref[0] = jnp.maximum(acc, 0.0).astype(o_ref.dtype)


# ------------------------------ pallas_call wrappers ------------------------------

def conv1x1_relu(x, w, *, out_dtype=jnp.bfloat16, tile_rows=512):
    """Channels-last 1x1 conv with folded eval-BN and fused ReLU."""
    r, cin = x.shape
    cout = w.shape[1]
    tile = min(tile_rows, _round_up(r, 8))
    rp = _round_up(r, tile)
    xp = jnp.pad(x, ((0, rp - r), (0, 0))) if rp != r else x
    out = pl.pallas_call(
        matmul_relu_kernel,
        out_shape=jax.ShapeDtypeStruct((rp, cout), out_dtype),
        grid=(rp // tile,),
        in_specs=[pl.BlockSpec((tile, cin), lambda i: (i, 0)),
                  pl.BlockSpec((cin, cout), lambda i: (0, 0))],
        out_specs=pl.BlockSpec((tile, cout), lambda i: (i, 0)),
        compiler_params=pltpu.CompilerParams(dimension_semantics=("parallel",)),
    )(xp, w)
    return out[:r] if rp != r else out


def fused_output(y, r, w12, w32, *, tile_rows=512):
    """relu( y @ W12 + r @ W32 ) with eval-BN scales pre-folded into W12 / W32."""
    rows, k1 = y.shape
    k2 = r.shape[1]
    cout = w12.shape[1]
    tile = min(tile_rows, _round_up(rows, 8))
    rp = _round_up(rows, tile)
    if rp != rows:
        y = jnp.pad(y, ((0, rp - rows), (0, 0)))
        r = jnp.pad(r, ((0, rp - rows), (0, 0)))
    out = pl.pallas_call(
        fused_output_kernel,
        out_shape=jax.ShapeDtypeStruct((rp, cout), jnp.float32),
        grid=(rp // tile,),
        in_specs=[pl.BlockSpec((tile, k1), lambda i: (i, 0)),
                  pl.BlockSpec((tile, k2), lambda i: (i, 0)),
                  pl.BlockSpec((k1, cout), lambda i: (0, 0)),
                  pl.BlockSpec((k2, cout), lambda i: (0, 0))],
        out_specs=pl.BlockSpec((tile, cout), lambda i: (i, 0)),
        compiler_params=pltpu.CompilerParams(dimension_semantics=("parallel",)),
    )(y, r, w12, w32)
    return out[:rows] if rp != rows else out


def build_conv_sources(y_nhwc, stride):
    """Zero-padded (pad=1) shifted source planes so every 3x3 tap (incl. stride 2)
    is a contiguous in-kernel slice.  stride=1 -> 1 plane, stride=2 -> 4 parity planes."""
    b, h, w, c = y_nhwc.shape
    xpad = jnp.pad(y_nhwc, ((0, 0), (1, 1), (1, 1), (0, 0)))
    if stride == 1:
        return xpad[:, None], h, w                        # (B, 1, H+2, W+2, C)
    ho = (h - 1) // 2 + 1
    wo = (w - 1) // 2 + 1

    def fit(p):
        p = p[:, :ho + 1, :wo + 1, :]
        dh, dw = ho + 1 - p.shape[1], wo + 1 - p.shape[2]
        if dh or dw:
            p = jnp.pad(p, ((0, 0), (0, dh), (0, dw), (0, 0)))
        return p

    planes = [fit(xpad[:, ph::2, pw::2, :]) for ph in range(2) for pw in range(2)]
    return jnp.stack(planes, axis=1), ho, wo              # (B, 4, ho+1, wo+1, C)


def odconv3x3(src, eff_w, ho, wo):
    b, p_num, hs, ws, cin = src.shape
    cout = eff_w.shape[-1]
    if p_num == 1:    # stride 1: single padded plane
        taps = [(0, dh, dw) for dh in range(3) for dw in range(3)]
    else:             # stride 2: parity plane index = (dh % 2) * 2 + (dw % 2)
        taps = [((dh % 2) * 2 + (dw % 2), dh // 2, dw // 2)
                for dh in range(3) for dw in range(3)]
    # NOTE: for very large images, tile the output-row axis (halo tiles) so the
    # per-batch blocks + accumulator stay within VMEM / vregs; whole-image blocks
    # are tiny at these shapes.
    return pl.pallas_call(
        functools.partial(odconv3x3_kernel, taps=taps, ho=ho, wo=wo, cin=cin),
        out_shape=jax.ShapeDtypeStruct((b, ho * wo, cout), jnp.bfloat16),
        grid=(b,),
        in_specs=[pl.BlockSpec((1, p_num, hs, ws, cin), lambda i: (i, 0, 0, 0, 0)),
                  pl.BlockSpec((1, 9, cin, cout), lambda i: (i, 0, 0, 0))],
        out_specs=pl.BlockSpec((1, ho * wo, cout), lambda i: (i, 0, 0)),
        compiler_params=pltpu.CompilerParams(dimension_semantics=("parallel",)),
    )(src, eff_w)


# ------------------------------ parameters ------------------------------

def init_params(key, in_ch, out_ch, kernel_num=16):
    mid = out_ch // 4
    att_ch = max(int(mid * 0.0625), 16)
    ks = jax.random.split(key, 9)

    def kaiming(k, shape, fan_out):
        return jax.random.normal(k, shape, jnp.float32) * math.sqrt(2.0 / fan_out)

    p = {}
    # 1x1 convs stored as (Cin, Cout) with the eval-BN scale folded in, cast to bf16 (MXU).
    p['w11'] = (kaiming(ks[0], (in_ch, mid), mid) * BN_FOLD).astype(jnp.bfloat16)
    p['w12'] = (kaiming(ks[7], (mid, out_ch), out_ch) * BN_FOLD).astype(jnp.bfloat16)
    p['w32'] = (kaiming(ks[8], (in_ch, out_ch), out_ch) * BN_FOLD).astype(jnp.bfloat16)
    # ODConv attention branch (tiny; stays f32, handled by XLA)
    p['att_fc'] = kaiming(ks[1], (att_ch, mid), att_ch)
    p['att_ch_w'] = kaiming(ks[2], (mid, att_ch), mid)
    p['att_ch_b'] = jnp.zeros((mid,), jnp.float32)
    p['att_fl_w'] = kaiming(ks[3], (mid, att_ch), mid)
    p['att_fl_b'] = jnp.zeros((mid,), jnp.float32)
    p['att_sp_w'] = kaiming(ks[4], (9, att_ch), 9)
    p['att_sp_b'] = jnp.zeros((9,), jnp.float32)
    p['att_kn_w'] = kaiming(ks[5], (kernel_num, att_ch), kernel_num)
    p['att_kn_b'] = jnp.zeros((kernel_num,), jnp.float32)
    # ODConv candidate kernels: (kernel_num, out=mid, in=mid, 3, 3)
    p['od_w'] = kaiming(ks[6], (kernel_num, mid, mid, 3, 3), mid * 9)
    return p


# ------------------------------ forward ------------------------------

def bottleneck_forward(params, x, *, downsample=True):
    b, in_ch, h, w = x.shape
    stride = 2 if downsample else 1
    mid = params['w11'].shape[1]
    out_ch = params['w12'].shape[1]

    # NCHW -> channels-last rows (single layout change; all matmuls are channel-minor)
    x_nhwc = jnp.transpose(x.astype(jnp.float32), (0, 2, 3, 1))       # (B, H, W, Cin)
    x_rows = x_nhwc.reshape(b * h * w, in_ch).astype(jnp.bfloat16)

    # conv1_1 + BN + ReLU
    y1 = conv1x1_relu(x_rows, params['w11'])                          # (B*H*W, mid) bf16

    # ---- ODConv attention branch (per-batch vectors; XLA glue, far below MXU tile size) ----
    pooled = y1.astype(jnp.float32).reshape(b, h * w, mid).mean(axis=1)          # (B, mid)
    hid = jax.nn.relu((pooled @ params['att_fc'].T) * BN_FOLD)                   # (B, att)
    chan = jax.nn.sigmoid(hid @ params['att_ch_w'].T + params['att_ch_b'])       # (B, mid)
    filt = jax.nn.sigmoid(hid @ params['att_fl_w'].T + params['att_fl_b'])       # (B, mid)
    spat = jax.nn.sigmoid(hid @ params['att_sp_w'].T + params['att_sp_b'])       # (B, 9)
    kern = jax.nn.softmax(hid @ params['att_kn_w'].T + params['att_kn_b'], axis=1)  # (B, KN)

    # Per-batch effective 3x3 weight: kernel-attention aggregation as an einsum,
    # with channel attention folded into input rows, spatial attention per tap,
    # and filter attention * BN scale folded into output columns.  (B, 9, mid, mid)
    agg = jnp.einsum('bk,koihw->bhwio', kern, params['od_w']).reshape(b, 9, mid, mid)
    eff_w = (agg
             * spat[:, :, None, None]
             * chan[:, None, :, None]
             * (filt * BN_FOLD)[:, None, None, :]).astype(jnp.bfloat16)

    # ODConv 3x3 (stride=down_stride, padding=1) + BN + ReLU: 9 shifted MXU matmuls.
    y1_nhwc = y1.reshape(b, h, w, mid)
    src, ho, wo = build_conv_sources(y1_nhwc, stride)
    y2 = odconv3x3(src, eff_w, ho, wo)                                # (B, ho*wo, mid) bf16
    y2_rows = y2.reshape(b * ho * wo, mid)

    # Residual 1x1 (strided) input rows
    if stride == 2:
        res_rows = x_nhwc[:, ::2, ::2, :].reshape(b * ho * wo, in_ch).astype(jnp.bfloat16)
    else:
        res_rows = x_rows

    # conv1_2 + BN  (+)  conv3_2 + BN  (+ ReLU), fused in one kernel (residual never
    # materialises as a separate conv output in HBM).
    out_rows = fused_output(y2_rows, res_rows, params['w12'], params['w32'])  # (B*ho*wo, out_ch)

    return out_rows.reshape(b, ho, wo, out_ch).transpose(0, 3, 1, 2)  # NCHW, f32


if __name__ == "__main__":
    B, in_ch, out_ch = 2, 128, 512          # mid = out_ch // 4 = 128 -> lane-dense (8,128) tiles
    H = W = 16
    key = jax.random.PRNGKey(0)
    kx, kp = jax.random.split(key)
    x = jax.random.normal(kx, (B, in_ch, H, W), jnp.float32)
    params = init_params(kp, in_ch, out_ch, kernel_num=16)

    fwd = jax.jit(functools.partial(bottleneck_forward, downsample=True))
    out = fwd(params, x)
    out = jax.block_until_ready(out)
    assert out.shape == (B, out_ch, H // 2, W // 2), out.shape
    assert bool(jnp.all(jnp.isfinite(out)))
    print("KERNEL_OK")
</pallas_src>

<mosaic_0001>
module attributes {stable_mosaic.version = 11 : i64} {
  func.func @matmul_relu_kernel(%arg0: i32, %arg1: memref<512x128xbf16, #tpu.memory_space<vmem>>, %arg2: memref<128x128xbf16, #tpu.memory_space<vmem>>, %arg3: memref<512x128xbf16, #tpu.memory_space<vmem>>) attributes {dimension_semantics = [#tpu.dimension_semantics<parallel>], iteration_bounds = array<i64: 1>, scalar_prefetch = 0 : i64, scratch_operands = 0 : i64, tpu.core_type = #tpu.core_type<tc>, window_params = [{transform_indices = @transform_0, window_bounds = array<i64: 512, 128>}, {pipeline_mode = #tpu.pipeline_mode<synchronous>, transform_indices = @transform_1, window_bounds = array<i64: 128, 128>}, {transform_indices = @transform_2, window_bounds = array<i64: 512, 128>}]} {
    %c0 = arith.constant 0 : index
    %c0_0 = arith.constant 0 : index
    %0 = vector.load %arg1[%c0, %c0_0] : memref<512x128xbf16, #tpu.memory_space<vmem>>, vector<512x128xbf16>
    %c0_1 = arith.constant 0 : index
    %c0_2 = arith.constant 0 : index
    %1 = vector.load %arg2[%c0_1, %c0_2] : memref<128x128xbf16, #tpu.memory_space<vmem>>, vector<128x128xbf16>
    %cst = arith.constant dense<0.000000e+00> : vector<512x128xf32>
    %2 = tpu.matmul %0, %1, %cst {dimension_numbers = #tpu.dot_dimension_numbers<[1], [0], [0], [1], [0, 0, 1, 1], [], []>} : vector<512x128xbf16>, vector<128x128xbf16>, vector<512x128xf32> -> vector<512x128xf32>
    %cst_3 = arith.constant 0.000000e+00 : f32
    %3 = vector.broadcast %cst_3 : f32 to vector<512x128xf32>
    %4 = arith.maximumf %2, %3 : vector<512x128xf32>
    %5 = arith.truncf %4 : vector<512x128xf32> to vector<512x128xbf16>
    %c0_4 = arith.constant 0 : index
    %c0_5 = arith.constant 0 : index
    %6 = vector.load %arg3[%c0_4, %c0_5] : memref<512x128xbf16, #tpu.memory_space<vmem>>, vector<512x128xbf16>
    tpu.vector_store %arg3[%c0_4, %c0_5], %5 {strides = array<i32>} : memref<512x128xbf16, #tpu.memory_space<vmem>>, vector<512x128xbf16>,
    return
  }
  func.func @transform_0(%arg0: i32) -> (i32, i32) {
    %c0_i32 = arith.constant 0 : i32
    %c0_i32_0 = arith.constant 0 : i32
    return %arg0, %c0_i32 : i32, i32
  }
  func.func @transform_1(%arg0: i32) -> (i32, i32) {
    %c0_i32 = arith.constant 0 : i32
    %c0_i32_0 = arith.constant 0 : i32
    %c0_i32_1 = arith.constant 0 : i32
    return %c0_i32, %c0_i32_0 : i32, i32
  }
  func.func @transform_2(%arg0: i32) -> (i32, i32) {
    %c0_i32 = arith.constant 0 : i32
    %c0_i32_0 = arith.constant 0 : i32
    return %arg0, %c0_i32 : i32, i32
  }
}

module attributes {stable_mosaic.version = 11 : i64} {
  func.func @fused_output_kernel(%arg0: i32, %arg1: memref<128x128xbf16, #tpu.memory_space<vmem>>, %arg2: memref<128x128xbf16, #tpu.memory_space<vmem>>, %arg3: memref<128x512xbf16, #tpu.memory_space<vmem>>, %arg4: memref<128x512xbf16, #tpu.memory_space<vmem>>, %arg5: memref<128x512xf32, #tpu.memory_space<vmem>>) attributes {dimension_semantics = [#tpu.dimension_semantics<parallel>], iteration_bounds = array<i64: 1>, scalar_prefetch = 0 : i64, scratch_operands = 0 : i64, tpu.core_type = #tpu.core_type<tc>, window_params = [{transform_indices = @transform_0, window_bounds = array<i64: 128, 128>}, {transform_indices = @transform_1, window_bounds = array<i64: 128, 128>}, {pipeline_mode = #tpu.pipeline_mode<synchronous>, transform_indices = @transform_2, window_bounds = array<i64: 128, 512>}, {pipeline_mode = #tpu.pipeline_mode<synchronous>, transform_indices = @transform_3, window_bounds = array<i64: 128, 512>}, {transform_indices = @transform_4, window_bounds = array<i64: 128, 512>}]} {
    %c0 = arith.constant 0 : index
    %c0_0 = arith.constant 0 : index
    %0 = vector.load %arg1[%c0, %c0_0] : memref<128x128xbf16, #tpu.memory_space<vmem>>, vector<128x128xbf16>
    %c0_1 = arith.constant 0 : index
    %c0_2 = arith.constant 0 : index
    %1 = vector.load %arg3[%c0_1, %c0_2] : memref<128x512xbf16, #tpu.memory_space<vmem>>, vector<128x512xbf16>
    %cst = arith.constant dense<0.000000e+00> : vector<128x512xf32>
    %2 = tpu.matmul %0, %1, %cst {dimension_numbers = #tpu.dot_dimension_numbers<[1], [0], [0], [1], [0, 0, 1, 1], [], []>} : vector<128x128xbf16>, vector<128x512xbf16>, vector<128x512xf32> -> vector<128x512xf32>
    %c0_3 = arith.constant 0 : index
    %c0_4 = arith.constant 0 : index
    %3 = vector.load %arg2[%c0_3, %c0_4] : memref<128x128xbf16, #tpu.memory_space<vmem>>, vector<128x128xbf16>
    %c0_5 = arith.constant 0 : index
    %c0_6 = arith.constant 0 : index
    %4 = vector.load %arg4[%c0_5, %c0_6] : memref<128x512xbf16, #tpu.memory_space<vmem>>, vector<128x512xbf16>
    %cst_7 = arith.constant dense<0.000000e+00> : vector<128x512xf32>
    %5 = tpu.matmul %3, %4, %cst_7 {dimension_numbers = #tpu.dot_dimension_numbers<[1], [0], [0], [1], [0, 0, 1, 1], [], []>} : vector<128x128xbf16>, vector<128x512xbf16>, vector<128x512xf32> -> vector<128x512xf32>
    %6 = arith.addf %2, %5 : vector<128x512xf32>
    %cst_8 = arith.constant 0.000000e+00 : f32
    %7 = vector.broadcast %cst_8 : f32 to vector<128x512xf32>
    %8 = arith.maximumf %6, %7 : vector<128x512xf32>
    %c0_9 = arith.constant 0 : index
    %c0_10 = arith.constant 0 : index
    %9 = vector.load %arg5[%c0_9, %c0_10] : memref<128x512xf32, #tpu.memory_space<vmem>>, vector<128x512xf32>
    tpu.vector_store %arg5[%c0_9, %c0_10], %8 {strides = array<i32>} : memref<128x512xf32, #tpu.memory_space<vmem>>, vector<128x512xf32>,
    return
  }
  func.func @transform_0(%arg0: i32) -> (i32, i32) {
    %c0_i32 = arith.constant 0 : i32
    %c0_i32_0 = arith.constant 0 : i32
    return %arg0, %c0_i32 : i32, i32
  }
  func.func @transform_1(%arg0: i32) -> (i32, i32) {
    %c0_i32 = arith.constant 0 : i32
    %c0_i32_0 = arith.constant 0 : i32
    return %arg0, %c0_i32 : i32, i32
  }
  func.func @transform_2(%arg0: i32) -> (i32, i32) {
    %c0_i32 = arith.constant 0 : i32
    %c0_i32_0 = arith.constant 0 : i32
    %c0_i32_1 = arith.constant 0 : i32
    return %c0_i32, %c0_i32_0 : i32, i32
  }
  func.func @transform_3(%arg0: i32) -> (i32, i32) {
    %c0_i32 = arith.constant 0 : i32
    %c0_i32_0 = arith.constant 0 : i32
    %c0_i32_1 = arith.constant 0 : i32
    return %c0_i32, %c0_i32_0 : i32, i32
  }
  func.func @transform_4(%arg0: i32) -> (i32, i32) {
    %c0_i32 = arith.constant 0 : i32
    %c0_i32_0 = arith.constant 0 : i32
    return %arg0, %c0_i32 : i32, i32
  }
}

module attributes {stable_mosaic.version = 11 : i64} {
  func.func @odconv3x3_kernel(%arg0: i32, %arg1: memref<1x4x9x9x128xbf16, #tpu.memory_space<vmem>>, %arg2: memref<1x9x128x128xbf16, #tpu.memory_space<vmem>>, %arg3: memref<1x64x128xbf16, #tpu.memory_space<vmem>>) attributes {dimension_semantics = [#tpu.dimension_semantics<parallel>], iteration_bounds = array<i64: 2>, scalar_prefetch = 0 : i64, scratch_operands = 0 : i64, tpu.core_type = #tpu.core_type<tc>, window_params = [{transform_indices = @transform_0, window_bounds = array<i64: 1, 4, 9, 9, 128>}, {transform_indices = @transform_1, window_bounds = array<i64: 1, 9, 128, 128>}, {transform_indices = @transform_2, window_bounds = array<i64: 1, 64, 128>}]} {
    %c0 = arith.constant 0 : index
    %c0_0 = arith.constant 0 : index
    %c0_1 = arith.constant 0 : index
    %c0_2 = arith.constant 0 : index
    %c0_3 = arith.constant 0 : index
    %0 = vector.load %arg1[%c0, %c0_0, %c0_1, %c0_2, %c0_3] : memref<1x4x9x9x128xbf16, #tpu.memory_space<vmem>>, vector<1x1x8x8x128xbf16>
    %1 = vector.shape_cast %0 : vector<1x1x8x8x128xbf16> to vector<8x8x128xbf16>
    %2 = vector.shape_cast %1 : vector<8x8x128xbf16> to vector<64x128xbf16>
    %c0_4 = arith.constant 0 : index
    %c0_5 = arith.constant 0 : index
    %c0_6 = arith.constant 0 : index
    %c0_7 = arith.constant 0 : index
    %3 = vector.load %arg2[%c0_4, %c0_5, %c0_6, %c0_7] : memref<1x9x128x128xbf16, #tpu.memory_space<vmem>>, vector<1x1x128x128xbf16>
    %4 = vector.shape_cast %3 : vector<1x1x128x128xbf16> to vector<128x128xbf16>
    %cst = arith.constant dense<0.000000e+00> : vector<64x128xf32>
    %5 = tpu.matmul %2, %4, %cst {dimension_numbers = #tpu.dot_dimension_numbers<[1], [0], [0], [1], [0, 0, 1, 1], [], []>} : vector<64x128xbf16>, vector<128x128xbf16>, vector<64x128xf32> -> vector<64x128xf32>
    %c0_8 = arith.constant 0 : index
    %c1 = arith.constant 1 : index
    %c0_9 = arith.constant 0 : index
    %c0_10 = arith.constant 0 : index
    %c0_11 = arith.constant 0 : index
    %6 = vector.load %arg1[%c0_8, %c1, %c0_9, %c0_10, %c0_11] : memref<1x4x9x9x128xbf16, #tpu.memory_space<vmem>>, vector<1x1x8x8x128xbf16>
    %7 = vector.shape_cast %6 : vector<1x1x8x8x128xbf16> to vector<8x8x128xbf16>
    %8 = vector.shape_cast %7 : vector<8x8x128xbf16> to vector<64x128xbf16>
    %c0_12 = arith.constant 0 : index
    %c1_13 = arith.constant 1 : index
    %c0_14 = arith.constant 0 : index
    %c0_15 = arith.constant 0 : index
    %9 = vector.load %arg2[%c0_12, %c1_13, %c0_14, %c0_15] : memref<1x9x128x128xbf16, #tpu.memory_space<vmem>>, vector<1x1x128x128xbf16>
    %10 = vector.shape_cast %9 : vector<1x1x128x128xbf16> to vector<128x128xbf16>
    %cst_16 = arith.constant dense<0.000000e+00> : vector<64x128xf32>
    %11 = tpu.matmul %8, %10, %cst_16 {dimension_numbers = #tpu.dot_dimension_numbers<[1], [0], [0], [1], [0, 0, 1, 1], [], []>} : vector<64x128xbf16>, vector<128x128xbf16>, vector<64x128xf32> -> vector<64x128xf32>
    %12 = arith.addf %5, %11 : vector<64x128xf32>
    %c0_17 = arith.constant 0 : index
    %c0_18 = arith.constant 0 : index
    %c0_19 = arith.constant 0 : index
    %c1_20 = arith.constant 1 : index
    %c0_21 = arith.constant 0 : index
    %13 = vector.load %arg1[%c0_17, %c0_18, %c0_19, %c1_20, %c0_21] : memref<1x4x9x9x128xbf16, #tpu.memory_space<vmem>>, vector<1x1x8x8x128xbf16>
    %14 = vector.shape_cast %13 : vector<1x1x8x8x128xbf16> to vector<8x8x128xbf16>
    %15 = vector.shape_cast %14 : vector<8x8x128xbf16> to vector<64x128xbf16>
    %c0_22 = arith.constant 0 : index
    %c2 = arith.constant 2 : index
    %c0_23 = arith.constant 0 : index
    %c0_24 = arith.constant 0 : index
    %16 = vector.load %arg2[%c0_22, %c2, %c0_23, %c0_24] : memref<1x9x128x128xbf16, #tpu.memory_space<vmem>>, vector<1x1x128x128xbf16>
    %17 = vector.shape_cast %16 : vector<1x1x128x128xbf16> to vector<128x128xbf16>
    %cst_25 = arith.constant dense<0.000000e+00> : vector<64x128xf32>
    %18 = tpu.matmul %15, %17, %cst_25 {dimension_numbers = #tpu.dot_dimension_numbers<[1], [0], [0], [1], [0, 0, 1, 1], [], []>} : vector<64x128xbf16>, vector<128x128xbf16>, vector<64x128xf32> -> vector<64x128xf32>
    %19 = arith.addf %12, %18 : vector<64x128xf32>
    %c0_26 = arith.constant 0 : index
    %c2_27 = arith.constant 2 : index
    %c0_28 = arith.constant 0 : index
    %c0_29 = arith.constant 0 : index
    %c0_30 = arith.constant 0 : index
    %20 = vector.load %arg1[%c0_26, %c2_27, %c0_28, %c0_29, %c0_30] : memref<1x4x9x9x128xbf16, #tpu.memory_space<vmem>>, vector<1x1x8x8x128xbf16>
    %21 = vector.shape_cast %20 : vector<1x1x8x8x128xbf16> to vector<8x8x128xbf16>
    %22 = vector.shape_cast %21 : vector<8x8x128xbf16> to vector<64x128xbf16>
    %c0_31 = arith.constant 0 : index
    %c3 = arith.constant 3 : index
    %c0_32 = arith.constant 0 : index
    %c0_33 = arith.constant 0 : index
    %23 = vector.load %arg2[%c0_31, %c3, %c0_32, %c0_33] : memref<1x9x128x128xbf16, #tpu.memory_space<vmem>>, vector<1x1x128x128xbf16>
    %24 = vector.shape_cast %23 : vector<1x1x128x128xbf16> to vector<128x128xbf16>
    %cst_34 = arith.constant dense<0.000000e+00> : vector<64x128xf32>
    %25 = tpu.matmul %22, %24, %cst_34 {dimension_numbers = #tpu.dot_dimension_numbers<[1], [0], [0], [1], [0, 0, 1, 1], [], []>} : vector<64x128xbf16>, vector<128x128xbf16>, vector<64x128xf32> -> vector<64x128xf32>
    %26 = arith.addf %19, %25 : vector<64x128xf32>
    %c0_35 = arith.constant 0 : index
    %c3_36 = arith.constant 3 : index
    %c0_37 = arith.constant 0 : index
    %c0_38 = arith.constant 0 : index
    %c0_39 = arith.constant 0 : index
    %27 = vector.load %arg1[%c0_35, %c3_36, %c0_37, %c0_38, %c0_39] : memref<1x4x9x9x128xbf16, #tpu.memory_space<vmem>>, vector<1x1x8x8x128xbf16>
    %28 = vector.shape_cast %27 : vector<1x1x8x8x128xbf16> to vector<8x8x128xbf16>
    %29 = vector.shape_cast %28 : vector<8x8x128xbf16> to vector<64x128xbf16>
    %c0_40 = arith.constant 0 : index
    %c4 = arith.constant 4 : index
    %c0_41 = arith.constant 0 : index
    %c0_42 = arith.constant 0 : index
    %30 = vector.load %arg2[%c0_40, %c4, %c0_41, %c0_42] : memref<1x9x128x128xbf16, #tpu.memory_space<vmem>>, vector<1x1x128x128xbf16>
    %31 = vector.shape_cast %30 : vector<1x1x128x128xbf16> to vector<128x128xbf16>
    %cst_43 = arith.constant dense<0.000000e+00> : vector<64x128xf32>
    %32 = tpu.matmul %29, %31, %cst_43 {dimension_numbers = #tpu.dot_dimension_numbers<[1], [0], [0], [1], [0, 0, 1, 1], [], []>} : vector<64x128xbf16>, vector<128x128xbf16>, vector<64x128xf32> -> vector<64x128xf32>
    %33 = arith.addf %26, %32 : vector<64x128xf32>
    %c0_44 = arith.constant 0 : index
    %c2_45 = arith.constant 2 : index
    %c0_46 = arith.constant 0 : index
    %c1_47 = arith.constant 1 : index
    %c0_48 = arith.constant 0 : index
    %34 = vector.load %arg1[%c0_44, %c2_45, %c0_46, %c1_47, %c0_48] : memref<1x4x9x9x128xbf16, #tpu.memory_space<vmem>>, vector<1x1x8x8x128xbf16>
    %35 = vector.shape_cast %34 : vector<1x1x8x8x128xbf16> to vector<8x8x128xbf16>
    %36 = vector.shape_cast %35 : vector<8x8x128xbf16> to vector<64x128xbf16>
    %c0_49 = arith.constant 0 : index
    %c5 = arith.constant 5 : index
    %c0_50 = arith.constant 0 : index
    %c0_51 = arith.constant 0 : index
    %37 = vector.load %arg2[%c0_49, %c5, %c0_50, %c0_51] : memref<1x9x128x128xbf16, #tpu.memory_space<vmem>>, vector<1x1x128x128xbf16>
    %38 = vector.shape_cast %37 : vector<1x1x128x128xbf16> to vector<128x128xbf16>
    %cst_52 = arith.constant dense<0.000000e+00> : vector<64x128xf32>
    %39 = tpu.matmul %36, %38, %cst_52 {dimension_numbers = #tpu.dot_dimension_numbers<[1], [0], [0], [1], [0, 0, 1, 1], [], []>} : vector<64x128xbf16>, vector<128x128xbf16>, vector<64x128xf32> -> vector<64x128xf32>
    %40 = arith.addf %33, %39 : vector<64x128xf32>
    %c0_53 = arith.constant 0 : index
    %c0_54 = arith.constant 0 : index
    %c1_55 = arith.constant 1 : index
    %c0_56 = arith.constant 0 : index
    %c0_57 = arith.constant 0 : index
    %41 = vector.load %arg1[%c0_53, %c0_54, %c1_55, %c0_56, %c0_57] : memref<1x4x9x9x128xbf16, #tpu.memory_space<vmem>>, vector<1x1x8x8x128xbf16>
    %42 = vector.shape_cast %41 : vector<1x1x8x8x128xbf16> to vector<8x8x128xbf16>
    %43 = vector.shape_cast %42 : vector<8x8x128xbf16> to vector<64x128xbf16>
    %c0_58 = arith.constant 0 : index
    %c6 = arith.constant 6 : index
    %c0_59 = arith.constant 0 : index
    %c0_60 = arith.constant 0 : index
    %44 = vector.load %arg2[%c0_58, %c6, %c0_59, %c0_60] : memref<1x9x128x128xbf16, #tpu.memory_space<vmem>>, vector<1x1x128x128xbf16>
    %45 = vector.shape_cast %44 : vector<1x1x128x128xbf16> to vector<128x128xbf16>
    %cst_61 = arith.constant dense<0.000000e+00> : vector<64x128xf32>
    %46 = tpu.matmul %43, %45, %cst_61 {dimension_numbers = #tpu.dot_dimension_numbers<[1], [0], [0], [1], [0, 0, 1, 1], [], []>} : vector<64x128xbf16>, vector<128x128xbf16>, vector<64x128xf32> -> vector<64x128xf32>
    %47 = arith.addf %40, %46 : vector<64x128xf32>
    %c0_62 = arith.constant 0 : index
    %c1_63 = arith.constant 1 : index
    %c1_64 = arith.constant 1 : index
    %c0_65 = arith.constant 0 : index
    %c0_66 = arith.constant 0 : index
    %48 = vector.load %arg1[%c0_62, %c1_63, %c1_64, %c0_65, %c0_66] : memref<1x4x9x9x128xbf16, #tpu.memory_space<vmem>>, vector<1x1x8x8x128xbf16>
    %49 = vector.shape_cast %48 : vector<1x1x8x8x128xbf16> to vector<8x8x128xbf16>
    %50 = vector.shape_cast %49 : vector<8x8x128xbf16> to vector<64x128xbf16>
    %c0_67 = arith.constant 0 : index
    %c7 = arith.constant 7 : index
    %c0_68 = arith.constant 0 : index
    %c0_69 = arith.constant 0 : index
    %51 = vector.load %arg2[%c0_67, %c7, %c0_68, %c0_69] : memref<1x9x128x128xbf16, #tpu.memory_space<vmem>>, vector<1x1x128x128xbf16>
    %52 = vector.shape_cast %51 : vector<1x1x128x128xbf16> to vector<128x128xbf16>
    %cst_70 = arith.constant dense<0.000000e+00> : vector<64x128xf32>
    %53 = tpu.matmul %50, %52, %cst_70 {dimension_numbers = #tpu.dot_dimension_numbers<[1], [0], [0], [1], [0, 0, 1, 1], [], []>} : vector<64x128xbf16>, vector<128x128xbf16>, vector<64x128xf32> -> vector<64x128xf32>
    %54 = arith.addf %47, %53 : vector<64x128xf32>
    %c0_71 = arith.constant 0 : index
    %c0_72 = arith.constant 0 : index
    %c1_73 = arith.constant 1 : index
    %c1_74 = arith.constant 1 : index
    %c0_75 = arith.constant 0 : index
    %55 = vector.load %arg1[%c0_71, %c0_72, %c1_73, %c1_74, %c0_75] : memref<1x4x9x9x128xbf16, #tpu.memory_space<vmem>>, vector<1x1x8x8x128xbf16>
    %56 = vector.shape_cast %55 : vector<1x1x8x8x128xbf16> to vector<8x8x128xbf16>
    %57 = vector.shape_cast %56 : vector<8x8x128xbf16> to vector<64x128xbf16>
    %c0_76 = arith.constant 0 : index
    %c8 = arith.constant 8 : index
    %c0_77 = arith.constant 0 : index
    %c0_78 = arith.constant 0 : index
    %58 = vector.load %arg2[%c0_76, %c8, %c0_77, %c0_78] : memref<1x9x128x128xbf16, #tpu.memory_space<vmem>>, vector<1x1x128x128xbf16>
    %59 = vector.shape_cast %58 : vector<1x1x128x128xbf16> to vector<128x128xbf16>
    %cst_79 = arith.constant dense<0.000000e+00> : vector<64x128xf32>
    %60 = tpu.matmul %57, %59, %cst_79 {dimension_numbers = #tpu.dot_dimension_numbers<[1], [0], [0], [1], [0, 0, 1, 1], [], []>} : vector<64x128xbf16>, vector<128x128xbf16>, vector<64x128xf32> -> vector<64x128xf32>
    %61 = arith.addf %54, %60 : vector<64x128xf32>
    %cst_80 = arith.constant 0.000000e+00 : f32
    %62 = vector.broadcast %cst_80 : f32 to vector<64x128xf32>
    %63 = arith.maximumf %61, %62 : vector<64x128xf32>
    %64 = arith.truncf %63 : vector<64x128xf32> to vector<64x128xbf16>
    %c0_81 = arith.constant 0 : index
    %c0_82 = arith.constant 0 : index
    %c0_83 = arith.constant 0 : index
    %65 = vector.load %arg3[%c0_81, %c0_82, %c0_83] : memref<1x64x128xbf16, #tpu.memory_space<vmem>>, vector<1x64x128xbf16>
    %66 = vector.shape_cast %65 : vector<1x64x128xbf16> to vector<64x128xbf16>
    %67 = vector.shape_cast %64 : vector<64x128xbf16> to vector<1x64x128xbf16>
    tpu.vector_store %arg3[%c0_81, %c0_82, %c0_83], %67 {strides = array<i32>} : memref<1x64x128xbf16, #tpu.memory_space<vmem>>, vector<1x64x128xbf16>,
    return
  }
  func.func @transform_0(%arg0: i32) -> (i32, i32, i32, i32, i32) {
    %c0_i32 = arith.constant 0 : i32
    %c0_i32_0 = arith.constant 0 : i32
    %c0_i32_1 = arith.constant 0 : i32
    %c0_i32_2 = arith.constant 0 : i32
    %c0_i32_3 = arith.constant 0 : i32
    return %arg0, %c0_i32, %c0_i32_0, %c0_i32_1, %c0_i32_2 : i32, i32, i32, i32, i32
  }
  func.func @transform_1(%arg0: i32) -> (i32, i32, i32, i32) {
    %c0_i32 = arith.constant 0 : i32
    %c0_i32_0 = arith.constant 0 : i32
    %c0_i32_1 = arith.constant 0 : i32
    %c0_i32_2 = arith.constant 0 : i32
    return %arg0, %c0_i32, %c0_i32_0, %c0_i32_1 : i32, i32, i32, i32
  }
  func.func @transform_2(%arg0: i32) -> (i32, i32, i32) {
    %c0_i32 = arith.constant 0 : i32
    %c0_i32_0 = arith.constant 0 : i32
    %c0_i32_1 = arith.constant 0 : i32
    return %arg0, %c0_i32, %c0_i32_0 : i32, i32, i32
  }
}

</mosaic_0001>

<llo_original>
// kernel: bottleneck_forward.3
$region0: #{bottleneck_forward.3}
  #allocation0 [shape = 'u32[]', space=smem, size = 0x4, offset = 0x4, fixed_abs, tag = 'smem constant byte address 0x4 - core index']
  #allocation1 [shape = 'u32[144,128]{1,0:T(1,128)}', space=vmem, size = 0x12000, scoped, tag = 'internal scratch']
  %s0 = inlined_call_operand.vmem [shape: bf16[512,128], index: 0, kind: input, shape index: {}]
  %s1 = inlined_call_operand.hbm [shape: bf16[128,128], index: 1, kind: input, shape index: {}]
  %s2 = inlined_call_operand.vmem [shape: bf16[512,128], index: 2, kind: output, shape index: {}]
  %s3 = sld [smem:[#allocation0]]
  $region22: #{bottleneck_forward.3} parent=0
    _
  %s5 = ssub.s32 1, %s3
  %s6 = scalar_select 0, %s5, %s3
  $region1: #{bottleneck_forward.3} parent=0
    #allocation2 [shape = 'u8[32768]{0}', space=vmem, size = 0x8000, scoped, tag = 'input window, operand 1, single buffered']
    #allocation3 [shape = 's32[1]{0}', space=sflag, size = 0x4, scoped, tag = 'scoped memory for bottleneck_forward.3']
    %7 = vsyncpa [#allocation3], 0
    // Predicated region
    $region2: #{bottleneck_forward.3} parent=1 // pred_check
      _
    $region3: #{bottleneck_forward.3} parent=1 // pred_check_branch
      %9 = sbr.rel (0) target = $region5
    $region4: #{bottleneck_forward.3} parent=1 // pred_region
      _
    $region5: #{bottleneck_forward.3} parent=1 // pred_fallthru
      _
    // Predicated region
    $region6: #{bottleneck_forward.3} parent=1 // pred_check
      _
    $region7: #{bottleneck_forward.3} parent=1 // pred_check_branch
      %11 = sbr.rel (0) target = $region9
    $region8: #{bottleneck_forward.3} parent=1 // pred_region
      %s13 = ssub.s32 1024, 1024
      %14 = vsyncadd [#allocation3], %s13
      %s15 = sshll.u32 [#allocation2], 4
      %s16 = int_to_ptr.vmem [resolvable:$true] %s15
      %21 = dma.hbm_to_vmem [thread:$0]  %s1, 1024, %s16, [#allocation3], 64, 64, 4
    $region9: #{bottleneck_forward.3} parent=1 // pred_fallthru
      _
    // Predicated region
    $region10: #{bottleneck_forward.3} parent=1 // pred_check
      _
    $region11: #{bottleneck_forward.3} parent=1 // pred_check_branch
      %23 = sbr.rel (0) target = $region13
    $region12: #{bottleneck_forward.3} parent=1 // pred_region
      %24 = dma.done [#allocation3], 1024
    $region13: #{bottleneck_forward.3} parent=1 // pred_fallthru
      _
    %v26 = vld [vmem:[%s0] sm:$0xf]
    %v27 = vld [vmem:[%s0 + $0x4] sm:$0xf]
    %v28 = vld [vmem:[%s0 + $0x8] sm:$0xf]
    %v29 = vld [vmem:[%s0 + $0xc] sm:$0xf]
    %v30 = vld [vmem:[%s0 + $0x10] sm:$0xf]
    %v31 = vld [vmem:[%s0 + $0x14] sm:$0xf]
    %v32 = vld [vmem:[%s0 + $0x18] sm:$0xf]
    %v33 = vld [vmem:[%s0 + $0x1c] sm:$0xf]
    %v34 = vld [vmem:[%s0 + $0x20] sm:$0xf]
    %v35 = vld [vmem:[%s0 + $0x24] sm:$0xf]
    %v36 = vld [vmem:[%s0 + $0x28] sm:$0xf]
    %v37 = vld [vmem:[%s0 + $0x2c] sm:$0xf]
    %v38 = vld [vmem:[%s0 + $0x30] sm:$0xf]
    %v39 = vld [vmem:[%s0 + $0x34] sm:$0xf]
    %v40 = vld [vmem:[%s0 + $0x38] sm:$0xf]
    %v41 = vld [vmem:[%s0 + $0x3c] sm:$0xf]
    %v42 = vld [vmem:[%s0 + $0x40] sm:$0xf]
    %v43 = vld [vmem:[%s0 + $0x44] sm:$0xf]
    %v44 = vld [vmem:[%s0 + $0x48] sm:$0xf]
    %v45 = vld [vmem:[%s0 + $0x4c] sm:$0xf]
    %v46 = vld [vmem:[%s0 + $0x50] sm:$0xf]
    %v47 = vld [vmem:[%s0 + $0x54] sm:$0xf]
    %v48 = vld [vmem:[%s0 + $0x58] sm:$0xf]
    %v49 = vld [vmem:[%s0 + $0x5c] sm:$0xf]
    %v50 = vld [vmem:[%s0 + $0x60] sm:$0xf]
    %v51 = vld [vmem:[%s0 + $0x64] sm:$0xf]
    %v52 = vld [vmem:[%s0 + $0x68] sm:$0xf]
    %v53 = vld [vmem:[%s0 + $0x6c] sm:$0xf]
    %v54 = vld [vmem:[%s0 + $0x70] sm:$0xf]
    %v55 = vld [vmem:[%s0 + $0x74] sm:$0xf]
    %v56 = vld [vmem:[%s0 + $0x78] sm:$0xf]
    %v57 = vld [vmem:[%s0 + $0x7c] sm:$0xf]
    %v58 = vld [vmem:[%s0 + $0x80] sm:$0xf]
    %v59 = vld [vmem:[%s0 + $0x84] sm:$0xf]
    %v60 = vld [vmem:[%s0 + $0x88] sm:$0xf]
    %v61 = vld [vmem:[%s0 + $0x8c] sm:$0xf]
    %v62 = vld [vmem:[%s0 + $0x90] sm:$0xf]
    %v63 = vld [vmem:[%s0 + $0x94] sm:$0xf]
    %v64 = vld [vmem:[%s0 + $0x98] sm:$0xf]
    %v65 = vld [vmem:[%s0 + $0x9c] sm:$0xf]
    %v66 = vld [vmem:[%s0 + $0xa0] sm:$0xf]
    %v67 = vld [vmem:[%s0 + $0xa4] sm:$0xf]
    %v68 = vld [vmem:[%s0 + $0xa8] sm:$0xf]
    %v69 = vld [vmem:[%s0 + $0xac] sm:$0xf]
    %v70 = vld [vmem:[%s0 + $0xb0] sm:$0xf]
    %v71 = vld [vmem:[%s0 + $0xb4] sm:$0xf]
    %v72 = vld [vmem:[%s0 + $0xb8] sm:$0xf]
    %v73 = vld [vmem:[%s0 + $0xbc] sm:$0xf]
    %v74 = vld [vmem:[%s0 + $0xc0] sm:$0xf]
    %v75 = vld [vmem:[%s0 + $0xc4] sm:$0xf]
    %v76 = vld [vmem:[%s0 + $0xc8] sm:$0xf]
    %v77 = vld [vmem:[%s0 + $0xcc] sm:$0xf]
    %v78 = vld [vmem:[%s0 + $0xd0] sm:$0xf]
    %v79 = vld [vmem:[%s0 + $0xd4] sm:$0xf]
    %v80 = vld [vmem:[%s0 + $0xd8] sm:$0xf]
    %v81 = vld [vmem:[%s0 + $0xdc] sm:$0xf]
    %v82 = vld [vmem:[%s0 + $0xe0] sm:$0xf]
    %v83 = vld [vmem:[%s0 + $0xe4] sm:$0xf]
    %v84 = vld [vmem:[%s0 + $0xe8] sm:$0xf]
    %v85 = vld [vmem:[%s0 + $0xec] sm:$0xf]
    %v86 = vld [vmem:[%s0 + $0xf0] sm:$0xf]
    %v87 = vld [vmem:[%s0 + $0xf4] sm:$0xf]
    %v88 = vld [vmem:[%s0 + $0xf8] sm:$0xf]
    %v89 = vld [vmem:[%s0 + $0xfc] sm:$0xf]
    %v90 = vld [vmem:[#allocation2] sm:$0xf]
    %v91 = vld [vmem:[#allocation2 + $0x4] sm:$0xf]
    %v92 = vld [vmem:[#allocation2 + $0x8] sm:$0xf]
    %v93 = vld [vmem:[#allocation2 + $0xc] sm:$0xf]
    %v94 = vld [vmem:[#allocation2 + $0x10] sm:$0xf]
    %v95 = vld [vmem:[#allocation2 + $0x14] sm:$0xf]
    %v96 = vld [vmem:[#allocation2 + $0x18] sm:$0xf]
    %v97 = vld [vmem:[#allocation2 + $0x1c] sm:$0xf]
    %v98 = vld [vmem:[#allocation2 + $0x20] sm:$0xf]
    %v99 = vld [vmem:[#allocation2 + $0x24] sm:$0xf]
    %v100 = vld [vmem:[#allocation2 + $0x28] sm:$0xf]
    %v101 = vld [vmem:[#allocation2 + $0x2c] sm:$0xf]
    %v102 = vld [vmem:[#allocation2 + $0x30] sm:$0xf]
    %v103 = vld [vmem:[#allocation2 + $0x34] sm:$0xf]
    %v104 = vld [vmem:[#allocation2 + $0x38] sm:$0xf]
    %v105 = vld [vmem:[#allocation2 + $0x3c] sm:$0xf]
    %v170 = vunpack.c.l.b16 %v26
    %v171 = vunpack.c.l.b16 %v27
    %v172 = vunpack.c.l.b16 %v28
    %v173 = vunpack.c.l.b16 %v29
    %v174 = vunpack.c.l.b16 %v30
    %v175 = vunpack.c.l.b16 %v31
    %v176 = vunpack.c.l.b16 %v32
    %v177 = vunpack.c.l.b16 %v33
    %v178 = vunpack.c.l.b16 %v34
    %v179 = vunpack.c.l.b16 %v35
    %v180 = vunpack.c.l.b16 %v36
    %v181 = vunpack.c.l.b16 %v37
    %v182 = vunpack.c.l.b16 %v38
    %v183 = vunpack.c.l.b16 %v39
    %v184 = vunpack.c.l.b16 %v40
    %v185 = vunpack.c.l.b16 %v41
    %v186 = vunpack.c.l.b16 %v42
    %v187 = vunpack.c.l.b16 %v43
    %v188 = vunpack.c.l.b16 %v44
    %v189 = vunpack.c.l.b16 %v45
    %v190 = vunpack.c.l.b16 %v46
    %v191 = vunpack.c.l.b16 %v47
    %v192 = vunpack.c.l.b16 %v48
    %v193 = vunpack.c.l.b16 %v49
    %v194 = vunpack.c.l.b16 %v50
    %v195 = vunpack.c.l.b16 %v51
    %v196 = vunpack.c.l.b16 %v52
    %v197 = vunpack.c.l.b16 %v53
    %v198 = vunpack.c.l.b16 %v54
    %v199 = vunpack.c.l.b16 %v55
    %v200 = vunpack.c.l.b16 %v56
    %v201 = vunpack.c.l.b16 %v57
    %v202 = vunpack.c.l.b16 %v58
    %v203 = vunpack.c.l.b16 %v59
    %v204 = vunpack.c.l.b16 %v60
    %v205 = vunpack.c.l.b16 %v61
    %v206 = vunpack.c.l.b16 %v62
    %v207 = vunpack.c.l.b16 %v63
    %v208 = vunpack.c.l.b16 %v64
    %v209 = vunpack.c.l.b16 %v65
    %v210 = vunpack.c.l.b16 %v66
    %v211 = vunpack.c.l.b16 %v67
    %v212 = vunpack.c.l.b16 %v68
    %v213 = vunpack.c.l.b16 %v69
    %v214 = vunpack.c.l.b16 %v70
    %v215 = vunpack.c.l.b16 %v71
    %v216 = vunpack.c.l.b16 %v72
    %v217 = vunpack.c.l.b16 %v73
    %v218 = vunpack.c.l.b16 %v74
    %v219 = vunpack.c.l.b16 %v75
    %v220 = vunpack.c.l.b16 %v76
    %v221 = vunpack.c.l.b16 %v77
    %v222 = vunpack.c.l.b16 %v78
    %v223 = vunpack.c.l.b16 %v79
    %v224 = vunpack.c.l.b16 %v80
    %v225 = vunpack.c.l.b16 %v81
    %v226 = vunpack.c.l.b16 %v82
    %v227 = vunpack.c.l.b16 %v83
    %v228 = vunpack.c.l.b16 %v84
    %v229 = vunpack.c.l.b16 %v85
    %v230 = vunpack.c.l.b16 %v86
    %v231 = vunpack.c.l.b16 %v87
    %v232 = vunpack.c.l.b16 %v88
    %v233 = vunpack.c.l.b16 %v89
    %v234 = vpack.c.b16 %v171, %v170
    %v235 = vpack.c.b16 %v173, %v172
    %v236 = vpack.c.b16 %v175, %v174
    %v237 = vpack.c.b16 %v177, %v176
    %v238 = vpack.c.b16 %v179, %v178
    %v239 = vpack.c.b16 %v181, %v180
    %v240 = vpack.c.b16 %v183, %v182
    %v241 = vpack.c.b16 %v185, %v184
    %v242 = vpack.c.b16 %v187, %v186
    %v243 = vpack.c.b16 %v189, %v188
    %v244 = vpack.c.b16 %v191, %v190
    %v245 = vpack.c.b16 %v193, %v192
    %v246 = vpack.c.b16 %v195, %v194
    %v247 = vpack.c.b16 %v197, %v196
    %v248 = vpack.c.b16 %v199, %v198
    %v249 = vpack.c.b16 %v201, %v200
    %v250 = vpack.c.b16 %v203, %v202
    %v251 = vpack.c.b16 %v205, %v204
    %v252 = vpack.c.b16 %v207, %v206
    %v253 = vpack.c.b16 %v209, %v208
    %v254 = vpack.c.b16 %v211, %v210
    %v255 = vpack.c.b16 %v213, %v212
    %v256 = vpack.c.b16 %v215, %v214
    %v257 = vpack.c.b16 %v217, %v216
    %v258 = vpack.c.b16 %v219, %v218
    %v259 = vpack.c.b16 %v221, %v220
    %v260 = vpack.c.b16 %v223, %v222
    %v261 = vpack.c.b16 %v225, %v224
    %v262 = vpack.c.b16 %v227, %v226
    %v263 = vpack.c.b16 %v229, %v228
    %v264 = vpack.c.b16 %v231, %v230
    %v265 = vpack.c.b16 %v233, %v232
    %v314 = vunpack.c.l.b16 %v90
    %v315 = vunpack.c.l.b16 %v91
    %v316 = vunpack.c.l.b16 %v92
    %v317 = vunpack.c.l.b16 %v93
    %v318 = vunpack.c.l.b16 %v94
    %v319 = vunpack.c.l.b16 %v95
    %v320 = vunpack.c.l.b16 %v96
    %v321 = vunpack.c.l.b16 %v97
    %v322 = vunpack.c.l.b16 %v98
    %v323 = vunpack.c.l.b16 %v99
    %v324 = vunpack.c.l.b16 %v100
    %v325 = vunpack.c.l.b16 %v101
    %v326 = vunpack.c.l.b16 %v102
    %v327 = vunpack.c.l.b16 %v103
    %v328 = vunpack.c.l.b16 %v104
    %v329 = vunpack.c.l.b16 %v105
    %v330 = vpack.c.b16 %v315, %v314
    %v331 = vpack.c.b16 %v317, %v316
    %v332 = vpack.c.b16 %v319, %v318
    %v333 = vpack.c.b16 %v321, %v320
    %v334 = vpack.c.b16 %v323, %v322
    %v335 = vpack.c.b16 %v325, %v324
    %v336 = vpack.c.b16 %v327, %v326
    %v337 = vpack.c.b16 %v329, %v328
    %346 = vmatprep.subr.bf16.mxu0 0
    %347 = vmatpush1.bf16.msra.mxu0 %v337
    %348 = vmatprep.subr.bf16.mxu0 0
    %349 = vmatpush1.bf16.msra.mxu0 %v336
    %350 = vmatprep.subr.bf16.mxu0 0
    %351 = vmatpush1.bf16.msra.mxu0 %v335
    %352 = vmatprep.subr.bf16.mxu0 0
    %353 = vmatpush1.bf16.msra.mxu0 %v334
    %354 = vmatprep.subr.bf16.mxu0 0
    %355 = vmatpush1.bf16.msra.mxu0 %v333
    %356 = vmatprep.subr.bf16.mxu0 0
    %357 = vmatpush1.bf16.msra.mxu0 %v332
    %358 = vmatprep.subr.bf16.mxu0 0
    %359 = vmatpush1.bf16.msra.mxu0 %v331
    %360 = vmatprep.subr.bf16.mxu0 0
    %361 = vmatpush1.bf16.msra.mxu0 %v330
    %362 = vmatprep.subr.bf16.mxu0 0
    %363 = vmatpush2.bf16.msra.mxu0 0
    %364 = vmatprep.subr.bf16.mxu0 0
    %365 = vmatpush2.bf16.msra.mxu0 0
    %366 = vmatprep.subr.bf16.mxu0 0
    %367 = vmatpush2.bf16.msra.mxu0 0
    %368 = vmatprep.subr.bf16.mxu0 0
    %369 = vmatpush2.bf16.msra.mxu0 0
    %370 = vmatprep.subr.bf16.mxu0 0
    %371 = vmatpush2.bf16.msra.mxu0 0
    %372 = vmatprep.subr.bf16.mxu0 0
    %373 = vmatpush2.bf16.msra.mxu0 0
    %374 = vmatprep.subr.bf16.mxu0 0
    %375 = vmatpush2.bf16.msra.mxu0 0
    %376 = vmatprep.subr.bf16.mxu0 0
    %377 = vmatpush2.bf16.msra.mxu0 0
    %378 = vmatprep.mubr.bf16.mxu0 0
    %379 = vmatmul.mubr.bf16.gmra.mxu0 %v234
    %v380 = vpop.f32.mrf.mxu0
    %v381 = vadd.f32 0.0, %v380
    %v382 = vpop.f32.mrf.mxu0
    %v383 = vpop.f32.mrf.mxu0
    %v384 = vadd.f32 0.0, %v383
    %v385 = vpop.f32.mrf.mxu0
    %386 = vmatprep.mubr.bf16.mxu0 0
    %387 = vmatmul.mubr.bf16.gmra.mxu0 %v235
    %v388 = vpop.f32.mrf.mxu0
    %v389 = vadd.f32 0.0, %v388
    %v390 = vpop.f32.mrf.mxu0
    %v391 = vpop.f32.mrf.mxu0
    %v392 = vadd.f32 0.0, %v391
    %v393 = vpop.f32.mrf.mxu0
    %394 = vmatprep.mubr.bf16.mxu0 0
    %395 = vmatmul.mubr.bf16.gmra.mxu0 %v236
    %v396 = vpop.f32.mrf.mxu0
    %v397 = vadd.f32 0.0, %v396
    %v398 = vpop.f32.mrf.mxu0
    %v399 = vpop.f32.mrf.mxu0
    %v400 = vadd.f32 0.0, %v399
    %v401 = vpop.f32.mrf.mxu0
    %402 = vmatprep.mubr.bf16.mxu0 0
    %403 = vmatmul.mubr.bf16.gmra.mxu0 %v237
    %v404 = vpop.f32.mrf.mxu0
    %v405 = vadd.f32 0.0, %v404
    %v406 = vpop.f32.mrf.mxu0
    %v407 = vpop.f32.mrf.mxu0
    %v408 = vadd.f32 0.0, %v407
    %v409 = vpop.f32.mrf.mxu0
    %410 = vmatprep.mubr.bf16.mxu0 0
    %411 = vmatmul.mubr.bf16.gmra.mxu0 %v238
    %v412 = vpop.f32.mrf.mxu0
    %v413 = vadd.f32 0.0, %v412
    %v414 = vpop.f32.mrf.mxu0
    %v415 = vpop.f32.mrf.mxu0
    %v416 = vadd.f32 0.0, %v415
    %v417 = vpop.f32.mrf.mxu0
    %418 = vmatprep.mubr.bf16.mxu0 0
    %419 = vmatmul.mubr.bf16.gmra.mxu0 %v239
    %v420 = vpop.f32.mrf.mxu0
    %v421 = vadd.f32 0.0, %v420
    %v422 = vpop.f32.mrf.mxu0
    %v423 = vpop.f32.mrf.mxu0
    %v424 = vadd.f32 0.0, %v423
    %v425 = vpop.f32.mrf.mxu0
    %426 = vmatprep.mubr.bf16.mxu0 0
    %427 = vmatmul.mubr.bf16.gmra.mxu0 %v240
    %v428 = vpop.f32.mrf.mxu0
    %v429 = vadd.f32 0.0, %v428
    %v430 = vpop.f32.mrf.mxu0
    %v431 = vpop.f32.mrf.mxu0
    %v432 = vadd.f32 0.0, %v431
    %v433 = vpop.f32.mrf.mxu0
    %434 = vmatprep.mubr.bf16.mxu0 0
    %435 = vmatmul.mubr.bf16.gmra.mxu0 %v241
    %v436 = vpop.f32.mrf.mxu0
    %v437 = vadd.f32 0.0, %v436
    %v438 = vpop.f32.mrf.mxu0
    %v439 = vpop.f32.mrf.mxu0
    %v440 = vadd.f32 0.0, %v439
    %v441 = vpop.f32.mrf.mxu0
    %442 = vmatprep.mubr.bf16.mxu0 0
    %443 = vmatmul.mubr.bf16.gmra.mxu0 %v242
    %v444 = vpop.f32.mrf.mxu0
    %v445 = vadd.f32 0.0, %v444
    %v446 = vpop.f32.mrf.mxu0
    %v447 = vpop.f32.mrf.mxu0
    %v448 = vadd.f32 0.0, %v447
    %v449 = vpop.f32.mrf.mxu0
    %450 = vmatprep.mubr.bf16.mxu0 0
    %451 = vmatmul.mubr.bf16.gmra.mxu0 %v243
    %v452 = vpop.f32.mrf.mxu0
    %v453 = vadd.f32 0.0, %v452
    %v454 = vpop.f32.mrf.mxu0
    %v455 = vpop.f32.mrf.mxu0
    %v456 = vadd.f32 0.0, %v455
    %v457 = vpop.f32.mrf.mxu0
    %458 = vmatprep.mubr.bf16.mxu0 0
    %459 = vmatmul.mubr.bf16.gmra.mxu0 %v244
    %v460 = vpop.f32.mrf.mxu0
    %v461 = vadd.f32 0.0, %v460
    %v462 = vpop.f32.mrf.mxu0
    %v463 = vpop.f32.mrf.mxu0
    %v464 = vadd.f32 0.0, %v463
    %v465 = vpop.f32.mrf.mxu0
    %466 = vmatprep.mubr.bf16.mxu0 0
    %467 = vmatmul.mubr.bf16.gmra.mxu0 %v245
    %v468 = vpop.f32.mrf.mxu0
    %v469 = vadd.f32 0.0, %v468
    %v470 = vpop.f32.mrf.mxu0
    %v471 = vpop.f32.mrf.mxu0
    %v472 = vadd.f32 0.0, %v471
    %v473 = vpop.f32.mrf.mxu0
    %474 = vmatprep.mubr.bf16.mxu0 0
    %475 = vmatmul.mubr.bf16.gmra.mxu0 %v246
    %v476 = vpop.f32.mrf.mxu0
    %v477 = vadd.f32 0.0, %v476
    %v478 = vpop.f32.mrf.mxu0
    %v479 = vpop.f32.mrf.mxu0
    %v480 = vadd.f32 0.0, %v479
    %v481 = vpop.f32.mrf.mxu0
    %482 = vmatprep.mubr.bf16.mxu0 0
    %483 = vmatmul.mubr.bf16.gmra.mxu0 %v247
    %v484 = vpop.f32.mrf.mxu0
    %v485 = vadd.f32 0.0, %v484
    %v486 = vpop.f32.mrf.mxu0
    %v487 = vpop.f32.mrf.mxu0
    %v488 = vadd.f32 0.0, %v487
    %v489 = vpop.f32.mrf.mxu0
    %490 = vmatprep.mubr.bf16.mxu0 0
    %491 = vmatmul.mubr.bf16.gmra.mxu0 %v248
    %v492 = vpop.f32.mrf.mxu0
    %v493 = vadd.f32 0.0, %v492
    %v494 = vpop.f32.mrf.mxu0
    %v495 = vpop.f32.mrf.mxu0
    %v496 = vadd.f32 0.0, %v495
    %v497 = vpop.f32.mrf.mxu0
    %498 = vmatprep.mubr.bf16.mxu0 0
    %499 = vmatmul.mubr.bf16.gmra.mxu0 %v249
    %v500 = vpop.f32.mrf.mxu0
    %v501 = vadd.f32 0.0, %v500
    %v502 = vpop.f32.mrf.mxu0
    %v503 = vpop.f32.mrf.mxu0
    %v504 = vadd.f32 0.0, %v503
    %v505 = vpop.f32.mrf.mxu0
    %506 = vmatprep.mubr.bf16.mxu0 0
    %507 = vmatmul.mubr.bf16.gmra.mxu0 %v250
    %v508 = vpop.f32.mrf.mxu0
    %v509 = vadd.f32 0.0, %v508
    %v510 = vpop.f32.mrf.mxu0
    %v511 = vpop.f32.mrf.mxu0
    %v512 = vadd.f32 0.0, %v511
    %v513 = vpop.f32.mrf.mxu0
    %514 = vmatprep.mubr.bf16.mxu0 0
    %515 = vmatmul.mubr.bf16.gmra.mxu0 %v251
    %v516 = vpop.f32.mrf.mxu0
    %v517 = vadd.f32 0.0, %v516
    %v518 = vpop.f32.mrf.mxu0
    %v519 = vpop.f32.mrf.mxu0
    %v520 = vadd.f32 0.0, %v519
    %v521 = vpop.f32.mrf.mxu0
    %522 = vmatprep.mubr.bf16.mxu0 0
    %523 = vmatmul.mubr.bf16.gmra.mxu0 %v252
    %v524 = vpop.f32.mrf.mxu0
    %v525 = vadd.f32 0.0, %v524
    %v526 = vpop.f32.mrf.mxu0
    %v527 = vpop.f32.mrf.mxu0
    %v528 = vadd.f32 0.0, %v527
    %v529 = vpop.f32.mrf.mxu0
    %530 = vmatprep.mubr.bf16.mxu0 0
    %531 = vmatmul.mubr.bf16.gmra.mxu0 %v253
    %v532 = vpop.f32.mrf.mxu0
    %v533 = vadd.f32 0.0, %v532
    %v534 = vpop.f32.mrf.mxu0
    %v535 = vpop.f32.mrf.mxu0
    %v536 = vadd.f32 0.0, %v535
    %v537 = vpop.f32.mrf.mxu0
    %538 = vmatprep.mubr.bf16.mxu0 0
    %539 = vmatmul.mubr.bf16.gmra.mxu0 %v254
    %v540 = vpop.f32.mrf.mxu0
    %v541 = vadd.f32 0.0, %v540
    %v542 = vpop.f32.mrf.mxu0
    %v543 = vpop.f32.mrf.mxu0
    %v544 = vadd.f32 0.0, %v543
    %v545 = vpop.f32.mrf.mxu0
    %546 = vmatprep.mubr.bf16.mxu0 0
    %547 = vmatmul.mubr.bf16.gmra.mxu0 %v255
    %v548 = vpop.f32.mrf.mxu0
    %v549 = vadd.f32 0.0, %v548
    %v550 = vpop.f32.mrf.mxu0
    %v551 = vpop.f32.mrf.mxu0
    %v552 = vadd.f32 0.0, %v551
    %v553 = vpop.f32.mrf.mxu0
    %554 = vmatprep.mubr.bf16.mxu0 0
    %555 = vmatmul.mubr.bf16.gmra.mxu0 %v256
    %v556 = vpop.f32.mrf.mxu0
    %v557 = vadd.f32 0.0, %v556
    %v558 = vpop.f32.mrf.mxu0
    %v559 = vpop.f32.mrf.mxu0
    %v560 = vadd.f32 0.0, %v559
    %v561 = vpop.f32.mrf.mxu0
    %562 = vmatprep.mubr.bf16.mxu0 0
    %563 = vmatmul.mubr.bf16.gmra.mxu0 %v257
    %v564 = vpop.f32.mrf.mxu0
    %v565 = vadd.f32 0.0, %v564
    %v566 = vpop.f32.mrf.mxu0
    %v567 = vpop.f32.mrf.mxu0
    %v568 = vadd.f32 0.0, %v567
    %v569 = vpop.f32.mrf.mxu0
    %570 = vmatprep.mubr.bf16.mxu0 0
    %571 = vmatmul.mubr.bf16.gmra.mxu0 %v258
    %v572 = vpop.f32.mrf.mxu0
    %v573 = vadd.f32 0.0, %v572
    %v574 = vpop.f32.mrf.mxu0
    %v575 = vpop.f32.mrf.mxu0
    %v576 = vadd.f32 0.0, %v575
    %v577 = vpop.f32.mrf.mxu0
    %578 = vmatprep.mubr.bf16.mxu0 0
    %579 = vmatmul.mubr.bf16.gmra.mxu0 %v259
    %v580 = vpop.f32.mrf.mxu0
    %v581 = vadd.f32 0.0, %v580
    %v582 = vpop.f32.mrf.mxu0
    %v583 = vpop.f32.mrf.mxu0
    %v584 = vadd.f32 0.0, %v583
    %v585 = vpop.f32.mrf.mxu0
    %586 = vmatprep.mubr.bf16.mxu0 0
    %587 = vmatmul.mubr.bf16.gmra.mxu0 %v260
    %v588 = vpop.f32.mrf.mxu0
    %v589 = vadd.f32 0.0, %v588
    %v590 = vpop.f32.mrf.mxu0
    %v591 = vpop.f32.mrf.mxu0
    %v592 = vadd.f32 0.0, %v591
    %v593 = vpop.f32.mrf.mxu0
    %594 = vmatprep.mubr.bf16.mxu0 0
    %595 = vmatmul.mubr.bf16.gmra.mxu0 %v261
    %v596 = vpop.f32.mrf.mxu0
    %v597 = vadd.f32 0.0, %v596
    %v598 = vpop.f32.mrf.mxu0
    %v599 = vpop.f32.mrf.mxu0
    %v600 = vadd.f32 0.0, %v599
    %v601 = vpop.f32.mrf.mxu0
    %602 = vmatprep.mubr.bf16.mxu0 0
    %603 = vmatmul.mubr.bf16.gmra.mxu0 %v262
    %v604 = vpop.f32.mrf.mxu0
    %v605 = vadd.f32 0.0, %v604
    %v606 = vpop.f32.mrf.mxu0
    %v607 = vpop.f32.mrf.mxu0
    %v608 = vadd.f32 0.0, %v607
    %v609 = vpop.f32.mrf.mxu0
    %610 = vmatprep.mubr.bf16.mxu0 0
    %611 = vmatmul.mubr.bf16.gmra.mxu0 %v263
    %v612 = vpop.f32.mrf.mxu0
    %v613 = vadd.f32 0.0, %v612
    %v614 = vpop.f32.mrf.mxu0
    %v615 = vpop.f32.mrf.mxu0
    %v616 = vadd.f32 0.0, %v615
    %v617 = vpop.f32.mrf.mxu0
    %618 = vmatprep.mubr.bf16.mxu0 0
    %619 = vmatmul.mubr.bf16.gmra.mxu0 %v264
    %v620 = vpop.f32.mrf.mxu0
    %v621 = vadd.f32 0.0, %v620
    %v622 = vpop.f32.mrf.mxu0
    %v623 = vpop.f32.mrf.mxu0
    %v624 = vadd.f32 0.0, %v623
    %v625 = vpop.f32.mrf.mxu0
    %626 = vmatprep.mubr.bf16.mxu0 0
    %627 = vmatmul.mubr.bf16.gmra.mxu0 %v265
    %v628 = vpop.f32.mrf.mxu0
    %v629 = vadd.f32 0.0, %v628
    %v630 = vpop.f32.mrf.mxu0
    %v631 = vpop.f32.mrf.mxu0
    %v632 = vadd.f32 0.0, %v631
    %v633 = vpop.f32.mrf.mxu0
    %634 = vdwg.mxu0
    %v635 = vmax.f32 %v381, 0.0
    %v636 = vmax.f32 %v384, 0.0
    %v637 = vmax.f32 %v389, 0.0
    %v638 = vmax.f32 %v392, 0.0
    %v639 = vmax.f32 %v397, 0.0
    %v640 = vmax.f32 %v400, 0.0
    %v641 = vmax.f32 %v405, 0.0
    %v642 = vmax.f32 %v408, 0.0
    %v643 = vmax.f32 %v413, 0.0
    %v644 = vmax.f32 %v416, 0.0
    %v645 = vmax.f32 %v421, 0.0
    %v646 = vmax.f32 %v424, 0.0
    %v647 = vmax.f32 %v429, 0.0
    %v648 = vmax.f32 %v432, 0.0
    %v649 = vmax.f32 %v437, 0.0
    %v650 = vmax.f32 %v440, 0.0
    %v651 = vmax.f32 %v445, 0.0
    %v652 = vmax.f32 %v448, 0.0
    %v653 = vmax.f32 %v453, 0.0
    %v654 = vmax.f32 %v456, 0.0
    %v655 = vmax.f32 %v461, 0.0
    %v656 = vmax.f32 %v464, 0.0
    %v657 = vmax.f32 %v469, 0.0
    %v658 = vmax.f32 %v472, 0.0
    %v659 = vmax.f32 %v477, 0.0
    %v660 = vmax.f32 %v480, 0.0
    %v661 = vmax.f32 %v485, 0.0
    %v662 = vmax.f32 %v488, 0.0
    %v663 = vmax.f32 %v493, 0.0
    %v664 = vmax.f32 %v496, 0.0
    %v665 = vmax.f32 %v501, 0.0
    %v666 = vmax.f32 %v504, 0.0
    %v667 = vmax.f32 %v509, 0.0
    %v668 = vmax.f32 %v512, 0.0
    %v669 = vmax.f32 %v517, 0.0
    %v670 = vmax.f32 %v520, 0.0
    %v671 = vmax.f32 %v525, 0.0
    %v672 = vmax.f32 %v528, 0.0
    %v673 = vmax.f32 %v533, 0.0
    %v674 = vmax.f32 %v536, 0.0
    %v675 = vmax.f32 %v541, 0.0
    %v676 = vmax.f32 %v544, 0.0
    %v677 = vmax.f32 %v549, 0.0
    %v678 = vmax.f32 %v552, 0.0
    %v679 = vmax.f32 %v557, 0.0
    %v680 = vmax.f32 %v560, 0.0
    %v681 = vmax.f32 %v565, 0.0
    %v682 = vmax.f32 %v568, 0.0
    %v683 = vmax.f32 %v573, 0.0
    %v684 = vmax.f32 %v576, 0.0
    %v685 = vmax.f32 %v581, 0.0
    %v686 = vmax.f32 %v584, 0.0
    %v687 = vmax.f32 %v589, 0.0
    %v688 = vmax.f32 %v592, 0.0
    %v689 = vmax.f32 %v597, 0.0
    %v690 = vmax.f32 %v600, 0.0
    %v691 = vmax.f32 %v605, 0.0
    %v692 = vmax.f32 %v608, 0.0
    %v693 = vmax.f32 %v613, 0.0
    %v694 = vmax.f32 %v616, 0.0
    %v695 = vmax.f32 %v621, 0.0
    %v696 = vmax.f32 %v624, 0.0
    %v697 = vmax.f32 %v629, 0.0
    %v698 = vmax.f32 %v632, 0.0
    %v699 = vpack.c.bf16 %v636, %v635
    %v700 = vpack.c.bf16 %v638, %v637
    %v701 = vpack.c.bf16 %v640, %v639
    %v702 = vpack.c.bf16 %v642, %v641
    %v703 = vpack.c.bf16 %v644, %v643
    %v704 = vpack.c.bf16 %v646, %v645
    %v705 = vpack.c.bf16 %v648, %v647
    %v706 = vpack.c.bf16 %v650, %v649
    %v707 = vpack.c.bf16 %v652, %v651
    %v708 = vpack.c.bf16 %v654, %v653
    %v709 = vpack.c.bf16 %v656, %v655
    %v710 = vpack.c.bf16 %v658, %v657
    %v711 = vpack.c.bf16 %v660, %v659
    %v712 = vpack.c.bf16 %v662, %v661
    %v713 = vpack.c.bf16 %v664, %v663
    %v714 = vpack.c.bf16 %v666, %v665
    %v715 = vpack.c.bf16 %v668, %v667
    %v716 = vpack.c.bf16 %v670, %v669
    %v717 = vpack.c.bf16 %v672, %v671
    %v718 = vpack.c.bf16 %v674, %v673
    %v719 = vpack.c.bf16 %v676, %v675
    %v720 = vpack.c.bf16 %v678, %v677
    %v721 = vpack.c.bf16 %v680, %v679
    %v722 = vpack.c.bf16 %v682, %v681
    %v723 = vpack.c.bf16 %v684, %v683
    %v724 = vpack.c.bf16 %v686, %v685
    %v725 = vpack.c.bf16 %v688, %v687
    %v726 = vpack.c.bf16 %v690, %v689
    %v727 = vpack.c.bf16 %v692, %v691
    %v728 = vpack.c.bf16 %v694, %v693
    %v729 = vpack.c.bf16 %v696, %v695
    %v730 = vpack.c.bf16 %v698, %v697
    %v763 = vunpack.c.l.b16 %v699
    %v764 = vunpack.c.h.b16 %v699
    %v765 = vunpack.c.l.b16 %v700
    %v766 = vunpack.c.h.b16 %v700
    %v767 = vunpack.c.l.b16 %v701
    %v768 = vunpack.c.h.b16 %v701
    %v769 = vunpack.c.l.b16 %v702
    %v770 = vunpack.c.h.b16 %v702
    %v771 = vunpack.c.l.b16 %v703
    %v772 = vunpack.c.h.b16 %v703
    %v773 = vunpack.c.l.b16 %v704
    %v774 = vunpack.c.h.b16 %v704
    %v775 = vunpack.c.l.b16 %v705
    %v776 = vunpack.c.h.b16 %v705
    %v777 = vunpack.c.l.b16 %v706
    %v778 = vunpack.c.h.b16 %v706
    %v779 = vunpack.c.l.b16 %v707
    %v780 = vunpack.c.h.b16 %v707
    %v781 = vunpack.c.l.b16 %v708
    %v782 = vunpack.c.h.b16 %v708
    %v783 = vunpack.c.l.b16 %v709
    %v784 = vunpack.c.h.b16 %v709
    %v785 = vunpack.c.l.b16 %v710
    %v786 = vunpack.c.h.b16 %v710
    %v787 = vunpack.c.l.b16 %v711
    %v788 = vunpack.c.h.b16 %v711
    %v789 = vunpack.c.l.b16 %v712
    %v790 = vunpack.c.h.b16 %v712
    %v791 = vunpack.c.l.b16 %v713
    %v792 = vunpack.c.h.b16 %v713
    %v793 = vunpack.c.l.b16 %v714
    %v794 = vunpack.c.h.b16 %v714
    %v795 = vunpack.c.l.b16 %v715
    %v796 = vunpack.c.h.b16 %v715
    %v797 = vunpack.c.l.b16 %v716
    %v798 = vunpack.c.h.b16 %v716
    %v799 = vunpack.c.l.b16 %v717
    %v800 = vunpack.c.h.b16 %v717
    %v801 = vunpack.c.l.b16 %v718
    %v802 = vunpack.c.h.b16 %v718
    %v803 = vunpack.c.l.b16 %v719
    %v804 = vunpack.c.h.b16 %v719
    %v805 = vunpack.c.l.b16 %v720
    %v806 = vunpack.c.h.b16 %v720
    %v807 = vunpack.c.l.b16 %v721
    %v808 = vunpack.c.h.b16 %v721
    %v809 = vunpack.c.l.b16 %v722
    %v810 = vunpack.c.h.b16 %v722
    %v811 = vunpack.c.l.b16 %v723
    %v812 = vunpack.c.h.b16 %v723
    %v813 = vunpack.c.l.b16 %v724
    %v814 = vunpack.c.h.b16 %v724
    %v815 = vunpack.c.l.b16 %v725
    %v816 = vunpack.c.h.b16 %v725
    %v817 = vunpack.c.l.b16 %v726
    %v818 = vunpack.c.h.b16 %v726
    %v819 = vunpack.c.l.b16 %v727
    %v820 = vunpack.c.h.b16 %v727
    %v821 = vunpack.c.l.b16 %v728
    %v822 = vunpack.c.h.b16 %v728
    %v823 = vunpack.c.l.b16 %v729
    %v824 = vunpack.c.h.b16 %v729
    %v825 = vunpack.c.l.b16 %v730
    %v826 = vunpack.c.h.b16 %v730
    %v827 = vpack.c.b16 %v763, %v763
    %v828 = vpack.c.b16 %v764, %v764
    %v829 = vpack.c.b16 %v765, %v765
    %v830 = vpack.c.b16 %v766, %v766
    %v831 = vpack.c.b16 %v767, %v767
    %v832 = vpack.c.b16 %v768, %v768
    %v833 = vpack.c.b16 %v769, %v769
    %v834 = vpack.c.b16 %v770, %v770
    %v835 = vpack.c.b16 %v771, %v771
    %v836 = vpack.c.b16 %v772, %v772
    %v837 = vpack.c.b16 %v773, %v773
    %v838 = vpack.c.b16 %v774, %v774
    %v839 = vpack.c.b16 %v775, %v775
    %v840 = vpack.c.b16 %v776, %v776
    %v841 = vpack.c.b16 %v777, %v777
    %v842 = vpack.c.b16 %v778, %v778
    %v843 = vpack.c.b16 %v779, %v779
    %v844 = vpack.c.b16 %v780, %v780
    %v845 = vpack.c.b16 %v781, %v781
    %v846 = vpack.c.b16 %v782, %v782
    %v847 = vpack.c.b16 %v783, %v783
    %v848 = vpack.c.b16 %v784, %v784
    %v849 = vpack.c.b16 %v785, %v785
    %v850 = vpack.c.b16 %v786, %v786
    %v851 = vpack.c.b16 %v787, %v787
    %v852 = vpack.c.b16 %v788, %v788
    %v853 = vpack.c.b16 %v789, %v789
    %v854 = vpack.c.b16 %v790, %v790
    %v855 = vpack.c.b16 %v791, %v791
    %v856 = vpack.c.b16 %v792, %v792
    %v857 = vpack.c.b16 %v793, %v793
    %v858 = vpack.c.b16 %v794, %v794
    %v859 = vpack.c.b16 %v795, %v795
    %v860 = vpack.c.b16 %v796, %v796
    %v861 = vpack.c.b16 %v797, %v797
    %v862 = vpack.c.b16 %v798, %v798
    %v863 = vpack.c.b16 %v799, %v799
    %v864 = vpack.c.b16 %v800, %v800
    %v865 = vpack.c.b16 %v801, %v801
    %v866 = vpack.c.b16 %v802, %v802
    %v867 = vpack.c.b16 %v803, %v803
    %v868 = vpack.c.b16 %v804, %v804
    %v869 = vpack.c.b16 %v805, %v805
    %v870 = vpack.c.b16 %v806, %v806
    %v871 = vpack.c.b16 %v807, %v807
    %v872 = vpack.c.b16 %v808, %v808
    %v873 = vpack.c.b16 %v809, %v809
    %v874 = vpack.c.b16 %v810, %v810
    %v875 = vpack.c.b16 %v811, %v811
    %v876 = vpack.c.b16 %v812, %v812
    %v877 = vpack.c.b16 %v813, %v813
    %v878 = vpack.c.b16 %v814, %v814
    %v879 = vpack.c.b16 %v815, %v815
    %v880 = vpack.c.b16 %v816, %v816
    %v881 = vpack.c.b16 %v817, %v817
    %v882 = vpack.c.b16 %v818, %v818
    %v883 = vpack.c.b16 %v819, %v819
    %v884 = vpack.c.b16 %v820, %v820
    %v885 = vpack.c.b16 %v821, %v821
    %v886 = vpack.c.b16 %v822, %v822
    %v887 = vpack.c.b16 %v823, %v823
    %v888 = vpack.c.b16 %v824, %v824
    %v889 = vpack.c.b16 %v825, %v825
    %v890 = vpack.c.b16 %v826, %v826
    %955 = vst [vmem:[%s2] sm:$0xf] %v827
    %956 = vst [vmem:[%s2 + $0x4] sm:$0xf] %v828
    %957 = vst [vmem:[%s2 + $0x8] sm:$0xf] %v829
    %958 = vst [vmem:[%s2 + $0xc] sm:$0xf] %v830
    %959 = vst [vmem:[%s2 + $0x10] sm:$0xf] %v831
    %960 = vst [vmem:[%s2 + $0x14] sm:$0xf] %v832
    %961 = vst [vmem:[%s2 + $0x18] sm:$0xf] %v833
    %962 = vst [vmem:[%s2 + $0x1c] sm:$0xf] %v834
    %963 = vst [vmem:[%s2 + $0x20] sm:$0xf] %v835
    %964 = vst [vmem:[%s2 + $0x24] sm:$0xf] %v836
    %965 = vst [vmem:[%s2 + $0x28] sm:$0xf] %v837
    %966 = vst [vmem:[%s2 + $0x2c] sm:$0xf] %v838
    %967 = vst [vmem:[%s2 + $0x30] sm:$0xf] %v839
    %968 = vst [vmem:[%s2 + $0x34] sm:$0xf] %v840
    %969 = vst [vmem:[%s2 + $0x38] sm:$0xf] %v841
    %970 = vst [vmem:[%s2 + $0x3c] sm:$0xf] %v842
    %971 = vst [vmem:[%s2 + $0x40] sm:$0xf] %v843
    %972 = vst [vmem:[%s2 + $0x44] sm:$0xf] %v844
    %973 = vst [vmem:[%s2 + $0x48] sm:$0xf] %v845
    %974 = vst [vmem:[%s2 + $0x4c] sm:$0xf] %v846
    %975 = vst [vmem:[%s2 + $0x50] sm:$0xf] %v847
    %976 = vst [vmem:[%s2 + $0x54] sm:$0xf] %v848
    %977 = vst [vmem:[%s2 + $0x58] sm:$0xf] %v849
    %978 = vst [vmem:[%s2 + $0x5c] sm:$0xf] %v850
    %979 = vst [vmem:[%s2 + $0x60] sm:$0xf] %v851
    %980 = vst [vmem:[%s2 + $0x64] sm:$0xf] %v852
    %981 = vst [vmem:[%s2 + $0x68] sm:$0xf] %v853
    %982 = vst [vmem:[%s2 + $0x6c] sm:$0xf] %v854
    %983 = vst [vmem:[%s2 + $0x70] sm:$0xf] %v855
    %984 = vst [vmem:[%s2 + $0x74] sm:$0xf] %v856
    %985 = vst [vmem:[%s2 + $0x78] sm:$0xf] %v857
    %986 = vst [vmem:[%s2 + $0x7c] sm:$0xf] %v858
    %987 = vst [vmem:[%s2 + $0x80] sm:$0xf] %v859
    %988 = vst [vmem:[%s2 + $0x84] sm:$0xf] %v860
    %989 = vst [vmem:[%s2 + $0x88] sm:$0xf] %v861
    %990 = vst [vmem:[%s2 + $0x8c] sm:$0xf] %v862
    %991 = vst [vmem:[%s2 + $0x90] sm:$0xf] %v863
    %992 = vst [vmem:[%s2 + $0x94] sm:$0xf] %v864
    %993 = vst [vmem:[%s2 + $0x98] sm:$0xf] %v865
    %994 = vst [vmem:[%s2 + $0x9c] sm:$0xf] %v866
    %995 = vst [vmem:[%s2 + $0xa0] sm:$0xf] %v867
    %996 = vst [vmem:[%s2 + $0xa4] sm:$0xf] %v868
    %997 = vst [vmem:[%s2 + $0xa8] sm:$0xf] %v869
    %998 = vst [vmem:[%s2 + $0xac] sm:$0xf] %v870
    %999 = vst [vmem:[%s2 + $0xb0] sm:$0xf] %v871
    %1000 = vst [vmem:[%s2 + $0xb4] sm:$0xf] %v872
    %1001 = vst [vmem:[%s2 + $0xb8] sm:$0xf] %v873
    %1002 = vst [vmem:[%s2 + $0xbc] sm:$0xf] %v874
    %1003 = vst [vmem:[%s2 + $0xc0] sm:$0xf] %v875
    %1004 = vst [vmem:[%s2 + $0xc4] sm:$0xf] %v876
    %1005 = vst [vmem:[%s2 + $0xc8] sm:$0xf] %v877
    %1006 = vst [vmem:[%s2 + $0xcc] sm:$0xf] %v878
    %1007 = vst [vmem:[%s2 + $0xd0] sm:$0xf] %v879
    %1008 = vst [vmem:[%s2 + $0xd4] sm:$0xf] %v880
    %1009 = vst [vmem:[%s2 + $0xd8] sm:$0xf] %v881
    %1010 = vst [vmem:[%s2 + $0xdc] sm:$0xf] %v882
    %1011 = vst [vmem:[%s2 + $0xe0] sm:$0xf] %v883
    %1012 = vst [vmem:[%s2 + $0xe4] sm:$0xf] %v884
    %1013 = vst [vmem:[%s2 + $0xe8] sm:$0xf] %v885
    %1014 = vst [vmem:[%s2 + $0xec] sm:$0xf] %v886
    %1015 = vst [vmem:[%s2 + $0xf0] sm:$0xf] %v887
    %1016 = vst [vmem:[%s2 + $0xf4] sm:$0xf] %v888
    %1017 = vst [vmem:[%s2 + $0xf8] sm:$0xf] %v889
    %1018 = vst [vmem:[%s2 + $0xfc] sm:$0xf] %v890
    // Predicated region
    $region14: #{bottleneck_forward.3} parent=1 // pred_check
      _
    $region15: #{bottleneck_forward.3} parent=1 // pred_check_branch
      %1020 = sbr.rel (0) target = $region17
    $region16: #{bottleneck_forward.3} parent=1 // pred_region
      _
    $region17: #{bottleneck_forward.3} parent=1 // pred_fallthru
      _
    // Predicated region
    $region18: #{bottleneck_forward.3} parent=1 // pred_check
      _
    $region19: #{bottleneck_forward.3} parent=1 // pred_check_branch
      %1022 = sbr.rel (0) target = $region21
    $region20: #{bottleneck_forward.3} parent=1 // pred_region
      _
    $region21: #{bottleneck_forward.3} parent=1 // pred_fallthru
      _
    %1023 = vsyncpa [#allocation3], 1

// kernel: bottleneck_forward.5
$region0: #{bottleneck_forward.5}
  #allocation0 [shape = 'u32[]', space=smem, size = 0x4, offset = 0x4, fixed_abs, tag = 'smem constant byte address 0x4 - core index']
  #allocation1 [shape = 'u32[144,128]{1,0:T(1,128)}', space=vmem, size = 0x12000, scoped, tag = 'internal scratch']
  %s0 = inlined_call_operand.vmem [shape: bf16[128,128], index: 0, kind: input, shape index: {}]
  %s1 = inlined_call_operand.vmem [shape: bf16[128,128], index: 1, kind: input, shape index: {}]
  %s2 = inlined_call_operand.vmem [shape: bf16[128,512], index: 2, kind: input, shape index: {}]
  %s3 = inlined_call_operand.vmem [shape: bf16[128,512], index: 3, kind: input, shape index: {}]
  %s4 = inlined_call_operand.hbm [shape: f32[128,512], index: 4, kind: output, shape index: {}]
  %s5 = sld [smem:[#allocation0]]
  $region26: #{bottleneck_forward.5} parent=0
    _
  %s7 = ssub.s32 1, %s5
  %s8 = scalar_select 0, %s7, %s5
  $region1: #{bottleneck_forward.5} parent=0
    #allocation2 [shape = 'u8[262144]{0}', space=vmem, size = 0x40000, scoped, tag = 'output window, operand 0, single buffered']
    #allocation3 [shape = 's32[1]{0}', space=sflag, size = 0x4, scoped, tag = 'scoped memory for bottleneck_forward.5']
    %9 = vsyncpa [#allocation3], 0
    // Predicated region
    $region2: #{bottleneck_forward.5} parent=1 // pred_check
      _
    $region3: #{bottleneck_forward.5} parent=1 // pred_check_branch
      %11 = sbr.rel (0) target = $region5
    $region4: #{bottleneck_forward.5} parent=1 // pred_region
      _
    $region5: #{bottleneck_forward.5} parent=1 // pred_fallthru
      _
    // Predicated region
    $region6: #{bottleneck_forward.5} parent=1 // pred_check
      _
    $region7: #{bottleneck_forward.5} parent=1 // pred_check_branch
      %13 = sbr.rel (0) target = $region9
    $region8: #{bottleneck_forward.5} parent=1 // pred_region
      _
    $region9: #{bottleneck_forward.5} parent=1 // pred_fallthru
      _
    // Predicated region
    $region10: #{bottleneck_forward.5} parent=1 // pred_check
      _
    $region11: #{bottleneck_forward.5} parent=1 // pred_check_branch
      %15 = sbr.rel (0) target = $region13
    $region12: #{bottleneck_forward.5} parent=1 // pred_region
      _
    $region13: #{bottleneck_forward.5} parent=1 // pred_fallthru
      _
    // Predicated region
    $region14: #{bottleneck_forward.5} parent=1 // pred_check
      _
    $region15: #{bottleneck_forward.5} parent=1 // pred_check_branch
      %17 = sbr.rel (0) target = $region17
    $region16: #{bottleneck_forward.5} parent=1 // pred_region
      _
    $region17: #{bottleneck_forward.5} parent=1 // pred_fallthru
      _
    %v19 = vld [vmem:[%s0] sm:$0xf]
    %v20 = vld [vmem:[%s0 + $0x4] sm:$0xf]
    %v21 = vld [vmem:[%s0 + $0x8] sm:$0xf]
    %v22 = vld [vmem:[%s0 + $0xc] sm:$0xf]
    %v23 = vld [vmem:[%s0 + $0x10] sm:$0xf]
    %v24 = vld [vmem:[%s0 + $0x14] sm:$0xf]
    %v25 = vld [vmem:[%s0 + $0x18] sm:$0xf]
    %v26 = vld [vmem:[%s0 + $0x1c] sm:$0xf]
    %v27 = vld [vmem:[%s0 + $0x20] sm:$0xf]
    %v28 = vld [vmem:[%s0 + $0x24] sm:$0xf]
    %v29 = vld [vmem:[%s0 + $0x28] sm:$0xf]
    %v30 = vld [vmem:[%s0 + $0x2c] sm:$0xf]
    %v31 = vld [vmem:[%s0 + $0x30] sm:$0xf]
    %v32 = vld [vmem:[%s0 + $0x34] sm:$0xf]
    %v33 = vld [vmem:[%s0 + $0x38] sm:$0xf]
    %v34 = vld [vmem:[%s0 + $0x3c] sm:$0xf]
    %v35 = vld [vmem:[%s2] sm:$0xff]
    %v36 = vld [vmem:[%s2 + $0x8] sm:$0xff]
    %v37 = vld [vmem:[%s2 + $0x10] sm:$0xff]
    %v38 = vld [vmem:[%s2 + $0x18] sm:$0xff]
    %v39 = vld [vmem:[%s2 + $0x20] sm:$0xff]
    %v40 = vld [vmem:[%s2 + $0x28] sm:$0xff]
    %v41 = vld [vmem:[%s2 + $0x30] sm:$0xff]
    %v42 = vld [vmem:[%s2 + $0x38] sm:$0xff]
    %v43 = vld [vmem:[%s2 + $0x40] sm:$0xff]
    %v44 = vld [vmem:[%s2 + $0x48] sm:$0xff]
    %v45 = vld [vmem:[%s2 + $0x50] sm:$0xff]
    %v46 = vld [vmem:[%s2 + $0x58] sm:$0xff]
    %v47 = vld [vmem:[%s2 + $0x60] sm:$0xff]
    %v48 = vld [vmem:[%s2 + $0x68] sm:$0xff]
    %v49 = vld [vmem:[%s2 + $0x70] sm:$0xff]
    %v50 = vld [vmem:[%s2 + $0x78] sm:$0xff]
    %v51 = vld [vmem:[%s2 + $0x80] sm:$0xff]
    %v52 = vld [vmem:[%s2 + $0x88] sm:$0xff]
    %v53 = vld [vmem:[%s2 + $0x90] sm:$0xff]
    %v54 = vld [vmem:[%s2 + $0x98] sm:$0xff]
    %v55 = vld [vmem:[%s2 + $0xa0] sm:$0xff]
    %v56 = vld [vmem:[%s2 + $0xa8] sm:$0xff]
    %v57 = vld [vmem:[%s2 + $0xb0] sm:$0xff]
    %v58 = vld [vmem:[%s2 + $0xb8] sm:$0xff]
    %v59 = vld [vmem:[%s2 + $0xc0] sm:$0xff]
    %v60 = vld [vmem:[%s2 + $0xc8] sm:$0xff]
    %v61 = vld [vmem:[%s2 + $0xd0] sm:$0xff]
    %v62 = vld [vmem:[%s2 + $0xd8] sm:$0xff]
    %v63 = vld [vmem:[%s2 + $0xe0] sm:$0xff]
    %v64 = vld [vmem:[%s2 + $0xe8] sm:$0xff]
    %v65 = vld [vmem:[%s2 + $0xf0] sm:$0xff]
    %v66 = vld [vmem:[%s2 + $0xf8] sm:$0xff]
    %v67 = vld [vmem:[%s1] sm:$0xf]
    %v68 = vld [vmem:[%s1 + $0x4] sm:$0xf]
    %v69 = vld [vmem:[%s1 + $0x8] sm:$0xf]
    %v70 = vld [vmem:[%s1 + $0xc] sm:$0xf]
    %v71 = vld [vmem:[%s1 + $0x10] sm:$0xf]
    %v72 = vld [vmem:[%s1 + $0x14] sm:$0xf]
    %v73 = vld [vmem:[%s1 + $0x18] sm:$0xf]
    %v74 = vld [vmem:[%s1 + $0x1c] sm:$0xf]
    %v75 = vld [vmem:[%s1 + $0x20] sm:$0xf]
    %v76 = vld [vmem:[%s1 + $0x24] sm:$0xf]
    %v77 = vld [vmem:[%s1 + $0x28] sm:$0xf]
    %v78 = vld [vmem:[%s1 + $0x2c] sm:$0xf]
    %v79 = vld [vmem:[%s1 + $0x30] sm:$0xf]
    %v80 = vld [vmem:[%s1 + $0x34] sm:$0xf]
    %v81 = vld [vmem:[%s1 + $0x38] sm:$0xf]
    %v82 = vld [vmem:[%s1 + $0x3c] sm:$0xf]
    %v83 = vld [vmem:[%s3] sm:$0xff]
    %v84 = vld [vmem:[%s3 + $0x8] sm:$0xff]
    %v85 = vld [vmem:[%s3 + $0x10] sm:$0xff]
    %v86 = vld [vmem:[%s3 + $0x18] sm:$0xff]
    %v87 = vld [vmem:[%s3 + $0x20] sm:$0xff]
    %v88 = vld [vmem:[%s3 + $0x28] sm:$0xff]
    %v89 = vld [vmem:[%s3 + $0x30] sm:$0xff]
    %v90 = vld [vmem:[%s3 + $0x38] sm:$0xff]
    %v91 = vld [vmem:[%s3 + $0x40] sm:$0xff]
    %v92 = vld [vmem:[%s3 + $0x48] sm:$0xff]
    %v93 = vld [vmem:[%s3 + $0x50] sm:$0xff]
    %v94 = vld [vmem:[%s3 + $0x58] sm:$0xff]
    %v95 = vld [vmem:[%s3 + $0x60] sm:$0xff]
    %v96 = vld [vmem:[%s3 + $0x68] sm:$0xff]
    %v97 = vld [vmem:[%s3 + $0x70] sm:$0xff]
    %v98 = vld [vmem:[%s3 + $0x78] sm:$0xff]
    %v99 = vld [vmem:[%s3 + $0x80] sm:$0xff]
    %v100 = vld [vmem:[%s3 + $0x88] sm:$0xff]
    %v101 = vld [vmem:[%s3 + $0x90] sm:$0xff]
    %v102 = vld [vmem:[%s3 + $0x98] sm:$0xff]
    %v103 = vld [vmem:[%s3 + $0xa0] sm:$0xff]
    %v104 = vld [vmem:[%s3 + $0xa8] sm:$0xff]
    %v105 = vld [vmem:[%s3 + $0xb0] sm:$0xff]
    %v106 = vld [vmem:[%s3 + $0xb8] sm:$0xff]
    %v107 = vld [vmem:[%s3 + $0xc0] sm:$0xff]
    %v108 = vld [vmem:[%s3 + $0xc8] sm:$0xff]
    %v109 = vld [vmem:[%s3 + $0xd0] sm:$0xff]
    %v110 = vld [vmem:[%s3 + $0xd8] sm:$0xff]
    %v111 = vld [vmem:[%s3 + $0xe0] sm:$0xff]
    %v112 = vld [vmem:[%s3 + $0xe8] sm:$0xff]
    %v113 = vld [vmem:[%s3 + $0xf0] sm:$0xff]
    %v114 = vld [vmem:[%s3 + $0xf8] sm:$0xff]
    %v131 = vunpack.c.l.b16 %v67
    %v132 = vunpack.c.l.b16 %v68
    %v133 = vunpack.c.l.b16 %v69
    %v134 = vunpack.c.l.b16 %v70
    %v135 = vunpack.c.l.b16 %v71
    %v136 = vunpack.c.l.b16 %v72
    %v137 = vunpack.c.l.b16 %v73
    %v138 = vunpack.c.l.b16 %v74
    %v139 = vunpack.c.l.b16 %v75
    %v140 = vunpack.c.l.b16 %v76
    %v141 = vunpack.c.l.b16 %v77
    %v142 = vunpack.c.l.b16 %v78
    %v143 = vunpack.c.l.b16 %v79
    %v144 = vunpack.c.l.b16 %v80
    %v145 = vunpack.c.l.b16 %v81
    %v146 = vunpack.c.l.b16 %v82
    %v147 = vpack.c.b16 %v132, %v131
    %v148 = vpack.c.b16 %v134, %v133
    %v149 = vpack.c.b16 %v136, %v135
    %v150 = vpack.c.b16 %v138, %v137
    %v151 = vpack.c.b16 %v140, %v139
    %v152 = vpack.c.b16 %v142, %v141
    %v153 = vpack.c.b16 %v144, %v143
    %v154 = vpack.c.b16 %v146, %v145
    %v195 = vunpack.c.l.b16 %v83
    %v196 = vunpack.c.h.b16 %v83
    %v197 = vunpack.c.l.b16 %v84
    %v198 = vunpack.c.h.b16 %v84
    %v199 = vunpack.c.l.b16 %v85
    %v200 = vunpack.c.h.b16 %v85
    %v201 = vunpack.c.l.b16 %v86
    %v202 = vunpack.c.h.b16 %v86
    %v203 = vunpack.c.l.b16 %v87
    %v204 = vunpack.c.h.b16 %v87
    %v205 = vunpack.c.l.b16 %v88
    %v206 = vunpack.c.h.b16 %v88
    %v207 = vunpack.c.l.b16 %v89
    %v208 = vunpack.c.h.b16 %v89
    %v209 = vunpack.c.l.b16 %v90
    %v210 = vunpack.c.h.b16 %v90
    %v211 = vunpack.c.l.b16 %v91
    %v212 = vunpack.c.h.b16 %v91
    %v213 = vunpack.c.l.b16 %v92
    %v214 = vunpack.c.h.b16 %v92
    %v215 = vunpack.c.l.b16 %v93
    %v216 = vunpack.c.h.b16 %v93
    %v217 = vunpack.c.l.b16 %v94
    %v218 = vunpack.c.h.b16 %v94
    %v219 = vunpack.c.l.b16 %v95
    %v220 = vunpack.c.h.b16 %v95
    %v221 = vunpack.c.l.b16 %v96
    %v222 = vunpack.c.h.b16 %v96
    %v223 = vunpack.c.l.b16 %v97
    %v224 = vunpack.c.h.b16 %v97
    %v225 = vunpack.c.l.b16 %v98
    %v226 = vunpack.c.h.b16 %v98
    %v227 = vunpack.c.l.b16 %v99
    %v228 = vunpack.c.h.b16 %v99
    %v229 = vunpack.c.l.b16 %v100
    %v230 = vunpack.c.h.b16 %v100
    %v231 = vunpack.c.l.b16 %v101
    %v232 = vunpack.c.h.b16 %v101
    %v233 = vunpack.c.l.b16 %v102
    %v234 = vunpack.c.h.b16 %v102
    %v235 = vunpack.c.l.b16 %v103
    %v236 = vunpack.c.h.b16 %v103
    %v237 = vunpack.c.l.b16 %v104
    %v238 = vunpack.c.h.b16 %v104
    %v239 = vunpack.c.l.b16 %v105
    %v240 = vunpack.c.h.b16 %v105
    %v241 = vunpack.c.l.b16 %v106
    %v242 = vunpack.c.h.b16 %v106
    %v243 = vunpack.c.l.b16 %v107
    %v244 = vunpack.c.h.b16 %v107
    %v245 = vunpack.c.l.b16 %v108
    %v246 = vunpack.c.h.b16 %v108
    %v247 = vunpack.c.l.b16 %v109
    %v248 = vunpack.c.h.b16 %v109
    %v249 = vunpack.c.l.b16 %v110
    %v250 = vunpack.c.h.b16 %v110
    %v251 = vunpack.c.l.b16 %v111
    %v252 = vunpack.c.h.b16 %v111
    %v253 = vunpack.c.l.b16 %v112
    %v254 = vunpack.c.h.b16 %v112
    %v255 = vunpack.c.l.b16 %v113
    %v256 = vunpack.c.h.b16 %v113
    %v257 = vunpack.c.l.b16 %v114
    %v258 = vunpack.c.h.b16 %v114
    %v259 = vpack.c.b16 %v199, %v195
    %v260 = vpack.c.b16 %v200, %v196
    %v261 = vpack.c.b16 %v201, %v197
    %v262 = vpack.c.b16 %v202, %v198
    %v263 = vpack.c.b16 %v207, %v203
    %v264 = vpack.c.b16 %v208, %v204
    %v265 = vpack.c.b16 %v209, %v205
    %v266 = vpack.c.b16 %v210, %v206
    %v267 = vpack.c.b16 %v215, %v211
    %v268 = vpack.c.b16 %v216, %v212
    %v269 = vpack.c.b16 %v217, %v213
    %v270 = vpack.c.b16 %v218, %v214
    %v271 = vpack.c.b16 %v223, %v219
    %v272 = vpack.c.b16 %v224, %v220
    %v273 = vpack.c.b16 %v225, %v221
    %v274 = vpack.c.b16 %v226, %v222
    %v275 = vpack.c.b16 %v231, %v227
    %v276 = vpack.c.b16 %v232, %v228
    %v277 = vpack.c.b16 %v233, %v229
    %v278 = vpack.c.b16 %v234, %v230
    %v279 = vpack.c.b16 %v239, %v235
    %v280 = vpack.c.b16 %v240, %v236
    %v281 = vpack.c.b16 %v241, %v237
    %v282 = vpack.c.b16 %v242, %v238
    %v283 = vpack.c.b16 %v247, %v243
    %v284 = vpack.c.b16 %v248, %v244
    %v285 = vpack.c.b16 %v249, %v245
    %v286 = vpack.c.b16 %v250, %v246
    %v287 = vpack.c.b16 %v255, %v251
    %v288 = vpack.c.b16 %v256, %v252
    %v289 = vpack.c.b16 %v257, %v253
    %v290 = vpack.c.b16 %v258, %v254
    %323 = vmatprep.subr.bf16.mxu0 %v288
    %324 = vmatpush1.bf16.msra.mxu0 %v287
    %325 = vmatprep.subr.bf16.mxu0 %v284
    %326 = vmatpush1.bf16.msra.mxu0 %v283
    %327 = vmatprep.subr.bf16.mxu0 %v280
    %328 = vmatpush1.bf16.msra.mxu0 %v279
    %329 = vmatprep.subr.bf16.mxu0 %v276
    %330 = vmatpush1.bf16.msra.mxu0 %v275
    %331 = vmatprep.subr.bf16.mxu0 %v272
    %332 = vmatpush1.bf16.msra.mxu0 %v271
    %333 = vmatprep.subr.bf16.mxu0 %v268
    %334 = vmatpush1.bf16.msra.mxu0 %v267
    %335 = vmatprep.subr.bf16.mxu0 %v264
    %336 = vmatpush1.bf16.msra.mxu0 %v263
    %337 = vmatprep.subr.bf16.mxu0 %v260
    %338 = vmatpush1.bf16.msra.mxu0 %v259
    %339 = vmatprep.subr.bf16.mxu0 0
    %340 = vmatpush2.bf16.msra.mxu0 0
    %341 = vmatprep.subr.bf16.mxu0 0
    %342 = vmatpush2.bf16.msra.mxu0 0
    %343 = vmatprep.subr.bf16.mxu0 0
    %344 = vmatpush2.bf16.msra.mxu0 0
    %345 = vmatprep.subr.bf16.mxu0 0
    %346 = vmatpush2.bf16.msra.mxu0 0
    %347 = vmatprep.subr.bf16.mxu0 0
    %348 = vmatpush2.bf16.msra.mxu0 0
    %349 = vmatprep.subr.bf16.mxu0 0
    %350 = vmatpush2.bf16.msra.mxu0 0
    %351 = vmatprep.subr.bf16.mxu0 0
    %352 = vmatpush2.bf16.msra.mxu0 0
    %353 = vmatprep.subr.bf16.mxu0 0
    %354 = vmatpush2.bf16.msra.mxu0 0
    %355 = vmatprep.mubr.bf16.mxu0 0
    %356 = vmatmul.mubr.bf16.gmra.mxu0 %v147
    %v357 = vpop.f32.mrf.mxu0
    %v358 = vadd.f32 0.0, %v357
    %v359 = vpop.f32.mrf.mxu0
    %v360 = vadd.f32 0.0, %v359
    %v361 = vpop.f32.mrf.mxu0
    %v362 = vadd.f32 0.0, %v361
    %v363 = vpop.f32.mrf.mxu0
    %v364 = vadd.f32 0.0, %v363
    %365 = vmatprep.mubr.bf16.mxu0 0
    %366 = vmatmul.mubr.bf16.gmra.mxu0 %v148
    %v367 = vpop.f32.mrf.mxu0
    %v368 = vadd.f32 0.0, %v367
    %v369 = vpop.f32.mrf.mxu0
    %v370 = vadd.f32 0.0, %v369
    %v371 = vpop.f32.mrf.mxu0
    %v372 = vadd.f32 0.0, %v371
    %v373 = vpop.f32.mrf.mxu0
    %v374 = vadd.f32 0.0, %v373
    %375 = vmatprep.mubr.bf16.mxu0 0
    %376 = vmatmul.mubr.bf16.gmra.mxu0 %v149
    %v377 = vpop.f32.mrf.mxu0
    %v378 = vadd.f32 0.0, %v377
    %v379 = vpop.f32.mrf.mxu0
    %v380 = vadd.f32 0.0, %v379
    %v381 = vpop.f32.mrf.mxu0
    %v382 = vadd.f32 0.0, %v381
    %v383 = vpop.f32.mrf.mxu0
    %v384 = vadd.f32 0.0, %v383
    %385 = vmatprep.mubr.bf16.mxu0 0
    %386 = vmatmul.mubr.bf16.gmra.mxu0 %v150
    %v387 = vpop.f32.mrf.mxu0
    %v388 = vadd.f32 0.0, %v387
    %v389 = vpop.f32.mrf.mxu0
    %v390 = vadd.f32 0.0, %v389
    %v391 = vpop.f32.mrf.mxu0
    %v392 = vadd.f32 0.0, %v391
    %v393 = vpop.f32.mrf.mxu0
    %v394 = vadd.f32 0.0, %v393
    %395 = vmatprep.mubr.bf16.mxu0 0
    %396 = vmatmul.mubr.bf16.gmra.mxu0 %v151
    %v397 = vpop.f32.mrf.mxu0
    %v398 = vadd.f32 0.0, %v397
    %v399 = vpop.f32.mrf.mxu0
    %v400 = vadd.f32 0.0, %v399
    %v401 = vpop.f32.mrf.mxu0
    %v402 = vadd.f32 0.0, %v401
    %v403 = vpop.f32.mrf.mxu0
    %v404 = vadd.f32 0.0, %v403
    %405 = vmatprep.mubr.bf16.mxu0 0
    %406 = vmatmul.mubr.bf16.gmra.mxu0 %v152
    %v407 = vpop.f32.mrf.mxu0
    %v408 = vadd.f32 0.0, %v407
    %v409 = vpop.f32.mrf.mxu0
    %v410 = vadd.f32 0.0, %v409
    %v411 = vpop.f32.mrf.mxu0
    %v412 = vadd.f32 0.0, %v411
    %v413 = vpop.f32.mrf.mxu0
    %v414 = vadd.f32 0.0, %v413
    %415 = vmatprep.mubr.bf16.mxu0 0
    %416 = vmatmul.mubr.bf16.gmra.mxu0 %v153
    %v417 = vpop.f32.mrf.mxu0
    %v418 = vadd.f32 0.0, %v417
    %v419 = vpop.f32.mrf.mxu0
    %v420 = vadd.f32 0.0, %v419
    %v421 = vpop.f32.mrf.mxu0
    %v422 = vadd.f32 0.0, %v421
    %v423 = vpop.f32.mrf.mxu0
    %v424 = vadd.f32 0.0, %v423
    %425 = vmatprep.mubr.bf16.mxu0 0
    %426 = vmatmul.mubr.bf16.gmra.mxu0 %v154
    %v427 = vpop.f32.mrf.mxu0
    %v428 = vadd.f32 0.0, %v427
    %v429 = vpop.f32.mrf.mxu0
    %v430 = vadd.f32 0.0, %v429
    %v431 = vpop.f32.mrf.mxu0
    %v432 = vadd.f32 0.0, %v431
    %v433 = vpop.f32.mrf.mxu0
    %v434 = vadd.f32 0.0, %v433
    %435 = vdwg.mxu0
    %436 = vmatprep.subr.bf16.mxu0 %v290
    %437 = vmatpush1.bf16.msra.mxu0 %v289
    %438 = vmatprep.subr.bf16.mxu0 %v286
    %439 = vmatpush1.bf16.msra.mxu0 %v285
    %440 = vmatprep.subr.bf16.mxu0 %v282
    %441 = vmatpush1.bf16.msra.mxu0 %v281
    %442 = vmatprep.subr.bf16.mxu0 %v278
    %443 = vmatpush1.bf16.msra.mxu0 %v277
    %444 = vmatprep.subr.bf16.mxu0 %v274
    %445 = vmatpush1.bf16.msra.mxu0 %v273
    %446 = vmatprep.subr.bf16.mxu0 %v270
    %447 = vmatpush1.bf16.msra.mxu0 %v269
    %448 = vmatprep.subr.bf16.mxu0 %v266
    %449 = vmatpush1.bf16.msra.mxu0 %v265
    %450 = vmatprep.subr.bf16.mxu0 %v262
    %451 = vmatpush1.bf16.msra.mxu0 %v261
    %452 = vmatprep.subr.bf16.mxu0 0
    %453 = vmatpush2.bf16.msra.mxu0 0
    %454 = vmatprep.subr.bf16.mxu0 0
    %455 = vmatpush2.bf16.msra.mxu0 0
    %456 = vmatprep.subr.bf16.mxu0 0
    %457 = vmatpush2.bf16.msra.mxu0 0
    %458 = vmatprep.subr.bf16.mxu0 0
    %459 = vmatpush2.bf16.msra.mxu0 0
    %460 = vmatprep.subr.bf16.mxu0 0
    %461 = vmatpush2.bf16.msra.mxu0 0
    %462 = vmatprep.subr.bf16.mxu0 0
    %463 = vmatpush2.bf16.msra.mxu0 0
    %464 = vmatprep.subr.bf16.mxu0 0
    %465 = vmatpush2.bf16.msra.mxu0 0
    %466 = vmatprep.subr.bf16.mxu0 0
    %467 = vmatpush2.bf16.msra.mxu0 0
    %468 = vmatprep.mubr.bf16.mxu0 0
    %469 = vmatmul.mubr.bf16.gmra.mxu0 %v147
    %v470 = vpop.f32.mrf.mxu0
    %v471 = vadd.f32 0.0, %v470
    %v472 = vpop.f32.mrf.mxu0
    %v473 = vadd.f32 0.0, %v472
    %v474 = vpop.f32.mrf.mxu0
    %v475 = vadd.f32 0.0, %v474
    %v476 = vpop.f32.mrf.mxu0
    %v477 = vadd.f32 0.0, %v476
    %478 = vmatprep.mubr.bf16.mxu0 0
    %479 = vmatmul.mubr.bf16.gmra.mxu0 %v148
    %v480 = vpop.f32.mrf.mxu0
    %v481 = vadd.f32 0.0, %v480
    %v482 = vpop.f32.mrf.mxu0
    %v483 = vadd.f32 0.0, %v482
    %v484 = vpop.f32.mrf.mxu0
    %v485 = vadd.f32 0.0, %v484
    %v486 = vpop.f32.mrf.mxu0
    %v487 = vadd.f32 0.0, %v486
    %488 = vmatprep.mubr.bf16.mxu0 0
    %489 = vmatmul.mubr.bf16.gmra.mxu0 %v149
    %v490 = vpop.f32.mrf.mxu0
    %v491 = vadd.f32 0.0, %v490
    %v492 = vpop.f32.mrf.mxu0
    %v493 = vadd.f32 0.0, %v492
    %v494 = vpop.f32.mrf.mxu0
    %v495 = vadd.f32 0.0, %v494
    %v496 = vpop.f32.mrf.mxu0
    %v497 = vadd.f32 0.0, %v496
    %498 = vmatprep.mubr.bf16.mxu0 0
    %499 = vmatmul.mubr.bf16.gmra.mxu0 %v150
    %v500 = vpop.f32.mrf.mxu0
    %v501 = vadd.f32 0.0, %v500
    %v502 = vpop.f32.mrf.mxu0
    %v503 = vadd.f32 0.0, %v502
    %v504 = vpop.f32.mrf.mxu0
    %v505 = vadd.f32 0.0, %v504
    %v506 = vpop.f32.mrf.mxu0
    %v507 = vadd.f32 0.0, %v506
    %508 = vmatprep.mubr.bf16.mxu0 0
    %509 = vmatmul.mubr.bf16.gmra.mxu0 %v151
    %v510 = vpop.f32.mrf.mxu0
    %v511 = vadd.f32 0.0, %v510
    %v512 = vpop.f32.mrf.mxu0
    %v513 = vadd.f32 0.0, %v512
    %v514 = vpop.f32.mrf.mxu0
    %v515 = vadd.f32 0.0, %v514
    %v516 = vpop.f32.mrf.mxu0
    %v517 = vadd.f32 0.0, %v516
    %518 = vmatprep.mubr.bf16.mxu0 0
    %519 = vmatmul.mubr.bf16.gmra.mxu0 %v152
    %v520 = vpop.f32.mrf.mxu0
    %v521 = vadd.f32 0.0, %v520
    %v522 = vpop.f32.mrf.mxu0
    %v523 = vadd.f32 0.0, %v522
    %v524 = vpop.f32.mrf.mxu0
    %v525 = vadd.f32 0.0, %v524
    %v526 = vpop.f32.mrf.mxu0
    %v527 = vadd.f32 0.0, %v526
    %528 = vmatprep.mubr.bf16.mxu0 0
    %529 = vmatmul.mubr.bf16.gmra.mxu0 %v153
    %v530 = vpop.f32.mrf.mxu0
    %v531 = vadd.f32 0.0, %v530
    %v532 = vpop.f32.mrf.mxu0
    %v533 = vadd.f32 0.0, %v532
    %v534 = vpop.f32.mrf.mxu0
    %v535 = vadd.f32 0.0, %v534
    %v536 = vpop.f32.mrf.mxu0
    %v537 = vadd.f32 0.0, %v536
    %538 = vmatprep.mubr.bf16.mxu0 0
    %539 = vmatmul.mubr.bf16.gmra.mxu0 %v154
    %v540 = vpop.f32.mrf.mxu0
    %v541 = vadd.f32 0.0, %v540
    %v542 = vpop.f32.mrf.mxu0
    %v543 = vadd.f32 0.0, %v542
    %v544 = vpop.f32.mrf.mxu0
    %v545 = vadd.f32 0.0, %v544
    %v546 = vpop.f32.mrf.mxu0
    %v547 = vadd.f32 0.0, %v546
    %548 = vdwg.mxu0
    %v565 = vunpack.c.l.b16 %v19
    %v566 = vunpack.c.l.b16 %v20
    %v567 = vunpack.c.l.b16 %v21
    %v568 = vunpack.c.l.b16 %v22
    %v569 = vunpack.c.l.b16 %v23
    %v570 = vunpack.c.l.b16 %v24
    %v571 = vunpack.c.l.b16 %v25
    %v572 = vunpack.c.l.b16 %v26
    %v573 = vunpack.c.l.b16 %v27
    %v574 = vunpack.c.l.b16 %v28
    %v575 = vunpack.c.l.b16 %v29
    %v576 = vunpack.c.l.b16 %v30
    %v577 = vunpack.c.l.b16 %v31
    %v578 = vunpack.c.l.b16 %v32
    %v579 = vunpack.c.l.b16 %v33
    %v580 = vunpack.c.l.b16 %v34
    %v581 = vpack.c.b16 %v566, %v565
    %v582 = vpack.c.b16 %v568, %v567
    %v583 = vpack.c.b16 %v570, %v569
    %v584 = vpack.c.b16 %v572, %v571
    %v585 = vpack.c.b16 %v574, %v573
    %v586 = vpack.c.b16 %v576, %v575
    %v587 = vpack.c.b16 %v578, %v577
    %v588 = vpack.c.b16 %v580, %v579
    %v629 = vunpack.c.l.b16 %v35
    %v630 = vunpack.c.h.b16 %v35
    %v631 = vunpack.c.l.b16 %v36
    %v632 = vunpack.c.h.b16 %v36
    %v633 = vunpack.c.l.b16 %v37
    %v634 = vunpack.c.h.b16 %v37
    %v635 = vunpack.c.l.b16 %v38
    %v636 = vunpack.c.h.b16 %v38
    %v637 = vunpack.c.l.b16 %v39
    %v638 = vunpack.c.h.b16 %v39
    %v639 = vunpack.c.l.b16 %v40
    %v640 = vunpack.c.h.b16 %v40
    %v641 = vunpack.c.l.b16 %v41
    %v642 = vunpack.c.h.b16 %v41
    %v643 = vunpack.c.l.b16 %v42
    %v644 = vunpack.c.h.b16 %v42
    %v645 = vunpack.c.l.b16 %v43
    %v646 = vunpack.c.h.b16 %v43
    %v647 = vunpack.c.l.b16 %v44
    %v648 = vunpack.c.h.b16 %v44
    %v649 = vunpack.c.l.b16 %v45
    %v650 = vunpack.c.h.b16 %v45
    %v651 = vunpack.c.l.b16 %v46
    %v652 = vunpack.c.h.b16 %v46
    %v653 = vunpack.c.l.b16 %v47
    %v654 = vunpack.c.h.b16 %v47
    %v655 = vunpack.c.l.b16 %v48
    %v656 = vunpack.c.h.b16 %v48
    %v657 = vunpack.c.l.b16 %v49
    %v658 = vunpack.c.h.b16 %v49
    %v659 = vunpack.c.l.b16 %v50
    %v660 = vunpack.c.h.b16 %v50
    %v661 = vunpack.c.l.b16 %v51
    %v662 = vunpack.c.h.b16 %v51
    %v663 = vunpack.c.l.b16 %v52
    %v664 = vunpack.c.h.b16 %v52
    %v665 = vunpack.c.l.b16 %v53
    %v666 = vunpack.c.h.b16 %v53
    %v667 = vunpack.c.l.b16 %v54
    %v668 = vunpack.c.h.b16 %v54
    %v669 = vunpack.c.l.b16 %v55
    %v670 = vunpack.c.h.b16 %v55
    %v671 = vunpack.c.l.b16 %v56
    %v672 = vunpack.c.h.b16 %v56
    %v673 = vunpack.c.l.b16 %v57
    %v674 = vunpack.c.h.b16 %v57
    %v675 = vunpack.c.l.b16 %v58
    %v676 = vunpack.c.h.b16 %v58
    %v677 = vunpack.c.l.b16 %v59
    %v678 = vunpack.c.h.b16 %v59
    %v679 = vunpack.c.l.b16 %v60
    %v680 = vunpack.c.h.b16 %v60
    %v681 = vunpack.c.l.b16 %v61
    %v682 = vunpack.c.h.b16 %v61
    %v683 = vunpack.c.l.b16 %v62
    %v684 = vunpack.c.h.b16 %v62
    %v685 = vunpack.c.l.b16 %v63
    %v686 = vunpack.c.h.b16 %v63
    %v687 = vunpack.c.l.b16 %v64
    %v688 = vunpack.c.h.b16 %v64
    %v689 = vunpack.c.l.b16 %v65
    %v690 = vunpack.c.h.b16 %v65
    %v691 = vunpack.c.l.b16 %v66
    %v692 = vunpack.c.h.b16 %v66
    %v693 = vpack.c.b16 %v633, %v629
    %v694 = vpack.c.b16 %v634, %v630
    %v695 = vpack.c.b16 %v635, %v631
    %v696 = vpack.c.b16 %v636, %v632
    %v697 = vpack.c.b16 %v641, %v637
    %v698 = vpack.c.b16 %v642, %v638
    %v699 = vpack.c.b16 %v643, %v639
    %v700 = vpack.c.b16 %v644, %v640
    %v701 = vpack.c.b16 %v649, %v645
    %v702 = vpack.c.b16 %v650, %v646
    %v703 = vpack.c.b16 %v651, %v647
    %v704 = vpack.c.b16 %v652, %v648
    %v705 = vpack.c.b16 %v657, %v653
    %v706 = vpack.c.b16 %v658, %v654
    %v707 = vpack.c.b16 %v659, %v655
    %v708 = vpack.c.b16 %v660, %v656
    %v709 = vpack.c.b16 %v665, %v661
    %v710 = vpack.c.b16 %v666, %v662
    %v711 = vpack.c.b16 %v667, %v663
    %v712 = vpack.c.b16 %v668, %v664
    %v713 = vpack.c.b16 %v673, %v669
    %v714 = vpack.c.b16 %v674, %v670
    %v715 = vpack.c.b16 %v675, %v671
    %v716 = vpack.c.b16 %v676, %v672
    %v717 = vpack.c.b16 %v681, %v677
    %v718 = vpack.c.b16 %v682, %v678
    %v719 = vpack.c.b16 %v683, %v679
    %v720 = vpack.c.b16 %v684, %v680
    %v721 = vpack.c.b16 %v689, %v685
    %v722 = vpack.c.b16 %v690, %v686
    %v723 = vpack.c.b16 %v691, %v687
    %v724 = vpack.c.b16 %v692, %v688
    %757 = vmatprep.subr.bf16.mxu0 %v722
    %758 = vmatpush1.bf16.msra.mxu0 %v721
    %759 = vmatprep.subr.bf16.mxu0 %v718
    %760 = vmatpush1.bf16.msra.mxu0 %v717
    %761 = vmatprep.subr.bf16.mxu0 %v714
    %762 = vmatpush1.bf16.msra.mxu0 %v713
    %763 = vmatprep.subr.bf16.mxu0 %v710
    %764 = vmatpush1.bf16.msra.mxu0 %v709
    %765 = vmatprep.subr.bf16.mxu0 %v706
    %766 = vmatpush1.bf16.msra.mxu0 %v705
    %767 = vmatprep.subr.bf16.mxu0 %v702
    %768 = vmatpush1.bf16.msra.mxu0 %v701
    %769 = vmatprep.subr.bf16.mxu0 %v698
    %770 = vmatpush1.bf16.msra.mxu0 %v697
    %771 = vmatprep.subr.bf16.mxu0 %v694
    %772 = vmatpush1.bf16.msra.mxu0 %v693
    %773 = vmatprep.subr.bf16.mxu0 0
    %774 = vmatpush2.bf16.msra.mxu0 0
    %775 = vmatprep.subr.bf16.mxu0 0
    %776 = vmatpush2.bf16.msra.mxu0 0
    %777 = vmatprep.subr.bf16.mxu0 0
    %778 = vmatpush2.bf16.msra.mxu0 0
    %779 = vmatprep.subr.bf16.mxu0 0
    %780 = vmatpush2.bf16.msra.mxu0 0
    %781 = vmatprep.subr.bf16.mxu0 0
    %782 = vmatpush2.bf16.msra.mxu0 0
    %783 = vmatprep.subr.bf16.mxu0 0
    %784 = vmatpush2.bf16.msra.mxu0 0
    %785 = vmatprep.subr.bf16.mxu0 0
    %786 = vmatpush2.bf16.msra.mxu0 0
    %787 = vmatprep.subr.bf16.mxu0 0
    %788 = vmatpush2.bf16.msra.mxu0 0
    %789 = vmatprep.mubr.bf16.mxu0 0
    %790 = vmatmul.mubr.bf16.gmra.mxu0 %v581
    %v791 = vpop.f32.mrf.mxu0
    %v792 = vadd.f32 %v358, %v791
    %v793 = vpop.f32.mrf.mxu0
    %v794 = vadd.f32 %v360, %v793
    %v795 = vpop.f32.mrf.mxu0
    %v796 = vadd.f32 %v362, %v795
    %v797 = vpop.f32.mrf.mxu0
    %v798 = vadd.f32 %v364, %v797
    %799 = vmatprep.mubr.bf16.mxu0 0
    %800 = vmatmul.mubr.bf16.gmra.mxu0 %v582
    %v801 = vpop.f32.mrf.mxu0
    %v802 = vadd.f32 %v368, %v801
    %v803 = vpop.f32.mrf.mxu0
    %v804 = vadd.f32 %v370, %v803
    %v805 = vpop.f32.mrf.mxu0
    %v806 = vadd.f32 %v372, %v805
    %v807 = vpop.f32.mrf.mxu0
    %v808 = vadd.f32 %v374, %v807
    %809 = vmatprep.mubr.bf16.mxu0 0
    %810 = vmatmul.mubr.bf16.gmra.mxu0 %v583
    %v811 = vpop.f32.mrf.mxu0
    %v812 = vadd.f32 %v378, %v811
    %v813 = vpop.f32.mrf.mxu0
    %v814 = vadd.f32 %v380, %v813
    %v815 = vpop.f32.mrf.mxu0
    %v816 = vadd.f32 %v382, %v815
    %v817 = vpop.f32.mrf.mxu0
    %v818 = vadd.f32 %v384, %v817
    %819 = vmatprep.mubr.bf16.mxu0 0
    %820 = vmatmul.mubr.bf16.gmra.mxu0 %v584
    %v821 = vpop.f32.mrf.mxu0
    %v822 = vadd.f32 %v388, %v821
    %v823 = vpop.f32.mrf.mxu0
    %v824 = vadd.f32 %v390, %v823
    %v825 = vpop.f32.mrf.mxu0
    %v826 = vadd.f32 %v392, %v825
    %v827 = vpop.f32.mrf.mxu0
    %v828 = vadd.f32 %v394, %v827
    %829 = vmatprep.mubr.bf16.mxu0 0
    %830 = vmatmul.mubr.bf16.gmra.mxu0 %v585
    %v831 = vpop.f32.mrf.mxu0
    %v832 = vadd.f32 %v398, %v831
    %v833 = vpop.f32.mrf.mxu0
    %v834 = vadd.f32 %v400, %v833
    %v835 = vpop.f32.mrf.mxu0
    %v836 = vadd.f32 %v402, %v835
    %v837 = vpop.f32.mrf.mxu0
    %v838 = vadd.f32 %v404, %v837
    %839 = vmatprep.mubr.bf16.mxu0 0
    %840 = vmatmul.mubr.bf16.gmra.mxu0 %v586
    %v841 = vpop.f32.mrf.mxu0
    %v842 = vadd.f32 %v408, %v841
    %v843 = vpop.f32.mrf.mxu0
    %v844 = vadd.f32 %v410, %v843
    %v845 = vpop.f32.mrf.mxu0
    %v846 = vadd.f32 %v412, %v845
    %v847 = vpop.f32.mrf.mxu0
    %v848 = vadd.f32 %v414, %v847
    %849 = vmatprep.mubr.bf16.mxu0 0
    %850 = vmatmul.mubr.bf16.gmra.mxu0 %v587
    %v851 = vpop.f32.mrf.mxu0
    %v852 = vadd.f32 %v418, %v851
    %v853 = vpop.f32.mrf.mxu0
    %v854 = vadd.f32 %v420, %v853
    %v855 = vpop.f32.mrf.mxu0
    %v856 = vadd.f32 %v422, %v855
    %v857 = vpop.f32.mrf.mxu0
    %v858 = vadd.f32 %v424, %v857
    %859 = vmatprep.mubr.bf16.mxu0 0
    %860 = vmatmul.mubr.bf16.gmra.mxu0 %v588
    %v861 = vpop.f32.mrf.mxu0
    %v862 = vadd.f32 %v428, %v861
    %v863 = vpop.f32.mrf.mxu0
    %v864 = vadd.f32 %v430, %v863
    %v865 = vpop.f32.mrf.mxu0
    %v866 = vadd.f32 %v432, %v865
    %v867 = vpop.f32.mrf.mxu0
    %v868 = vadd.f32 %v434, %v867
    %869 = vdwg.mxu0
    %870 = vmatprep.subr.bf16.mxu0 %v724
    %871 = vmatpush1.bf16.msra.mxu0 %v723
    %872 = vmatprep.subr.bf16.mxu0 %v720
    %873 = vmatpush1.bf16.msra.mxu0 %v719
    %874 = vmatprep.subr.bf16.mxu0 %v716
    %875 = vmatpush1.bf16.msra.mxu0 %v715
    %876 = vmatprep.subr.bf16.mxu0 %v712
    %877 = vmatpush1.bf16.msra.mxu0 %v711
    %878 = vmatprep.subr.bf16.mxu0 %v708
    %879 = vmatpush1.bf16.msra.mxu0 %v707
    %880 = vmatprep.subr.bf16.mxu0 %v704
    %881 = vmatpush1.bf16.msra.mxu0 %v703
    %882 = vmatprep.subr.bf16.mxu0 %v700
    %883 = vmatpush1.bf16.msra.mxu0 %v699
    %884 = vmatprep.subr.bf16.mxu0 %v696
    %885 = vmatpush1.bf16.msra.mxu0 %v695
    %886 = vmatprep.subr.bf16.mxu0 0
    %887 = vmatpush2.bf16.msra.mxu0 0
    %888 = vmatprep.subr.bf16.mxu0 0
    %889 = vmatpush2.bf16.msra.mxu0 0
    %890 = vmatprep.subr.bf16.mxu0 0
    %891 = vmatpush2.bf16.msra.mxu0 0
    %892 = vmatprep.subr.bf16.mxu0 0
    %893 = vmatpush2.bf16.msra.mxu0 0
    %894 = vmatprep.subr.bf16.mxu0 0
    %895 = vmatpush2.bf16.msra.mxu0 0
    %896 = vmatprep.subr.bf16.mxu0 0
    %897 = vmatpush2.bf16.msra.mxu0 0
    %898 = vmatprep.subr.bf16.mxu0 0
    %899 = vmatpush2.bf16.msra.mxu0 0
    %900 = vmatprep.subr.bf16.mxu0 0
    %901 = vmatpush2.bf16.msra.mxu0 0
    %902 = vmatprep.mubr.bf16.mxu0 0
    %903 = vmatmul.mubr.bf16.gmra.mxu0 %v581
    %v904 = vpop.f32.mrf.mxu0
    %v905 = vadd.f32 %v471, %v904
    %v906 = vpop.f32.mrf.mxu0
    %v907 = vadd.f32 %v473, %v906
    %v908 = vpop.f32.mrf.mxu0
    %v909 = vadd.f32 %v475, %v908
    %v910 = vpop.f32.mrf.mxu0
    %v911 = vadd.f32 %v477, %v910
    %912 = vmatprep.mubr.bf16.mxu0 0
    %913 = vmatmul.mubr.bf16.gmra.mxu0 %v582
    %v914 = vpop.f32.mrf.mxu0
    %v915 = vadd.f32 %v481, %v914
    %v916 = vpop.f32.mrf.mxu0
    %v917 = vadd.f32 %v483, %v916
    %v918 = vpop.f32.mrf.mxu0
    %v919 = vadd.f32 %v485, %v918
    %v920 = vpop.f32.mrf.mxu0
    %v921 = vadd.f32 %v487, %v920
    %922 = vmatprep.mubr.bf16.mxu0 0
    %923 = vmatmul.mubr.bf16.gmra.mxu0 %v583
    %v924 = vpop.f32.mrf.mxu0
    %v925 = vadd.f32 %v491, %v924
    %v926 = vpop.f32.mrf.mxu0
    %v927 = vadd.f32 %v493, %v926
    %v928 = vpop.f32.mrf.mxu0
    %v929 = vadd.f32 %v495, %v928
    %v930 = vpop.f32.mrf.mxu0
    %v931 = vadd.f32 %v497, %v930
    %932 = vmatprep.mubr.bf16.mxu0 0
    %933 = vmatmul.mubr.bf16.gmra.mxu0 %v584
    %v934 = vpop.f32.mrf.mxu0
    %v935 = vadd.f32 %v501, %v934
    %v936 = vpop.f32.mrf.mxu0
    %v937 = vadd.f32 %v503, %v936
    %v938 = vpop.f32.mrf.mxu0
    %v939 = vadd.f32 %v505, %v938
    %v940 = vpop.f32.mrf.mxu0
    %v941 = vadd.f32 %v507, %v940
    %942 = vmatprep.mubr.bf16.mxu0 0
    %943 = vmatmul.mubr.bf16.gmra.mxu0 %v585
    %v944 = vpop.f32.mrf.mxu0
    %v945 = vadd.f32 %v511, %v944
    %v946 = vpop.f32.mrf.mxu0
    %v947 = vadd.f32 %v513, %v946
    %v948 = vpop.f32.mrf.mxu0
    %v949 = vadd.f32 %v515, %v948
    %v950 = vpop.f32.mrf.mxu0
    %v951 = vadd.f32 %v517, %v950
    %952 = vmatprep.mubr.bf16.mxu0 0
    %953 = vmatmul.mubr.bf16.gmra.mxu0 %v586
    %v954 = vpop.f32.mrf.mxu0
    %v955 = vadd.f32 %v521, %v954
    %v956 = vpop.f32.mrf.mxu0
    %v957 = vadd.f32 %v523, %v956
    %v958 = vpop.f32.mrf.mxu0
    %v959 = vadd.f32 %v525, %v958
    %v960 = vpop.f32.mrf.mxu0
    %v961 = vadd.f32 %v527, %v960
    %962 = vmatprep.mubr.bf16.mxu0 0
    %963 = vmatmul.mubr.bf16.gmra.mxu0 %v587
    %v964 = vpop.f32.mrf.mxu0
    %v965 = vadd.f32 %v531, %v964
    %v966 = vpop.f32.mrf.mxu0
    %v967 = vadd.f32 %v533, %v966
    %v968 = vpop.f32.mrf.mxu0
    %v969 = vadd.f32 %v535, %v968
    %v970 = vpop.f32.mrf.mxu0
    %v971 = vadd.f32 %v537, %v970
    %972 = vmatprep.mubr.bf16.mxu0 0
    %973 = vmatmul.mubr.bf16.gmra.mxu0 %v588
    %v974 = vpop.f32.mrf.mxu0
    %v975 = vadd.f32 %v541, %v974
    %v976 = vpop.f32.mrf.mxu0
    %v977 = vadd.f32 %v543, %v976
    %v978 = vpop.f32.mrf.mxu0
    %v979 = vadd.f32 %v545, %v978
    %v980 = vpop.f32.mrf.mxu0
    %v981 = vadd.f32 %v547, %v980
    %982 = vdwg.mxu0
    %v983 = vmax.f32 %v792, 0.0
    %v984 = vmax.f32 %v794, 0.0
    %v985 = vmax.f32 %v905, 0.0
    %v986 = vmax.f32 %v907, 0.0
    %v987 = vmax.f32 %v796, 0.0
    %v988 = vmax.f32 %v798, 0.0
    %v989 = vmax.f32 %v909, 0.0
    %v990 = vmax.f32 %v911, 0.0
    %v991 = vmax.f32 %v802, 0.0
    %v992 = vmax.f32 %v804, 0.0
    %v993 = vmax.f32 %v915, 0.0
    %v994 = vmax.f32 %v917, 0.0
    %v995 = vmax.f32 %v806, 0.0
    %v996 = vmax.f32 %v808, 0.0
    %v997 = vmax.f32 %v919, 0.0
    %v998 = vmax.f32 %v921, 0.0
    %v999 = vmax.f32 %v812, 0.0
    %v1000 = vmax.f32 %v814, 0.0
    %v1001 = vmax.f32 %v925, 0.0
    %v1002 = vmax.f32 %v927, 0.0
    %v1003 = vmax.f32 %v816, 0.0
    %v1004 = vmax.f32 %v818, 0.0
    %v1005 = vmax.f32 %v929, 0.0
    %v1006 = vmax.f32 %v931, 0.0
    %v1007 = vmax.f32 %v822, 0.0
    %v1008 = vmax.f32 %v824, 0.0
    %v1009 = vmax.f32 %v935, 0.0
    %v1010 = vmax.f32 %v937, 0.0
    %v1011 = vmax.f32 %v826, 0.0
    %v1012 = vmax.f32 %v828, 0.0
    %v1013 = vmax.f32 %v939, 0.0
    %v1014 = vmax.f32 %v941, 0.0
    %v1015 = vmax.f32 %v832, 0.0
    %v1016 = vmax.f32 %v834, 0.0
    %v1017 = vmax.f32 %v945, 0.0
    %v1018 = vmax.f32 %v947, 0.0
    %v1019 = vmax.f32 %v836, 0.0
    %v1020 = vmax.f32 %v838, 0.0
    %v1021 = vmax.f32 %v949, 0.0
    %v1022 = vmax.f32 %v951, 0.0
    %v1023 = vmax.f32 %v842, 0.0
    %v1024 = vmax.f32 %v844, 0.0
    %v1025 = vmax.f32 %v955, 0.0
    %v1026 = vmax.f32 %v957, 0.0
    %v1027 = vmax.f32 %v846, 0.0
    %v1028 = vmax.f32 %v848, 0.0
    %v1029 = vmax.f32 %v959, 0.0
    %v1030 = vmax.f32 %v961, 0.0
    %v1031 = vmax.f32 %v852, 0.0
    %v1032 = vmax.f32 %v854, 0.0
    %v1033 = vmax.f32 %v965, 0.0
    %v1034 = vmax.f32 %v967, 0.0
    %v1035 = vmax.f32 %v856, 0.0
    %v1036 = vmax.f32 %v858, 0.0
    %v1037 = vmax.f32 %v969, 0.0
    %v1038 = vmax.f32 %v971, 0.0
    %v1039 = vmax.f32 %v862, 0.0
    %v1040 = vmax.f32 %v864, 0.0
    %v1041 = vmax.f32 %v975, 0.0
    %v1042 = vmax.f32 %v977, 0.0
    %v1043 = vmax.f32 %v866, 0.0
    %v1044 = vmax.f32 %v868, 0.0
    %v1045 = vmax.f32 %v979, 0.0
    %v1046 = vmax.f32 %v981, 0.0
    %1047 = vst [vmem:[#allocation2] sm:$0xff] %v983
    %1048 = vst [vmem:[#allocation2 + $0x8] sm:$0xff] %v984
    %1049 = vst [vmem:[#allocation2 + $0x10] sm:$0xff] %v985
    %1050 = vst [vmem:[#allocation2 + $0x18] sm:$0xff] %v986
    %1051 = vst [vmem:[#allocation2 + $0x20] sm:$0xff] %v987
    %1052 = vst [vmem:[#allocation2 + $0x28] sm:$0xff] %v988
    %1053 = vst [vmem:[#allocation2 + $0x30] sm:$0xff] %v989
    %1054 = vst [vmem:[#allocation2 + $0x38] sm:$0xff] %v990
    %1055 = vst [vmem:[#allocation2 + $0x40] sm:$0xff] %v991
    %1056 = vst [vmem:[#allocation2 + $0x48] sm:$0xff] %v992
    %1057 = vst [vmem:[#allocation2 + $0x50] sm:$0xff] %v993
    %1058 = vst [vmem:[#allocation2 + $0x58] sm:$0xff] %v994
    %1059 = vst [vmem:[#allocation2 + $0x60] sm:$0xff] %v995
    %1060 = vst [vmem:[#allocation2 + $0x68] sm:$0xff] %v996
    %1061 = vst [vmem:[#allocation2 + $0x70] sm:$0xff] %v997
    %1062 = vst [vmem:[#allocation2 + $0x78] sm:$0xff] %v998
    %1063 = vst [vmem:[#allocation2 + $0x80] sm:$0xff] %v999
    %1064 = vst [vmem:[#allocation2 + $0x88] sm:$0xff] %v1000
    %1065 = vst [vmem:[#allocation2 + $0x90] sm:$0xff] %v1001
    %1066 = vst [vmem:[#allocation2 + $0x98] sm:$0xff] %v1002
    %1067 = vst [vmem:[#allocation2 + $0xa0] sm:$0xff] %v1003
    %1068 = vst [vmem:[#allocation2 + $0xa8] sm:$0xff] %v1004
    %1069 = vst [vmem:[#allocation2 + $0xb0] sm:$0xff] %v1005
    %1070 = vst [vmem:[#allocation2 + $0xb8] sm:$0xff] %v1006
    %1071 = vst [vmem:[#allocation2 + $0xc0] sm:$0xff] %v1007
    %1072 = vst [vmem:[#allocation2 + $0xc8] sm:$0xff] %v1008
    %1073 = vst [vmem:[#allocation2 + $0xd0] sm:$0xff] %v1009
    %1074 = vst [vmem:[#allocation2 + $0xd8] sm:$0xff] %v1010
    %1075 = vst [vmem:[#allocation2 + $0xe0] sm:$0xff] %v1011
    %1076 = vst [vmem:[#allocation2 + $0xe8] sm:$0xff] %v1012
    %1077 = vst [vmem:[#allocation2 + $0xf0] sm:$0xff] %v1013
    %1078 = vst [vmem:[#allocation2 + $0xf8] sm:$0xff] %v1014
    %1079 = vst [vmem:[#allocation2 + $0x100] sm:$0xff] %v1015
    %1080 = vst [vmem:[#allocation2 + $0x108] sm:$0xff] %v1016
    %1081 = vst [vmem:[#allocation2 + $0x110] sm:$0xff] %v1017
    %1082 = vst [vmem:[#allocation2 + $0x118] sm:$0xff] %v1018
    %1083 = vst [vmem:[#allocation2 + $0x120] sm:$0xff] %v1019
    %1084 = vst [vmem:[#allocation2 + $0x128] sm:$0xff] %v1020
    %1085 = vst [vmem:[#allocation2 + $0x130] sm:$0xff] %v1021
    %1086 = vst [vmem:[#allocation2 + $0x138] sm:$0xff] %v1022
    %1087 = vst [vmem:[#allocation2 + $0x140] sm:$0xff] %v1023
    %1088 = vst [vmem:[#allocation2 + $0x148] sm:$0xff] %v1024
    %1089 = vst [vmem:[#allocation2 + $0x150] sm:$0xff] %v1025
    %1090 = vst [vmem:[#allocation2 + $0x158] sm:$0xff] %v1026
    %1091 = vst [vmem:[#allocation2 + $0x160] sm:$0xff] %v1027
    %1092 = vst [vmem:[#allocation2 + $0x168] sm:$0xff] %v1028
    %1093 = vst [vmem:[#allocation2 + $0x170] sm:$0xff] %v1029
    %1094 = vst [vmem:[#allocation2 + $0x178] sm:$0xff] %v1030
    %1095 = vst [vmem:[#allocation2 + $0x180] sm:$0xff] %v1031
    %1096 = vst [vmem:[#allocation2 + $0x188] sm:$0xff] %v1032
    %1097 = vst [vmem:[#allocation2 + $0x190] sm:$0xff] %v1033
    %1098 = vst [vmem:[#allocation2 + $0x198] sm:$0xff] %v1034
    %1099 = vst [vmem:[#allocation2 + $0x1a0] sm:$0xff] %v1035
    %1100 = vst [vmem:[#allocation2 + $0x1a8] sm:$0xff] %v1036
    %1101 = vst [vmem:[#allocation2 + $0x1b0] sm:$0xff] %v1037
    %1102 = vst [vmem:[#allocation2 + $0x1b8] sm:$0xff] %v1038
    %1103 = vst [vmem:[#allocation2 + $0x1c0] sm:$0xff] %v1039
    %1104 = vst [vmem:[#allocation2 + $0x1c8] sm:$0xff] %v1040
    %1105 = vst [vmem:[#allocation2 + $0x1d0] sm:$0xff] %v1041
    %1106 = vst [vmem:[#allocation2 + $0x1d8] sm:$0xff] %v1042
    %1107 = vst [vmem:[#allocation2 + $0x1e0] sm:$0xff] %v1043
    %1108 = vst [vmem:[#allocation2 + $0x1e8] sm:$0xff] %v1044
    %1109 = vst [vmem:[#allocation2 + $0x1f0] sm:$0xff] %v1045
    %1110 = vst [vmem:[#allocation2 + $0x1f8] sm:$0xff] %v1046
    // Predicated region
    $region18: #{bottleneck_forward.5} parent=1 // pred_check
      _
    $region19: #{bottleneck_forward.5} parent=1 // pred_check_branch
      %1112 = sbr.rel (0) target = $region21
    $region20: #{bottleneck_forward.5} parent=1 // pred_region
      %s1114 = ssub.s32 8192, 8192
      %1115 = vsyncadd [#allocation3], %s1114
      %s1116 = sshll.u32 [#allocation2], 4
      %s1117 = int_to_ptr.vmem [resolvable:$true] %s1116
      %1122 = dma.vmem_to_hbm [thread:$0]  %s1117, 8192, %s4, [#allocation3], 512, 512, 32
    $region21: #{bottleneck_forward.5} parent=1 // pred_fallthru
      _
    // Predicated region
    $region22: #{bottleneck_forward.5} parent=1 // pred_check
      _
    $region23: #{bottleneck_forward.5} parent=1 // pred_check_branch
      %1124 = sbr.rel (0) target = $region25
    $region24: #{bottleneck_forward.5} parent=1 // pred_region
      %1125 = dma.done [#allocation3], 8192
    $region25: #{bottleneck_forward.5} parent=1 // pred_fallthru
      _
    %1126 = vsyncpa [#allocation3], 1

// kernel: bottleneck_forward.4
$region0: #{bottleneck_forward.4}
  #allocation0 [shape = 'u32[]', space=smem, size = 0x4, offset = 0x4, fixed_abs, tag = 'smem constant byte address 0x4 - core index']
  #allocation1 [shape = 'u32[144,128]{1,0:T(1,128)}', space=vmem, size = 0x12000, scoped, tag = 'internal scratch']
  %s0 = inlined_call_operand.vmem [shape: bf16[2,4,9,9,128], index: 0, kind: input, shape index: {}]
  %s1 = inlined_call_operand.vmem [shape: bf16[2,9,128,128], index: 1, kind: input, shape index: {}]
  %s2 = inlined_call_operand.vmem [shape: bf16[2,64,128], index: 2, kind: output, shape index: {}]
  %s3 = sld [smem:[#allocation0]]
  $region41: #{bottleneck_forward.4} parent=0
    _
  %s5 = ssub.s32 1, %s3
  %s6 = scalar_select 0, %s5, %s3
  loop: start=0, step=1, limit=4
  $region2: #{bottleneck_forward.4} parent=0 // loop_pre_header
    _
  $region3: #{bottleneck_forward.4} parent=0 // loop_header
    %s8 = sphi 0, %s12
    %p9 = scmp.ge.s32.totalorder %s8, 4
    %s18 = sphi 0, %s20
    %s21 = sphi 0, %s18
    %s22 = sphi 0, %s21
    %s38 = sphi 0, %s22
    %s44 = sphi 0, %s46
    %s47 = sphi 0, %s44
    %s48 = sphi 0, %s47
    %s64 = sphi 0, %s48
    %s70 = sphi 0, %s72
    %s73 = sphi 0, %s70
    %s74 = sphi 0, %s73
    %s90 = sphi 0, %s74
  $region4: #{bottleneck_forward.4} parent=0 // loop_header_branch
    %11 = sbr.rel (%p9) target = $region8
  $region5: #{bottleneck_forward.4} parent=0 // loop_body
    %s13 = ssub.s32 %s8, 1
    %s14 = ssub.s32 %s8, 2
    %s15 = sadd.s32 %s8, 1
    %s16 = ssub.s32 %s8, %s15
    %p17 = scmp.eq.s32.totalorder %s16, 0
    %s19 = sadd.s32 %s18, 1
    %s20 = scalar_select %p17, %s18, %s19
    %p23 = pneg %p17
    %p24 = scmp.eq.s32.totalorder %s8, 1
    %p25 = por %p23, %p24
    %p26 = scmp.ne.s32.totalorder %s18, %s21
    %p27 = scmp.eq.s32.totalorder %s8, 0
    %p28 = por %p26, %p27
    %p29 = scmp.ne.s32.totalorder %s18, %s21
    %p30 = scmp.eq.s32.totalorder %s13, 1
    %p31 = por %p29, %p30
    %p32 = scmp.ne.s32.totalorder %s21, %s22
    %p33 = scmp.eq.s32.totalorder %s13, 0
    %p34 = por %p32, %p33
    %p35 = scmp.ne.s32.totalorder %s21, %s22
    %p36 = scmp.eq.s32.totalorder %s14, 1
    %p37 = por %p35, %p36
    %p39 = scmp.ne.s32.totalorder %s22, %s38
    %p40 = scmp.eq.s32.totalorder %s14, 0
    %p41 = por %p39, %p40
    %s42 = ssub.s32 %s8, %s15
    %p43 = scmp.eq.s32.totalorder %s42, 0
    %s45 = sadd.s32 %s44, 1
    %s46 = scalar_select %p43, %s44, %s45
    %p49 = pneg %p43
    %p50 = scmp.eq.s32.totalorder %s8, 1
    %p51 = por %p49, %p50
    %p52 = scmp.ne.s32.totalorder %s44, %s47
    %p53 = scmp.eq.s32.totalorder %s8, 0
    %p54 = por %p52, %p53
    %p55 = scmp.ne.s32.totalorder %s44, %s47
    %p56 = scmp.eq.s32.totalorder %s13, 1
    %p57 = por %p55, %p56
    %p58 = scmp.ne.s32.totalorder %s47, %s48
    %p59 = scmp.eq.s32.totalorder %s13, 0
    %p60 = por %p58, %p59
    %p61 = scmp.ne.s32.totalorder %s47, %s48
    %p62 = scmp.eq.s32.totalorder %s14, 1
    %p63 = por %p61, %p62
    %p65 = scmp.ne.s32.totalorder %s48, %s64
    %p66 = scmp.eq.s32.totalorder %s14, 0
    %p67 = por %p65, %p66
    %s68 = ssub.s32 %s8, %s15
    %p69 = scmp.eq.s32.totalorder %s68, 0
    %s71 = sadd.s32 %s70, 1
    %s72 = scalar_select %p69, %s70, %s71
    %p75 = pneg %p69
    %p76 = scmp.eq.s32.totalorder %s8, 1
    %p77 = por %p75, %p76
    %p78 = scmp.ne.s32.totalorder %s70, %s73
    %p79 = scmp.eq.s32.totalorder %s8, 0
    %p80 = por %p78, %p79
    %p81 = scmp.ne.s32.totalorder %s70, %s73
    %p82 = scmp.eq.s32.totalorder %s13, 1
    %p83 = por %p81, %p82
    %p84 = scmp.ne.s32.totalorder %s73, %s74
    %p85 = scmp.eq.s32.totalorder %s13, 0
    %p86 = por %p84, %p85
    %p87 = scmp.ne.s32.totalorder %s73, %s74
    %p88 = scmp.eq.s32.totalorder %s14, 1
    %p89 = por %p87, %p88
    %p91 = scmp.ne.s32.totalorder %s74, %s90
    %p92 = scmp.eq.s32.totalorder %s14, 0
    %p93 = por %p91, %p92
    %p94 = scmp.le.s32.totalorder 1, %s8
    %p95 = scmp.lt.s32.totalorder %s8, 3
    %p96 = pnand %p94, %p95
    %p97 = pneg %p96
    // Predicated region
    $region9: #{bottleneck_forward.4} parent=5 // pred_check
      _
    $region10: #{bottleneck_forward.4} parent=5 // pred_check_branch
      %99 = sbr.rel (%p96) target = $region12
    $region11: #{bottleneck_forward.4} parent=5 // pred_region
      %s100 = ssub.s32 %s8, 1
    $region12: #{bottleneck_forward.4} parent=5 // pred_fallthru
      _
    %p101 = scmp.lt.s32.totalorder %s8, 2
    // Predicated region
    $region13: #{bottleneck_forward.4} parent=5 // pred_check
      %p102 = pneg %p101
    $region14: #{bottleneck_forward.4} parent=5 // pred_check_branch
      %104 = sbr.rel (%p102) target = $region16
    $region15: #{bottleneck_forward.4} parent=5 // pred_region
      // Predicated region
      $region17: #{bottleneck_forward.4} parent=15 // pred_check
        %p105 = pneg %p28
      $region18: #{bottleneck_forward.4} parent=15 // pred_check_branch
        %107 = sbr.rel (%p105) target = $region20
      $region19: #{bottleneck_forward.4} parent=15 // pred_region
        %p108 = scmp.lt.s32.totalorder %s8, 1
        %s109 = scalar_select %p108, %s8, 1
        %s110 = smul.addr %s109, 72
        %s111 = smul.addr %s110, 4
        %s112 = scalar_lea.vmem %s0, %s111
      $region20: #{bottleneck_forward.4} parent=15 // pred_fallthru
        _
      // Predicated region
      $region21: #{bottleneck_forward.4} parent=15 // pred_check
        %p113 = pneg %p54
      $region22: #{bottleneck_forward.4} parent=15 // pred_check_branch
        %115 = sbr.rel (%p113) target = $region24
      $region23: #{bottleneck_forward.4} parent=15 // pred_region
        %p116 = scmp.lt.s32.totalorder %s8, 1
        %s117 = scalar_select %p116, %s8, 1
        %s118 = smul.addr %s117, 144
        %s119 = smul.addr %s118, 4
        %s120 = scalar_lea.vmem %s1, %s119
      $region24: #{bottleneck_forward.4} parent=15 // pred_fallthru
        _
    $region16: #{bottleneck_forward.4} parent=5 // pred_fallthru
      _
    %p121 = scmp.le.s32.totalorder 1, %s8
    %p122 = scmp.lt.s32.totalorder %s8, 3
    %p123 = pnand %p121, %p122
    %p124 = pneg %p123
    // Predicated region
    $region25: #{bottleneck_forward.4} parent=5 // pred_check
      _
    $region26: #{bottleneck_forward.4} parent=5 // pred_check_branch
      %126 = sbr.rel (%p123) target = $region28
    $region27: #{bottleneck_forward.4} parent=5 // pred_region
      %s127 = ssub.s32 %s8, 1
      %p128 = scmp.lt.s32.totalorder %s13, 1
      %s129 = scalar_select %p128, %s13, 1
      %s130 = smul.addr %s129, 72
      %s131 = smul.addr %s130, 4
      %s132 = scalar_lea.vmem %s0, %s131
      %p133 = pneg %p34
      %p134 = pneg %p31
      %p135 = scmp.lt.s32.totalorder %s13, 1
      %s136 = scalar_select %p135, %s13, 1
      %s137 = smul.addr %s136, 144
      %s138 = smul.addr %s137, 4
      %s139 = scalar_lea.vmem %s1, %s138
      %p140 = pneg %p60
      %p141 = pneg %p57
      %p142 = pneg %p86
      %p143 = pneg %p83
      %p144 = scmp.lt.s32.totalorder %s13, 1
      %s145 = scalar_select %p144, %s13, 1
      %s146 = smul.addr %s145, 8
      %s147 = smul.addr %s146, 4
      %s148 = scalar_lea.vmem %s2, %s147
      %p149 = scmp.lt.s32.totalorder %s13, 1
      %s150 = scalar_select %p149, %s13, 1
      %s151 = smul.addr %s150, 72
      %s152 = smul.addr %s151, 4
      %s153 = scalar_lea.vmem %s0, %s152
      %p154 = scmp.lt.s32.totalorder %s13, 1
      %s155 = scalar_select %p154, %s13, 1
      %s156 = smul.addr %s155, 144
      %s157 = smul.addr %s156, 4
      %s158 = scalar_lea.vmem %s1, %s157
      %p159 = scmp.lt.s32.totalorder %s13, 1
      %s160 = scalar_select %p159, %s13, 1
      %s161 = smul.addr %s160, 8
      %s162 = smul.addr %s161, 4
      %s163 = scalar_lea.vmem %s2, %s162
      %v165 = vld [vmem:[%s153] sm:$0xf]
      %v166 = vld [vmem:[%s153 + $0x8] sm:$0xf]
      %v167 = vld [vmem:[%s153 + $0x10] sm:$0xf]
      %v168 = vld [vmem:[%s153 + $0x18] sm:$0xf]
      %v169 = vld [vmem:[%s153 + $0x20] sm:$0xf]
      %v170 = vld [vmem:[%s153 + $0x28] sm:$0xf]
      %v171 = vld [vmem:[%s153 + $0x30] sm:$0xf]
      %v172 = vld [vmem:[%s153 + $0x38] sm:$0xf]
      %v173 = vld [vmem:[%s158] sm:$0xf]
      %v174 = vld [vmem:[%s158 + $0x4] sm:$0xf]
      %v175 = vld [vmem:[%s158 + $0x8] sm:$0xf]
      %v176 = vld [vmem:[%s158 + $0xc] sm:$0xf]
      %v177 = vld [vmem:[%s158 + $0x10] sm:$0xf]
      %v178 = vld [vmem:[%s158 + $0x14] sm:$0xf]
      %v179 = vld [vmem:[%s158 + $0x18] sm:$0xf]
      %v180 = vld [vmem:[%s158 + $0x1c] sm:$0xf]
      %v181 = vld [vmem:[%s158 + $0x20] sm:$0xf]
      %v182 = vld [vmem:[%s158 + $0x24] sm:$0xf]
      %v183 = vld [vmem:[%s158 + $0x28] sm:$0xf]
      %v184 = vld [vmem:[%s158 + $0x2c] sm:$0xf]
      %v185 = vld [vmem:[%s158 + $0x30] sm:$0xf]
      %v186 = vld [vmem:[%s158 + $0x34] sm:$0xf]
      %v187 = vld [vmem:[%s158 + $0x38] sm:$0xf]
      %v188 = vld [vmem:[%s158 + $0x3c] sm:$0xf]
      %s189 = scalar_lea.vmem %s153, 72
      %v190 = vld [vmem:[%s189] sm:$0xf]
      %v191 = vld [vmem:[%s189 + $0x8] sm:$0xf]
      %v192 = vld [vmem:[%s189 + $0x10] sm:$0xf]
      %v193 = vld [vmem:[%s189 + $0x18] sm:$0xf]
      %v194 = vld [vmem:[%s189 + $0x20] sm:$0xf]
      %v195 = vld [vmem:[%s189 + $0x28] sm:$0xf]
      %v196 = vld [vmem:[%s189 + $0x30] sm:$0xf]
      %v197 = vld [vmem:[%s189 + $0x38] sm:$0xf]
      %s198 = scalar_lea.vmem %s158, 64
      %v199 = vld [vmem:[%s198] sm:$0xf]
      %v200 = vld [vmem:[%s198 + $0x4] sm:$0xf]
      %v201 = vld [vmem:[%s198 + $0x8] sm:$0xf]
      %v202 = vld [vmem:[%s198 + $0xc] sm:$0xf]
      %v203 = vld [vmem:[%s198 + $0x10] sm:$0xf]
      %v204 = vld [vmem:[%s198 + $0x14] sm:$0xf]
      %v205 = vld [vmem:[%s198 + $0x18] sm:$0xf]
      %v206 = vld [vmem:[%s198 + $0x1c] sm:$0xf]
      %v207 = vld [vmem:[%s198 + $0x20] sm:$0xf]
      %v208 = vld [vmem:[%s198 + $0x24] sm:$0xf]
      %v209 = vld [vmem:[%s198 + $0x28] sm:$0xf]
      %v210 = vld [vmem:[%s198 + $0x2c] sm:$0xf]
      %v211 = vld [vmem:[%s198 + $0x30] sm:$0xf]
      %v212 = vld [vmem:[%s198 + $0x34] sm:$0xf]
      %v213 = vld [vmem:[%s198 + $0x38] sm:$0xf]
      %v214 = vld [vmem:[%s198 + $0x3c] sm:$0xf]
      %v223 = vunpack.c.l.b16 %v190
      %v224 = vunpack.c.l.b16 %v191
      %v225 = vunpack.c.l.b16 %v192
      %v226 = vunpack.c.l.b16 %v193
      %v227 = vunpack.c.l.b16 %v194
      %v228 = vunpack.c.l.b16 %v195
      %v229 = vunpack.c.l.b16 %v196
      %v230 = vunpack.c.l.b16 %v197
      %v231 = vpack.c.b16 %v224, %v223
      %v232 = vpack.c.b16 %v226, %v225
      %v233 = vpack.c.b16 %v228, %v227
      %v234 = vpack.c.b16 %v230, %v229
      %v255 = vunpack.c.l.b16 %v199
      %v256 = vunpack.c.l.b16 %v200
      %v257 = vunpack.c.l.b16 %v201
      %v258 = vunpack.c.l.b16 %v202
      %v259 = vunpack.c.l.b16 %v203
      %v260 = vunpack.c.l.b16 %v204
      %v261 = vunpack.c.l.b16 %v205
      %v262 = vunpack.c.l.b16 %v206
      %v263 = vunpack.c.l.b16 %v207
      %v264 = vunpack.c.l.b16 %v208
      %v265 = vunpack.c.l.b16 %v209
      %v266 = vunpack.c.l.b16 %v210
      %v267 = vunpack.c.l.b16 %v211
      %v268 = vunpack.c.l.b16 %v212
      %v269 = vunpack.c.l.b16 %v213
      %v270 = vunpack.c.l.b16 %v214
      %v271 = vpack.c.b16 %v256, %v255
      %v272 = vpack.c.b16 %v258, %v257
      %v273 = vpack.c.b16 %v260, %v259
      %v274 = vpack.c.b16 %v262, %v261
      %v275 = vpack.c.b16 %v264, %v263
      %v276 = vpack.c.b16 %v266, %v265
      %v277 = vpack.c.b16 %v268, %v267
      %v278 = vpack.c.b16 %v270, %v269
      %287 = vmatprep.subr.bf16.mxu0 0
      %288 = vmatpush1.bf16.msra.mxu0 %v278
      %289 = vmatprep.subr.bf16.mxu0 0
      %290 = vmatpush1.bf16.msra.mxu0 %v277
      %291 = vmatprep.subr.bf16.mxu0 0
      %292 = vmatpush1.bf16.msra.mxu0 %v276
      %293 = vmatprep.subr.bf16.mxu0 0
      %294 = vmatpush1.bf16.msra.mxu0 %v275
      %295 = vmatprep.subr.bf16.mxu0 0
      %296 = vmatpush1.bf16.msra.mxu0 %v274
      %297 = vmatprep.subr.bf16.mxu0 0
      %298 = vmatpush1.bf16.msra.mxu0 %v273
      %299 = vmatprep.subr.bf16.mxu0 0
      %300 = vmatpush1.bf16.msra.mxu0 %v272
      %301 = vmatprep.subr.bf16.mxu0 0
      %302 = vmatpush1.bf16.msra.mxu0 %v271
      %303 = vmatprep.subr.bf16.mxu0 0
      %304 = vmatpush2.bf16.msra.mxu0 0
      %305 = vmatprep.subr.bf16.mxu0 0
      %306 = vmatpush2.bf16.msra.mxu0 0
      %307 = vmatprep.subr.bf16.mxu0 0
      %308 = vmatpush2.bf16.msra.mxu0 0
      %309 = vmatprep.subr.bf16.mxu0 0
      %310 = vmatpush2.bf16.msra.mxu0 0
      %311 = vmatprep.subr.bf16.mxu0 0
      %312 = vmatpush2.bf16.msra.mxu0 0
      %313 = vmatprep.subr.bf16.mxu0 0
      %314 = vmatpush2.bf16.msra.mxu0 0
      %315 = vmatprep.subr.bf16.mxu0 0
      %316 = vmatpush2.bf16.msra.mxu0 0
      %317 = vmatprep.subr.bf16.mxu0 0
      %318 = vmatpush2.bf16.msra.mxu0 0
      %319 = vmatprep.mubr.bf16.mxu0 0
      %320 = vmatmul.mubr.bf16.gmra.mxu0 %v231
      %v321 = vpop.f32.mrf.mxu0
      %v322 = vadd.f32 0.0, %v321
      %v323 = vpop.f32.mrf.mxu0
      %v324 = vpop.f32.mrf.mxu0
      %v325 = vadd.f32 0.0, %v324
      %v326 = vpop.f32.mrf.mxu0
      %327 = vmatprep.mubr.bf16.mxu0 0
      %328 = vmatmul.mubr.bf16.gmra.mxu0 %v232
      %v329 = vpop.f32.mrf.mxu0
      %v330 = vadd.f32 0.0, %v329
      %v331 = vpop.f32.mrf.mxu0
      %v332 = vpop.f32.mrf.mxu0
      %v333 = vadd.f32 0.0, %v332
      %v334 = vpop.f32.mrf.mxu0
      %335 = vmatprep.mubr.bf16.mxu0 0
      %336 = vmatmul.mubr.bf16.gmra.mxu0 %v233
      %v337 = vpop.f32.mrf.mxu0
      %v338 = vadd.f32 0.0, %v337
      %v339 = vpop.f32.mrf.mxu0
      %v340 = vpop.f32.mrf.mxu0
      %v341 = vadd.f32 0.0, %v340
      %v342 = vpop.f32.mrf.mxu0
      %343 = vmatprep.mubr.bf16.mxu0 0
      %344 = vmatmul.mubr.bf16.gmra.mxu0 %v234
      %v345 = vpop.f32.mrf.mxu0
      %v346 = vadd.f32 0.0, %v345
      %v347 = vpop.f32.mrf.mxu0
      %v348 = vpop.f32.mrf.mxu0
      %v349 = vadd.f32 0.0, %v348
      %v350 = vpop.f32.mrf.mxu0
      %351 = vdwg.mxu0
      %v360 = vunpack.c.l.b16 %v165
      %v361 = vunpack.c.l.b16 %v166
      %v362 = vunpack.c.l.b16 %v167
      %v363 = vunpack.c.l.b16 %v168
      %v364 = vunpack.c.l.b16 %v169
      %v365 = vunpack.c.l.b16 %v170
      %v366 = vunpack.c.l.b16 %v171
      %v367 = vunpack.c.l.b16 %v172
      %v368 = vpack.c.b16 %v361, %v360
      %v369 = vpack.c.b16 %v363, %v362
      %v370 = vpack.c.b16 %v365, %v364
      %v371 = vpack.c.b16 %v367, %v366
      %v392 = vunpack.c.l.b16 %v173
      %v393 = vunpack.c.l.b16 %v174
      %v394 = vunpack.c.l.b16 %v175
      %v395 = vunpack.c.l.b16 %v176
      %v396 = vunpack.c.l.b16 %v177
      %v397 = vunpack.c.l.b16 %v178
      %v398 = vunpack.c.l.b16 %v179
      %v399 = vunpack.c.l.b16 %v180
      %v400 = vunpack.c.l.b16 %v181
      %v401 = vunpack.c.l.b16 %v182
      %v402 = vunpack.c.l.b16 %v183
      %v403 = vunpack.c.l.b16 %v184
      %v404 = vunpack.c.l.b16 %v185
      %v405 = vunpack.c.l.b16 %v186
      %v406 = vunpack.c.l.b16 %v187
      %v407 = vunpack.c.l.b16 %v188
      %v408 = vpack.c.b16 %v393, %v392
      %v409 = vpack.c.b16 %v395, %v394
      %v410 = vpack.c.b16 %v397, %v396
      %v411 = vpack.c.b16 %v399, %v398
      %v412 = vpack.c.b16 %v401, %v400
      %v413 = vpack.c.b16 %v403, %v402
      %v414 = vpack.c.b16 %v405, %v404
      %v415 = vpack.c.b16 %v407, %v406
      %424 = vmatprep.subr.bf16.mxu0 0
      %425 = vmatpush1.bf16.msra.mxu0 %v415
      %426 = vmatprep.subr.bf16.mxu0 0
      %427 = vmatpush1.bf16.msra.mxu0 %v414
      %428 = vmatprep.subr.bf16.mxu0 0
      %429 = vmatpush1.bf16.msra.mxu0 %v413
      %430 = vmatprep.subr.bf16.mxu0 0
      %431 = vmatpush1.bf16.msra.mxu0 %v412
      %432 = vmatprep.subr.bf16.mxu0 0
      %433 = vmatpush1.bf16.msra.mxu0 %v411
      %434 = vmatprep.subr.bf16.mxu0 0
      %435 = vmatpush1.bf16.msra.mxu0 %v410
      %436 = vmatprep.subr.bf16.mxu0 0
      %437 = vmatpush1.bf16.msra.mxu0 %v409
      %438 = vmatprep.subr.bf16.mxu0 0
      %439 = vmatpush1.bf16.msra.mxu0 %v408
      %440 = vmatprep.subr.bf16.mxu0 0
      %441 = vmatpush2.bf16.msra.mxu0 0
      %442 = vmatprep.subr.bf16.mxu0 0
      %443 = vmatpush2.bf16.msra.mxu0 0
      %444 = vmatprep.subr.bf16.mxu0 0
      %445 = vmatpush2.bf16.msra.mxu0 0
      %446 = vmatprep.subr.bf16.mxu0 0
      %447 = vmatpush2.bf16.msra.mxu0 0
      %448 = vmatprep.subr.bf16.mxu0 0
      %449 = vmatpush2.bf16.msra.mxu0 0
      %450 = vmatprep.subr.bf16.mxu0 0
      %451 = vmatpush2.bf16.msra.mxu0 0
      %452 = vmatprep.subr.bf16.mxu0 0
      %453 = vmatpush2.bf16.msra.mxu0 0
      %454 = vmatprep.subr.bf16.mxu0 0
      %455 = vmatpush2.bf16.msra.mxu0 0
      %456 = vmatprep.mubr.bf16.mxu0 0
      %457 = vmatmul.mubr.bf16.gmra.mxu0 %v368
      %v458 = vpop.f32.mrf.mxu0
      %v459 = vadd.f32 %v322, %v458
      %v460 = vpop.f32.mrf.mxu0
      %v461 = vpop.f32.mrf.mxu0
      %v462 = vadd.f32 %v325, %v461
      %v463 = vpop.f32.mrf.mxu0
      %464 = vmatprep.mubr.bf16.mxu0 0
      %465 = vmatmul.mubr.bf16.gmra.mxu0 %v369
      %v466 = vpop.f32.mrf.mxu0
      %v467 = vadd.f32 %v330, %v466
      %v468 = vpop.f32.mrf.mxu0
      %v469 = vpop.f32.mrf.mxu0
      %v470 = vadd.f32 %v333, %v469
      %v471 = vpop.f32.mrf.mxu0
      %472 = vmatprep.mubr.bf16.mxu0 0
      %473 = vmatmul.mubr.bf16.gmra.mxu0 %v370
      %v474 = vpop.f32.mrf.mxu0
      %v475 = vadd.f32 %v338, %v474
      %v476 = vpop.f32.mrf.mxu0
      %v477 = vpop.f32.mrf.mxu0
      %v478 = vadd.f32 %v341, %v477
      %v479 = vpop.f32.mrf.mxu0
      %480 = vmatprep.mubr.bf16.mxu0 0
      %481 = vmatmul.mubr.bf16.gmra.mxu0 %v371
      %v482 = vpop.f32.mrf.mxu0
      %v483 = vadd.f32 %v346, %v482
      %v484 = vpop.f32.mrf.mxu0
      %v485 = vpop.f32.mrf.mxu0
      %v486 = vadd.f32 %v349, %v485
      %v487 = vpop.f32.mrf.mxu0
      %488 = vdwg.mxu0
      %v489 = vld [vmem:[%s153] sm:$0xf]
      %v490 = vld [vmem:[%s153 + $0x4] sm:$0x1]
      %v491 = vld [vmem:[%s153 + $0x8] sm:$0xf]
      %v492 = vld [vmem:[%s153 + $0xc] sm:$0x1]
      %v493 = vld [vmem:[%s153 + $0x10] sm:$0xf]
      %v494 = vld [vmem:[%s153 + $0x14] sm:$0x1]
      %v495 = vld [vmem:[%s153 + $0x18] sm:$0xf]
      %v496 = vld [vmem:[%s153 + $0x1c] sm:$0x1]
      %v497 = vld [vmem:[%s153 + $0x20] sm:$0xf]
      %v498 = vld [vmem:[%s153 + $0x24] sm:$0x1]
      %v499 = vld [vmem:[%s153 + $0x28] sm:$0xf]
      %v500 = vld [vmem:[%s153 + $0x2c] sm:$0x1]
      %v501 = vld [vmem:[%s153 + $0x30] sm:$0xf]
      %v502 = vld [vmem:[%s153 + $0x34] sm:$0x1]
      %v503 = vld [vmem:[%s153 + $0x38] sm:$0xf]
      %v504 = vld [vmem:[%s153 + $0x3c] sm:$0x1]
      %vm505 = vsmask.f32 3328
      %vm506 = vsmask.f32 7440
      %vm507 = vmor %vm505, %vm506
      %v509 = vshrl.u32 %v489, 16
      %v511 = vrot.slane %v509, 4
      %v512 = vshll.u32 %v489, 16
      %v514 = vrot.slane %v512, 5
      %v515 = vor.u32 %v511, %v514
      %v516 = vrot.slane %v515, 4
      %v518 = vshll.u32 %v490, 16
      %v520 = vrot.slane %v518, 5
      %v521 = vsel %vm507, %v516, %v520
      %v523 = vshrl.u32 %v491, 16
      %v525 = vrot.slane %v523, 4
      %v526 = vshll.u32 %v491, 16
      %v528 = vrot.slane %v526, 5
      %v529 = vor.u32 %v525, %v528
      %v530 = vrot.slane %v529, 4
      %v532 = vshll.u32 %v492, 16
      %v534 = vrot.slane %v532, 5
      %v535 = vsel %vm507, %v530, %v534
      %v537 = vshrl.u32 %v493, 16
      %v539 = vrot.slane %v537, 4
      %v540 = vshll.u32 %v493, 16
      %v542 = vrot.slane %v540, 5
      %v543 = vor.u32 %v539, %v542
      %v544 = vrot.slane %v543, 4
      %v546 = vshll.u32 %v494, 16
      %v548 = vrot.slane %v546, 5
      %v549 = vsel %vm507, %v544, %v548
      %v551 = vshrl.u32 %v495, 16
      %v553 = vrot.slane %v551, 4
      %v554 = vshll.u32 %v495, 16
      %v556 = vrot.slane %v554, 5
      %v557 = vor.u32 %v553, %v556
      %v558 = vrot.slane %v557, 4
      %v560 = vshll.u32 %v496, 16
      %v562 = vrot.slane %v560, 5
      %v563 = vsel %vm507, %v558, %v562
      %v565 = vshrl.u32 %v497, 16
      %v567 = vrot.slane %v565, 4
      %v568 = vshll.u32 %v497, 16
      %v570 = vrot.slane %v568, 5
      %v571 = vor.u32 %v567, %v570
      %v572 = vrot.slane %v571, 4
      %v574 = vshll.u32 %v498, 16
      %v576 = vrot.slane %v574, 5
      %v577 = vsel %vm507, %v572, %v576
      %v579 = vshrl.u32 %v499, 16
      %v581 = vrot.slane %v579, 4
      %v582 = vshll.u32 %v499, 16
      %v584 = vrot.slane %v582, 5
      %v585 = vor.u32 %v581, %v584
      %v586 = vrot.slane %v585, 4
      %v588 = vshll.u32 %v500, 16
      %v590 = vrot.slane %v588, 5
      %v591 = vsel %vm507, %v586, %v590
      %v593 = vshrl.u32 %v501, 16
      %v595 = vrot.slane %v593, 4
      %v596 = vshll.u32 %v501, 16
      %v598 = vrot.slane %v596, 5
      %v599 = vor.u32 %v595, %v598
      %v600 = vrot.slane %v599, 4
      %v602 = vshll.u32 %v502, 16
      %v604 = vrot.slane %v602, 5
      %v605 = vsel %vm507, %v600, %v604
      %v607 = vshrl.u32 %v503, 16
      %v609 = vrot.slane %v607, 4
      %v610 = vshll.u32 %v503, 16
      %v612 = vrot.slane %v610, 5
      %v613 = vor.u32 %v609, %v612
      %v614 = vrot.slane %v613, 4
      %v616 = vshll.u32 %v504, 16
      %v618 = vrot.slane %v616, 5
      %v619 = vsel %vm507, %v614, %v618
      %s620 = scalar_lea.vmem %s158, 128
      %v621 = vld [vmem:[%s620] sm:$0xf]
      %v622 = vld [vmem:[%s620 + $0x4] sm:$0xf]
      %v623 = vld [vmem:[%s620 + $0x8] sm:$0xf]
      %v624 = vld [vmem:[%s620 + $0xc] sm:$0xf]
      %v625 = vld [vmem:[%s620 + $0x10] sm:$0xf]
      %v626 = vld [vmem:[%s620 + $0x14] sm:$0xf]
      %v627 = vld [vmem:[%s620 + $0x18] sm:$0xf]
      %v628 = vld [vmem:[%s620 + $0x1c] sm:$0xf]
      %v629 = vld [vmem:[%s620 + $0x20] sm:$0xf]
      %v630 = vld [vmem:[%s620 + $0x24] sm:$0xf]
      %v631 = vld [vmem:[%s620 + $0x28] sm:$0xf]
      %v632 = vld [vmem:[%s620 + $0x2c] sm:$0xf]
      %v633 = vld [vmem:[%s620 + $0x30] sm:$0xf]
      %v634 = vld [vmem:[%s620 + $0x34] sm:$0xf]
      %v635 = vld [vmem:[%s620 + $0x38] sm:$0xf]
      %v636 = vld [vmem:[%s620 + $0x3c] sm:$0xf]
      %v637 = vunpack.c.l.b16 %v521
      %v638 = vunpack.c.l.b16 %v535
      %v639 = vunpack.c.l.b16 %v549
      %v640 = vunpack.c.l.b16 %v563
      %v641 = vunpack.c.l.b16 %v577
      %v642 = vunpack.c.l.b16 %v591
      %v643 = vunpack.c.l.b16 %v605
      %v644 = vunpack.c.l.b16 %v619
      %v645 = vpack.c.b16 %v638, %v637
      %v646 = vpack.c.b16 %v640, %v639
      %v647 = vpack.c.b16 %v642, %v641
      %v648 = vpack.c.b16 %v644, %v643
      %v669 = vunpack.c.l.b16 %v621
      %v670 = vunpack.c.l.b16 %v622
      %v671 = vunpack.c.l.b16 %v623
      %v672 = vunpack.c.l.b16 %v624
      %v673 = vunpack.c.l.b16 %v625
      %v674 = vunpack.c.l.b16 %v626
      %v675 = vunpack.c.l.b16 %v627
      %v676 = vunpack.c.l.b16 %v628
      %v677 = vunpack.c.l.b16 %v629
      %v678 = vunpack.c.l.b16 %v630
      %v679 = vunpack.c.l.b16 %v631
      %v680 = vunpack.c.l.b16 %v632
      %v681 = vunpack.c.l.b16 %v633
      %v682 = vunpack.c.l.b16 %v634
      %v683 = vunpack.c.l.b16 %v635
      %v684 = vunpack.c.l.b16 %v636
      %v685 = vpack.c.b16 %v670, %v669
      %v686 = vpack.c.b16 %v672, %v671
      %v687 = vpack.c.b16 %v674, %v673
      %v688 = vpack.c.b16 %v676, %v675
      %v689 = vpack.c.b16 %v678, %v677
      %v690 = vpack.c.b16 %v680, %v679
      %v691 = vpack.c.b16 %v682, %v681
      %v692 = vpack.c.b16 %v684, %v683
      %701 = vmatprep.subr.bf16.mxu0 0
      %702 = vmatpush1.bf16.msra.mxu0 %v692
      %703 = vmatprep.subr.bf16.mxu0 0
      %704 = vmatpush1.bf16.msra.mxu0 %v691
      %705 = vmatprep.subr.bf16.mxu0 0
      %706 = vmatpush1.bf16.msra.mxu0 %v690
      %707 = vmatprep.subr.bf16.mxu0 0
      %708 = vmatpush1.bf16.msra.mxu0 %v689
      %709 = vmatprep.subr.bf16.mxu0 0
      %710 = vmatpush1.bf16.msra.mxu0 %v688
      %711 = vmatprep.subr.bf16.mxu0 0
      %712 = vmatpush1.bf16.msra.mxu0 %v687
      %713 = vmatprep.subr.bf16.mxu0 0
      %714 = vmatpush1.bf16.msra.mxu0 %v686
      %715 = vmatprep.subr.bf16.mxu0 0
      %716 = vmatpush1.bf16.msra.mxu0 %v685
      %717 = vmatprep.subr.bf16.mxu0 0
      %718 = vmatpush2.bf16.msra.mxu0 0
      %719 = vmatprep.subr.bf16.mxu0 0
      %720 = vmatpush2.bf16.msra.mxu0 0
      %721 = vmatprep.subr.bf16.mxu0 0
      %722 = vmatpush2.bf16.msra.mxu0 0
      %723 = vmatprep.subr.bf16.mxu0 0
      %724 = vmatpush2.bf16.msra.mxu0 0
      %725 = vmatprep.subr.bf16.mxu0 0
      %726 = vmatpush2.bf16.msra.mxu0 0
      %727 = vmatprep.subr.bf16.mxu0 0
      %728 = vmatpush2.bf16.msra.mxu0 0
      %729 = vmatprep.subr.bf16.mxu0 0
      %730 = vmatpush2.bf16.msra.mxu0 0
      %731 = vmatprep.subr.bf16.mxu0 0
      %732 = vmatpush2.bf16.msra.mxu0 0
      %733 = vmatprep.mubr.bf16.mxu0 0
      %734 = vmatmul.mubr.bf16.gmra.mxu0 %v645
      %v735 = vpop.f32.mrf.mxu0
      %v736 = vadd.f32 0.0, %v735
      %v737 = vpop.f32.mrf.mxu0
      %v738 = vpop.f32.mrf.mxu0
      %v739 = vadd.f32 0.0, %v738
      %v740 = vpop.f32.mrf.mxu0
      %741 = vmatprep.mubr.bf16.mxu0 0
      %742 = vmatmul.mubr.bf16.gmra.mxu0 %v646
      %v743 = vpop.f32.mrf.mxu0
      %v744 = vadd.f32 0.0, %v743
      %v745 = vpop.f32.mrf.mxu0
      %v746 = vpop.f32.mrf.mxu0
      %v747 = vadd.f32 0.0, %v746
      %v748 = vpop.f32.mrf.mxu0
      %749 = vmatprep.mubr.bf16.mxu0 0
      %750 = vmatmul.mubr.bf16.gmra.mxu0 %v647
      %v751 = vpop.f32.mrf.mxu0
      %v752 = vadd.f32 0.0, %v751
      %v753 = vpop.f32.mrf.mxu0
      %v754 = vpop.f32.mrf.mxu0
      %v755 = vadd.f32 0.0, %v754
      %v756 = vpop.f32.mrf.mxu0
      %757 = vmatprep.mubr.bf16.mxu0 0
      %758 = vmatmul.mubr.bf16.gmra.mxu0 %v648
      %v759 = vpop.f32.mrf.mxu0
      %v760 = vadd.f32 0.0, %v759
      %v761 = vpop.f32.mrf.mxu0
      %v762 = vpop.f32.mrf.mxu0
      %v763 = vadd.f32 0.0, %v762
      %v764 = vpop.f32.mrf.mxu0
      %765 = vdwg.mxu0
      %v766 = vadd.f32 %v459, %v736
      %v767 = vadd.f32 %v462, %v739
      %v768 = vadd.f32 %v467, %v744
      %v769 = vadd.f32 %v470, %v747
      %v770 = vadd.f32 %v475, %v752
      %v771 = vadd.f32 %v478, %v755
      %v772 = vadd.f32 %v483, %v760
      %v773 = vadd.f32 %v486, %v763
      %s774 = scalar_lea.vmem %s153, 144
      %v775 = vld [vmem:[%s774] sm:$0xf]
      %v776 = vld [vmem:[%s774 + $0x8] sm:$0xf]
      %v777 = vld [vmem:[%s774 + $0x10] sm:$0xf]
      %v778 = vld [vmem:[%s774 + $0x18] sm:$0xf]
      %v779 = vld [vmem:[%s774 + $0x20] sm:$0xf]
      %v780 = vld [vmem:[%s774 + $0x28] sm:$0xf]
      %v781 = vld [vmem:[%s774 + $0x30] sm:$0xf]
      %v782 = vld [vmem:[%s774 + $0x38] sm:$0xf]
      %s783 = scalar_lea.vmem %s158, 192
      %v784 = vld [vmem:[%s783] sm:$0xf]
      %v785 = vld [vmem:[%s783 + $0x4] sm:$0xf]
      %v786 = vld [vmem:[%s783 + $0x8] sm:$0xf]
      %v787 = vld [vmem:[%s783 + $0xc] sm:$0xf]
      %v788 = vld [vmem:[%s783 + $0x10] sm:$0xf]
      %v789 = vld [vmem:[%s783 + $0x14] sm:$0xf]
      %v790 = vld [vmem:[%s783 + $0x18] sm:$0xf]
      %v791 = vld [vmem:[%s783 + $0x1c] sm:$0xf]
      %v792 = vld [vmem:[%s783 + $0x20] sm:$0xf]
      %v793 = vld [vmem:[%s783 + $0x24] sm:$0xf]
      %v794 = vld [vmem:[%s783 + $0x28] sm:$0xf]
      %v795 = vld [vmem:[%s783 + $0x2c] sm:$0xf]
      %v796 = vld [vmem:[%s783 + $0x30] sm:$0xf]
      %v797 = vld [vmem:[%s783 + $0x34] sm:$0xf]
      %v798 = vld [vmem:[%s783 + $0x38] sm:$0xf]
      %v799 = vld [vmem:[%s783 + $0x3c] sm:$0xf]
      %v808 = vunpack.c.l.b16 %v775
      %v809 = vunpack.c.l.b16 %v776
      %v810 = vunpack.c.l.b16 %v777
      %v811 = vunpack.c.l.b16 %v778
      %v812 = vunpack.c.l.b16 %v779
      %v813 = vunpack.c.l.b16 %v780
      %v814 = vunpack.c.l.b16 %v781
      %v815 = vunpack.c.l.b16 %v782
      %v816 = vpack.c.b16 %v809, %v808
      %v817 = vpack.c.b16 %v811, %v810
      %v818 = vpack.c.b16 %v813, %v812
      %v819 = vpack.c.b16 %v815, %v814
      %v840 = vunpack.c.l.b16 %v784
      %v841 = vunpack.c.l.b16 %v785
      %v842 = vunpack.c.l.b16 %v786
      %v843 = vunpack.c.l.b16 %v787
      %v844 = vunpack.c.l.b16 %v788
      %v845 = vunpack.c.l.b16 %v789
      %v846 = vunpack.c.l.b16 %v790
      %v847 = vunpack.c.l.b16 %v791
      %v848 = vunpack.c.l.b16 %v792
      %v849 = vunpack.c.l.b16 %v793
      %v850 = vunpack.c.l.b16 %v794
      %v851 = vunpack.c.l.b16 %v795
      %v852 = vunpack.c.l.b16 %v796
      %v853 = vunpack.c.l.b16 %v797
      %v854 = vunpack.c.l.b16 %v798
      %v855 = vunpack.c.l.b16 %v799
      %v856 = vpack.c.b16 %v841, %v840
      %v857 = vpack.c.b16 %v843, %v842
      %v858 = vpack.c.b16 %v845, %v844
      %v859 = vpack.c.b16 %v847, %v846
      %v860 = vpack.c.b16 %v849, %v848
      %v861 = vpack.c.b16 %v851, %v850
      %v862 = vpack.c.b16 %v853, %v852
      %v863 = vpack.c.b16 %v855, %v854
      %872 = vmatprep.subr.bf16.mxu0 0
      %873 = vmatpush1.bf16.msra.mxu0 %v863
      %874 = vmatprep.subr.bf16.mxu0 0
      %875 = vmatpush1.bf16.msra.mxu0 %v862
      %876 = vmatprep.subr.bf16.mxu0 0
      %877 = vmatpush1.bf16.msra.mxu0 %v861
      %878 = vmatprep.subr.bf16.mxu0 0
      %879 = vmatpush1.bf16.msra.mxu0 %v860
      %880 = vmatprep.subr.bf16.mxu0 0
      %881 = vmatpush1.bf16.msra.mxu0 %v859
      %882 = vmatprep.subr.bf16.mxu0 0
      %883 = vmatpush1.bf16.msra.mxu0 %v858
      %884 = vmatprep.subr.bf16.mxu0 0
      %885 = vmatpush1.bf16.msra.mxu0 %v857
      %886 = vmatprep.subr.bf16.mxu0 0
      %887 = vmatpush1.bf16.msra.mxu0 %v856
      %888 = vmatprep.subr.bf16.mxu0 0
      %889 = vmatpush2.bf16.msra.mxu0 0
      %890 = vmatprep.subr.bf16.mxu0 0
      %891 = vmatpush2.bf16.msra.mxu0 0
      %892 = vmatprep.subr.bf16.mxu0 0
      %893 = vmatpush2.bf16.msra.mxu0 0
      %894 = vmatprep.subr.bf16.mxu0 0
      %895 = vmatpush2.bf16.msra.mxu0 0
      %896 = vmatprep.subr.bf16.mxu0 0
      %897 = vmatpush2.bf16.msra.mxu0 0
      %898 = vmatprep.subr.bf16.mxu0 0
      %899 = vmatpush2.bf16.msra.mxu0 0
      %900 = vmatprep.subr.bf16.mxu0 0
      %901 = vmatpush2.bf16.msra.mxu0 0
      %902 = vmatprep.subr.bf16.mxu0 0
      %903 = vmatpush2.bf16.msra.mxu0 0
      %904 = vmatprep.mubr.bf16.mxu0 0
      %905 = vmatmul.mubr.bf16.gmra.mxu0 %v816
      %v906 = vpop.f32.mrf.mxu0
      %v907 = vadd.f32 0.0, %v906
      %v908 = vpop.f32.mrf.mxu0
      %v909 = vpop.f32.mrf.mxu0
      %v910 = vadd.f32 0.0, %v909
      %v911 = vpop.f32.mrf.mxu0
      %912 = vmatprep.mubr.bf16.mxu0 0
      %913 = vmatmul.mubr.bf16.gmra.mxu0 %v817
      %v914 = vpop.f32.mrf.mxu0
      %v915 = vadd.f32 0.0, %v914
      %v916 = vpop.f32.mrf.mxu0
      %v917 = vpop.f32.mrf.mxu0
      %v918 = vadd.f32 0.0, %v917
      %v919 = vpop.f32.mrf.mxu0
      %920 = vmatprep.mubr.bf16.mxu0 0
      %921 = vmatmul.mubr.bf16.gmra.mxu0 %v818
      %v922 = vpop.f32.mrf.mxu0
      %v923 = vadd.f32 0.0, %v922
      %v924 = vpop.f32.mrf.mxu0
      %v925 = vpop.f32.mrf.mxu0
      %v926 = vadd.f32 0.0, %v925
      %v927 = vpop.f32.mrf.mxu0
      %928 = vmatprep.mubr.bf16.mxu0 0
      %929 = vmatmul.mubr.bf16.gmra.mxu0 %v819
      %v930 = vpop.f32.mrf.mxu0
      %v931 = vadd.f32 0.0, %v930
      %v932 = vpop.f32.mrf.mxu0
      %v933 = vpop.f32.mrf.mxu0
      %v934 = vadd.f32 0.0, %v933
      %v935 = vpop.f32.mrf.mxu0
      %936 = vdwg.mxu0
      %v937 = vadd.f32 %v766, %v907
      %v938 = vadd.f32 %v767, %v910
      %v939 = vadd.f32 %v768, %v915
      %v940 = vadd.f32 %v769, %v918
      %v941 = vadd.f32 %v770, %v923
      %v942 = vadd.f32 %v771, %v926
      %v943 = vadd.f32 %v772, %v931
      %v944 = vadd.f32 %v773, %v934
      %s945 = scalar_lea.vmem %s153, 216
      %v946 = vld [vmem:[%s945] sm:$0xf]
      %v947 = vld [vmem:[%s945 + $0x8] sm:$0xf]
      %v948 = vld [vmem:[%s945 + $0x10] sm:$0xf]
      %v949 = vld [vmem:[%s945 + $0x18] sm:$0xf]
      %v950 = vld [vmem:[%s945 + $0x20] sm:$0xf]
      %v951 = vld [vmem:[%s945 + $0x28] sm:$0xf]
      %v952 = vld [vmem:[%s945 + $0x30] sm:$0xf]
      %v953 = vld [vmem:[%s945 + $0x38] sm:$0xf]
      %s954 = scalar_lea.vmem %s158, 256
      %v955 = vld [vmem:[%s954] sm:$0xf]
      %v956 = vld [vmem:[%s954 + $0x4] sm:$0xf]
      %v957 = vld [vmem:[%s954 + $0x8] sm:$0xf]
      %v958 = vld [vmem:[%s954 + $0xc] sm:$0xf]
      %v959 = vld [vmem:[%s954 + $0x10] sm:$0xf]
      %v960 = vld [vmem:[%s954 + $0x14] sm:$0xf]
      %v961 = vld [vmem:[%s954 + $0x18] sm:$0xf]
      %v962 = vld [vmem:[%s954 + $0x1c] sm:$0xf]
      %v963 = vld [vmem:[%s954 + $0x20] sm:$0xf]
      %v964 = vld [vmem:[%s954 + $0x24] sm:$0xf]
      %v965 = vld [vmem:[%s954 + $0x28] sm:$0xf]
      %v966 = vld [vmem:[%s954 + $0x2c] sm:$0xf]
      %v967 = vld [vmem:[%s954 + $0x30] sm:$0xf]
      %v968 = vld [vmem:[%s954 + $0x34] sm:$0xf]
      %v969 = vld [vmem:[%s954 + $0x38] sm:$0xf]
      %v970 = vld [vmem:[%s954 + $0x3c] sm:$0xf]
      %v979 = vunpack.c.l.b16 %v946
      %v980 = vunpack.c.l.b16 %v947
      %v981 = vunpack.c.l.b16 %v948
      %v982 = vunpack.c.l.b16 %v949
      %v983 = vunpack.c.l.b16 %v950
      %v984 = vunpack.c.l.b16 %v951
      %v985 = vunpack.c.l.b16 %v952
      %v986 = vunpack.c.l.b16 %v953
      %v987 = vpack.c.b16 %v980, %v979
      %v988 = vpack.c.b16 %v982, %v981
      %v989 = vpack.c.b16 %v984, %v983
      %v990 = vpack.c.b16 %v986, %v985
      %v1011 = vunpack.c.l.b16 %v955
      %v1012 = vunpack.c.l.b16 %v956
      %v1013 = vunpack.c.l.b16 %v957
      %v1014 = vunpack.c.l.b16 %v958
      %v1015 = vunpack.c.l.b16 %v959
      %v1016 = vunpack.c.l.b16 %v960
      %v1017 = vunpack.c.l.b16 %v961
      %v1018 = vunpack.c.l.b16 %v962
      %v1019 = vunpack.c.l.b16 %v963
      %v1020 = vunpack.c.l.b16 %v964
      %v1021 = vunpack.c.l.b16 %v965
      %v1022 = vunpack.c.l.b16 %v966
      %v1023 = vunpack.c.l.b16 %v967
      %v1024 = vunpack.c.l.b16 %v968
      %v1025 = vunpack.c.l.b16 %v969
      %v1026 = vunpack.c.l.b16 %v970
      %v1027 = vpack.c.b16 %v1012, %v1011
      %v1028 = vpack.c.b16 %v1014, %v1013
      %v1029 = vpack.c.b16 %v1016, %v1015
      %v1030 = vpack.c.b16 %v1018, %v1017
      %v1031 = vpack.c.b16 %v1020, %v1019
      %v1032 = vpack.c.b16 %v1022, %v1021
      %v1033 = vpack.c.b16 %v1024, %v1023
      %v1034 = vpack.c.b16 %v1026, %v1025
      %1043 = vmatprep.subr.bf16.mxu0 0
      %1044 = vmatpush1.bf16.msra.mxu0 %v1034
      %1045 = vmatprep.subr.bf16.mxu0 0
      %1046 = vmatpush1.bf16.msra.mxu0 %v1033
      %1047 = vmatprep.subr.bf16.mxu0 0
      %1048 = vmatpush1.bf16.msra.mxu0 %v1032
      %1049 = vmatprep.subr.bf16.mxu0 0
      %1050 = vmatpush1.bf16.msra.mxu0 %v1031
      %1051 = vmatprep.subr.bf16.mxu0 0
      %1052 = vmatpush1.bf16.msra.mxu0 %v1030
      %1053 = vmatprep.subr.bf16.mxu0 0
      %1054 = vmatpush1.bf16.msra.mxu0 %v1029
      %1055 = vmatprep.subr.bf16.mxu0 0
      %1056 = vmatpush1.bf16.msra.mxu0 %v1028
      %1057 = vmatprep.subr.bf16.mxu0 0
      %1058 = vmatpush1.bf16.msra.mxu0 %v1027
      %1059 = vmatprep.subr.bf16.mxu0 0
      %1060 = vmatpush2.bf16.msra.mxu0 0
      %1061 = vmatprep.subr.bf16.mxu0 0
      %1062 = vmatpush2.bf16.msra.mxu0 0
      %1063 = vmatprep.subr.bf16.mxu0 0
      %1064 = vmatpush2.bf16.msra.mxu0 0
      %1065 = vmatprep.subr.bf16.mxu0 0
      %1066 = vmatpush2.bf16.msra.mxu0 0
      %1067 = vmatprep.subr.bf16.mxu0 0
      %1068 = vmatpush2.bf16.msra.mxu0 0
      %1069 = vmatprep.subr.bf16.mxu0 0
      %1070 = vmatpush2.bf16.msra.mxu0 0
      %1071 = vmatprep.subr.bf16.mxu0 0
      %1072 = vmatpush2.bf16.msra.mxu0 0
      %1073 = vmatprep.subr.bf16.mxu0 0
      %1074 = vmatpush2.bf16.msra.mxu0 0
      %1075 = vmatprep.mubr.bf16.mxu0 0
      %1076 = vmatmul.mubr.bf16.gmra.mxu0 %v987
      %v1077 = vpop.f32.mrf.mxu0
      %v1078 = vadd.f32 0.0, %v1077
      %v1079 = vpop.f32.mrf.mxu0
      %v1080 = vpop.f32.mrf.mxu0
      %v1081 = vadd.f32 0.0, %v1080
      %v1082 = vpop.f32.mrf.mxu0
      %1083 = vmatprep.mubr.bf16.mxu0 0
      %1084 = vmatmul.mubr.bf16.gmra.mxu0 %v988
      %v1085 = vpop.f32.mrf.mxu0
      %v1086 = vadd.f32 0.0, %v1085
      %v1087 = vpop.f32.mrf.mxu0
      %v1088 = vpop.f32.mrf.mxu0
      %v1089 = vadd.f32 0.0, %v1088
      %v1090 = vpop.f32.mrf.mxu0
      %1091 = vmatprep.mubr.bf16.mxu0 0
      %1092 = vmatmul.mubr.bf16.gmra.mxu0 %v989
      %v1093 = vpop.f32.mrf.mxu0
      %v1094 = vadd.f32 0.0, %v1093
      %v1095 = vpop.f32.mrf.mxu0
      %v1096 = vpop.f32.mrf.mxu0
      %v1097 = vadd.f32 0.0, %v1096
      %v1098 = vpop.f32.mrf.mxu0
      %1099 = vmatprep.mubr.bf16.mxu0 0
      %1100 = vmatmul.mubr.bf16.gmra.mxu0 %v990
      %v1101 = vpop.f32.mrf.mxu0
      %v1102 = vadd.f32 0.0, %v1101
      %v1103 = vpop.f32.mrf.mxu0
      %v1104 = vpop.f32.mrf.mxu0
      %v1105 = vadd.f32 0.0, %v1104
      %v1106 = vpop.f32.mrf.mxu0
      %1107 = vdwg.mxu0
      %v1108 = vadd.f32 %v937, %v1078
      %v1109 = vadd.f32 %v938, %v1081
      %v1110 = vadd.f32 %v939, %v1086
      %v1111 = vadd.f32 %v940, %v1089
      %v1112 = vadd.f32 %v941, %v1094
      %v1113 = vadd.f32 %v942, %v1097
      %v1114 = vadd.f32 %v943, %v1102
      %v1115 = vadd.f32 %v944, %v1105
      %v1116 = vld [vmem:[%s774] sm:$0xf]
      %v1117 = vld [vmem:[%s774 + $0x4] sm:$0x1]
      %v1118 = vld [vmem:[%s774 + $0x8] sm:$0xf]
      %v1119 = vld [vmem:[%s774 + $0xc] sm:$0x1]
      %v1120 = vld [vmem:[%s774 + $0x10] sm:$0xf]
      %v1121 = vld [vmem:[%s774 + $0x14] sm:$0x1]
      %v1122 = vld [vmem:[%s774 + $0x18] sm:$0xf]
      %v1123 = vld [vmem:[%s774 + $0x1c] sm:$0x1]
      %v1124 = vld [vmem:[%s774 + $0x20] sm:$0xf]
      %v1125 = vld [vmem:[%s774 + $0x24] sm:$0x1]
      %v1126 = vld [vmem:[%s774 + $0x28] sm:$0xf]
      %v1127 = vld [vmem:[%s774 + $0x2c] sm:$0x1]
      %v1128 = vld [vmem:[%s774 + $0x30] sm:$0xf]
      %v1129 = vld [vmem:[%s774 + $0x34] sm:$0x1]
      %v1130 = vld [vmem:[%s774 + $0x38] sm:$0xf]
      %v1131 = vld [vmem:[%s774 + $0x3c] sm:$0x1]
      %v1133 = vshrl.u32 %v1116, 16
      %v1135 = vrot.slane %v1133, 4
      %v1136 = vshll.u32 %v1116, 16
      %v1138 = vrot.slane %v1136, 5
      %v1139 = vor.u32 %v1135, %v1138
      %v1140 = vrot.slane %v1139, 4
      %v1142 = vshll.u32 %v1117, 16
      %v1144 = vrot.slane %v1142, 5
      %v1145 = vsel %vm507, %v1140, %v1144
      %v1147 = vshrl.u32 %v1118, 16
      %v1149 = vrot.slane %v1147, 4
      %v1150 = vshll.u32 %v1118, 16
      %v1152 = vrot.slane %v1150, 5
      %v1153 = vor.u32 %v1149, %v1152
      %v1154 = vrot.slane %v1153, 4
      %v1156 = vshll.u32 %v1119, 16
      %v1158 = vrot.slane %v1156, 5
      %v1159 = vsel %vm507, %v1154, %v1158
      %v1161 = vshrl.u32 %v1120, 16
      %v1163 = vrot.slane %v1161, 4
      %v1164 = vshll.u32 %v1120, 16
      %v1166 = vrot.slane %v1164, 5
      %v1167 = vor.u32 %v1163, %v1166
      %v1168 = vrot.slane %v1167, 4
      %v1170 = vshll.u32 %v1121, 16
      %v1172 = vrot.slane %v1170, 5
      %v1173 = vsel %vm507, %v1168, %v1172
      %v1175 = vshrl.u32 %v1122, 16
      %v1177 = vrot.slane %v1175, 4
      %v1178 = vshll.u32 %v1122, 16
      %v1180 = vrot.slane %v1178, 5
      %v1181 = vor.u32 %v1177, %v1180
      %v1182 = vrot.slane %v1181, 4
      %v1184 = vshll.u32 %v1123, 16
      %v1186 = vrot.slane %v1184, 5
      %v1187 = vsel %vm507, %v1182, %v1186
      %v1189 = vshrl.u32 %v1124, 16
      %v1191 = vrot.slane %v1189, 4
      %v1192 = vshll.u32 %v1124, 16
      %v1194 = vrot.slane %v1192, 5
      %v1195 = vor.u32 %v1191, %v1194
      %v1196 = vrot.slane %v1195, 4
      %v1198 = vshll.u32 %v1125, 16
      %v1200 = vrot.slane %v1198, 5
      %v1201 = vsel %vm507, %v1196, %v1200
      %v1203 = vshrl.u32 %v1126, 16
      %v1205 = vrot.slane %v1203, 4
      %v1206 = vshll.u32 %v1126, 16
      %v1208 = vrot.slane %v1206, 5
      %v1209 = vor.u32 %v1205, %v1208
      %v1210 = vrot.slane %v1209, 4
      %v1212 = vshll.u32 %v1127, 16
      %v1214 = vrot.slane %v1212, 5
      %v1215 = vsel %vm507, %v1210, %v1214
      %v1217 = vshrl.u32 %v1128, 16
      %v1219 = vrot.slane %v1217, 4
      %v1220 = vshll.u32 %v1128, 16
      %v1222 = vrot.slane %v1220, 5
      %v1223 = vor.u32 %v1219, %v1222
      %v1224 = vrot.slane %v1223, 4
      %v1226 = vshll.u32 %v1129, 16
      %v1228 = vrot.slane %v1226, 5
      %v1229 = vsel %vm507, %v1224, %v1228
      %v1231 = vshrl.u32 %v1130, 16
      %v1233 = vrot.slane %v1231, 4
      %v1234 = vshll.u32 %v1130, 16
      %v1236 = vrot.slane %v1234, 5
      %v1237 = vor.u32 %v1233, %v1236
      %v1238 = vrot.slane %v1237, 4
      %v1240 = vshll.u32 %v1131, 16
      %v1242 = vrot.slane %v1240, 5
      %v1243 = vsel %vm507, %v1238, %v1242
      %s1244 = scalar_lea.vmem %s158, 320
      %v1245 = vld [vmem:[%s1244] sm:$0xf]
      %v1246 = vld [vmem:[%s1244 + $0x4] sm:$0xf]
      %v1247 = vld [vmem:[%s1244 + $0x8] sm:$0xf]
      %v1248 = vld [vmem:[%s1244 + $0xc] sm:$0xf]
      %v1249 = vld [vmem:[%s1244 + $0x10] sm:$0xf]
      %v1250 = vld [vmem:[%s1244 + $0x14] sm:$0xf]
      %v1251 = vld [vmem:[%s1244 + $0x18] sm:$0xf]
      %v1252 = vld [vmem:[%s1244 + $0x1c] sm:$0xf]
      %v1253 = vld [vmem:[%s1244 + $0x20] sm:$0xf]
      %v1254 = vld [vmem:[%s1244 + $0x24] sm:$0xf]
      %v1255 = vld [vmem:[%s1244 + $0x28] sm:$0xf]
      %v1256 = vld [vmem:[%s1244 + $0x2c] sm:$0xf]
      %v1257 = vld [vmem:[%s1244 + $0x30] sm:$0xf]
      %v1258 = vld [vmem:[%s1244 + $0x34] sm:$0xf]
      %v1259 = vld [vmem:[%s1244 + $0x38] sm:$0xf]
      %v1260 = vld [vmem:[%s1244 + $0x3c] sm:$0xf]
      %v1261 = vunpack.c.l.b16 %v1145
      %v1262 = vunpack.c.l.b16 %v1159
      %v1263 = vunpack.c.l.b16 %v1173
      %v1264 = vunpack.c.l.b16 %v1187
      %v1265 = vunpack.c.l.b16 %v1201
      %v1266 = vunpack.c.l.b16 %v1215
      %v1267 = vunpack.c.l.b16 %v1229
      %v1268 = vunpack.c.l.b16 %v1243
      %v1269 = vpack.c.b16 %v1262, %v1261
      %v1270 = vpack.c.b16 %v1264, %v1263
      %v1271 = vpack.c.b16 %v1266, %v1265
      %v1272 = vpack.c.b16 %v1268, %v1267
      %v1293 = vunpack.c.l.b16 %v1245
      %v1294 = vunpack.c.l.b16 %v1246
      %v1295 = vunpack.c.l.b16 %v1247
      %v1296 = vunpack.c.l.b16 %v1248
      %v1297 = vunpack.c.l.b16 %v1249
      %v1298 = vunpack.c.l.b16 %v1250
      %v1299 = vunpack.c.l.b16 %v1251
      %v1300 = vunpack.c.l.b16 %v1252
      %v1301 = vunpack.c.l.b16 %v1253
      %v1302 = vunpack.c.l.b16 %v1254
      %v1303 = vunpack.c.l.b16 %v1255
      %v1304 = vunpack.c.l.b16 %v1256
      %v1305 = vunpack.c.l.b16 %v1257
      %v1306 = vunpack.c.l.b16 %v1258
      %v1307 = vunpack.c.l.b16 %v1259
      %v1308 = vunpack.c.l.b16 %v1260
      %v1309 = vpack.c.b16 %v1294, %v1293
      %v1310 = vpack.c.b16 %v1296, %v1295
      %v1311 = vpack.c.b16 %v1298, %v1297
      %v1312 = vpack.c.b16 %v1300, %v1299
      %v1313 = vpack.c.b16 %v1302, %v1301
      %v1314 = vpack.c.b16 %v1304, %v1303
      %v1315 = vpack.c.b16 %v1306, %v1305
      %v1316 = vpack.c.b16 %v1308, %v1307
      %1325 = vmatprep.subr.bf16.mxu0 0
      %1326 = vmatpush1.bf16.msra.mxu0 %v1316
      %1327 = vmatprep.subr.bf16.mxu0 0
      %1328 = vmatpush1.bf16.msra.mxu0 %v1315
      %1329 = vmatprep.subr.bf16.mxu0 0
      %1330 = vmatpush1.bf16.msra.mxu0 %v1314
      %1331 = vmatprep.subr.bf16.mxu0 0
      %1332 = vmatpush1.bf16.msra.mxu0 %v1313
      %1333 = vmatprep.subr.bf16.mxu0 0
      %1334 = vmatpush1.bf16.msra.mxu0 %v1312
      %1335 = vmatprep.subr.bf16.mxu0 0
      %1336 = vmatpush1.bf16.msra.mxu0 %v1311
      %1337 = vmatprep.subr.bf16.mxu0 0
      %1338 = vmatpush1.bf16.msra.mxu0 %v1310
      %1339 = vmatprep.subr.bf16.mxu0 0
      %1340 = vmatpush1.bf16.msra.mxu0 %v1309
      %1341 = vmatprep.subr.bf16.mxu0 0
      %1342 = vmatpush2.bf16.msra.mxu0 0
      %1343 = vmatprep.subr.bf16.mxu0 0
      %1344 = vmatpush2.bf16.msra.mxu0 0
      %1345 = vmatprep.subr.bf16.mxu0 0
      %1346 = vmatpush2.bf16.msra.mxu0 0
      %1347 = vmatprep.subr.bf16.mxu0 0
      %1348 = vmatpush2.bf16.msra.mxu0 0
      %1349 = vmatprep.subr.bf16.mxu0 0
      %1350 = vmatpush2.bf16.msra.mxu0 0
      %1351 = vmatprep.subr.bf16.mxu0 0
      %1352 = vmatpush2.bf16.msra.mxu0 0
      %1353 = vmatprep.subr.bf16.mxu0 0
      %1354 = vmatpush2.bf16.msra.mxu0 0
      %1355 = vmatprep.subr.bf16.mxu0 0
      %1356 = vmatpush2.bf16.msra.mxu0 0
      %1357 = vmatprep.mubr.bf16.mxu0 0
      %1358 = vmatmul.mubr.bf16.gmra.mxu0 %v1269
      %v1359 = vpop.f32.mrf.mxu0
      %v1360 = vadd.f32 0.0, %v1359
      %v1361 = vpop.f32.mrf.mxu0
      %v1362 = vpop.f32.mrf.mxu0
      %v1363 = vadd.f32 0.0, %v1362
      %v1364 = vpop.f32.mrf.mxu0
      %1365 = vmatprep.mubr.bf16.mxu0 0
      %1366 = vmatmul.mubr.bf16.gmra.mxu0 %v1270
      %v1367 = vpop.f32.mrf.mxu0
      %v1368 = vadd.f32 0.0, %v1367
      %v1369 = vpop.f32.mrf.mxu0
      %v1370 = vpop.f32.mrf.mxu0
      %v1371 = vadd.f32 0.0, %v1370
      %v1372 = vpop.f32.mrf.mxu0
      %1373 = vmatprep.mubr.bf16.mxu0 0
      %1374 = vmatmul.mubr.bf16.gmra.mxu0 %v1271
      %v1375 = vpop.f32.mrf.mxu0
      %v1376 = vadd.f32 0.0, %v1375
      %v1377 = vpop.f32.mrf.mxu0
      %v1378 = vpop.f32.mrf.mxu0
      %v1379 = vadd.f32 0.0, %v1378
      %v1380 = vpop.f32.mrf.mxu0
      %1381 = vmatprep.mubr.bf16.mxu0 0
      %1382 = vmatmul.mubr.bf16.gmra.mxu0 %v1272
      %v1383 = vpop.f32.mrf.mxu0
      %v1384 = vadd.f32 0.0, %v1383
      %v1385 = vpop.f32.mrf.mxu0
      %v1386 = vpop.f32.mrf.mxu0
      %v1387 = vadd.f32 0.0, %v1386
      %v1388 = vpop.f32.mrf.mxu0
      %1389 = vdwg.mxu0
      %v1390 = vadd.f32 %v1108, %v1360
      %v1391 = vadd.f32 %v1109, %v1363
      %v1392 = vadd.f32 %v1110, %v1368
      %v1393 = vadd.f32 %v1111, %v1371
      %v1394 = vadd.f32 %v1112, %v1376
      %v1395 = vadd.f32 %v1113, %v1379
      %v1396 = vadd.f32 %v1114, %v1384
      %v1397 = vadd.f32 %v1115, %v1387
      %s1398 = scalar_lea.vmem %s153, 8
      %v1399 = vld [vmem:[%s1398] sm:$0xf]
      %v1400 = vld [vmem:[%s1398 + $0x8] sm:$0xf]
      %v1401 = vld [vmem:[%s1398 + $0x10] sm:$0xf]
      %v1402 = vld [vmem:[%s1398 + $0x18] sm:$0xf]
      %v1403 = vld [vmem:[%s1398 + $0x20] sm:$0xf]
      %v1404 = vld [vmem:[%s1398 + $0x28] sm:$0xf]
      %v1405 = vld [vmem:[%s1398 + $0x30] sm:$0xf]
      %v1406 = vld [vmem:[%s1398 + $0x38] sm:$0xf]
      %s1407 = scalar_lea.vmem %s158, 384
      %v1408 = vld [vmem:[%s1407] sm:$0xf]
      %v1409 = vld [vmem:[%s1407 + $0x4] sm:$0xf]
      %v1410 = vld [vmem:[%s1407 + $0x8] sm:$0xf]
      %v1411 = vld [vmem:[%s1407 + $0xc] sm:$0xf]
      %v1412 = vld [vmem:[%s1407 + $0x10] sm:$0xf]
      %v1413 = vld [vmem:[%s1407 + $0x14] sm:$0xf]
      %v1414 = vld [vmem:[%s1407 + $0x18] sm:$0xf]
      %v1415 = vld [vmem:[%s1407 + $0x1c] sm:$0xf]
      %v1416 = vld [vmem:[%s1407 + $0x20] sm:$0xf]
      %v1417 = vld [vmem:[%s1407 + $0x24] sm:$0xf]
      %v1418 = vld [vmem:[%s1407 + $0x28] sm:$0xf]
      %v1419 = vld [vmem:[%s1407 + $0x2c] sm:$0xf]
      %v1420 = vld [vmem:[%s1407 + $0x30] sm:$0xf]
      %v1421 = vld [vmem:[%s1407 + $0x34] sm:$0xf]
      %v1422 = vld [vmem:[%s1407 + $0x38] sm:$0xf]
      %v1423 = vld [vmem:[%s1407 + $0x3c] sm:$0xf]
      %v1432 = vunpack.c.l.b16 %v1399
      %v1433 = vunpack.c.l.b16 %v1400
      %v1434 = vunpack.c.l.b16 %v1401
      %v1435 = vunpack.c.l.b16 %v1402
      %v1436 = vunpack.c.l.b16 %v1403
      %v1437 = vunpack.c.l.b16 %v1404
      %v1438 = vunpack.c.l.b16 %v1405
      %v1439 = vunpack.c.l.b16 %v1406
      %v1440 = vpack.c.b16 %v1433, %v1432
      %v1441 = vpack.c.b16 %v1435, %v1434
      %v1442 = vpack.c.b16 %v1437, %v1436
      %v1443 = vpack.c.b16 %v1439, %v1438
      %v1464 = vunpack.c.l.b16 %v1408
      %v1465 = vunpack.c.l.b16 %v1409
      %v1466 = vunpack.c.l.b16 %v1410
      %v1467 = vunpack.c.l.b16 %v1411
      %v1468 = vunpack.c.l.b16 %v1412
      %v1469 = vunpack.c.l.b16 %v1413
      %v1470 = vunpack.c.l.b16 %v1414
      %v1471 = vunpack.c.l.b16 %v1415
      %v1472 = vunpack.c.l.b16 %v1416
      %v1473 = vunpack.c.l.b16 %v1417
      %v1474 = vunpack.c.l.b16 %v1418
      %v1475 = vunpack.c.l.b16 %v1419
      %v1476 = vunpack.c.l.b16 %v1420
      %v1477 = vunpack.c.l.b16 %v1421
      %v1478 = vunpack.c.l.b16 %v1422
      %v1479 = vunpack.c.l.b16 %v1423
      %v1480 = vpack.c.b16 %v1465, %v1464
      %v1481 = vpack.c.b16 %v1467, %v1466
      %v1482 = vpack.c.b16 %v1469, %v1468
      %v1483 = vpack.c.b16 %v1471, %v1470
      %v1484 = vpack.c.b16 %v1473, %v1472
      %v1485 = vpack.c.b16 %v1475, %v1474
      %v1486 = vpack.c.b16 %v1477, %v1476
      %v1487 = vpack.c.b16 %v1479, %v1478
      %1496 = vmatprep.subr.bf16.mxu0 0
      %1497 = vmatpush1.bf16.msra.mxu0 %v1487
      %1498 = vmatprep.subr.bf16.mxu0 0
      %1499 = vmatpush1.bf16.msra.mxu0 %v1486
      %1500 = vmatprep.subr.bf16.mxu0 0
      %1501 = vmatpush1.bf16.msra.mxu0 %v1485
      %1502 = vmatprep.subr.bf16.mxu0 0
      %1503 = vmatpush1.bf16.msra.mxu0 %v1484
      %1504 = vmatprep.subr.bf16.mxu0 0
      %1505 = vmatpush1.bf16.msra.mxu0 %v1483
      %1506 = vmatprep.subr.bf16.mxu0 0
      %1507 = vmatpush1.bf16.msra.mxu0 %v1482
      %1508 = vmatprep.subr.bf16.mxu0 0
      %1509 = vmatpush1.bf16.msra.mxu0 %v1481
      %1510 = vmatprep.subr.bf16.mxu0 0
      %1511 = vmatpush1.bf16.msra.mxu0 %v1480
      %1512 = vmatprep.subr.bf16.mxu0 0
      %1513 = vmatpush2.bf16.msra.mxu0 0
      %1514 = vmatprep.subr.bf16.mxu0 0
      %1515 = vmatpush2.bf16.msra.mxu0 0
      %1516 = vmatprep.subr.bf16.mxu0 0
      %1517 = vmatpush2.bf16.msra.mxu0 0
      %1518 = vmatprep.subr.bf16.mxu0 0
      %1519 = vmatpush2.bf16.msra.mxu0 0
      %1520 = vmatprep.subr.bf16.mxu0 0
      %1521 = vmatpush2.bf16.msra.mxu0 0
      %1522 = vmatprep.subr.bf16.mxu0 0
      %1523 = vmatpush2.bf16.msra.mxu0 0
      %1524 = vmatprep.subr.bf16.mxu0 0
      %1525 = vmatpush2.bf16.msra.mxu0 0
      %1526 = vmatprep.subr.bf16.mxu0 0
      %1527 = vmatpush2.bf16.msra.mxu0 0
      %1528 = vmatprep.mubr.bf16.mxu0 0
      %1529 = vmatmul.mubr.bf16.gmra.mxu0 %v1440
      %v1530 = vpop.f32.mrf.mxu0
      %v1531 = vadd.f32 0.0, %v1530
      %v1532 = vpop.f32.mrf.mxu0
      %v1533 = vpop.f32.mrf.mxu0
      %v1534 = vadd.f32 0.0, %v1533
      %v1535 = vpop.f32.mrf.mxu0
      %1536 = vmatprep.mubr.bf16.mxu0 0
      %1537 = vmatmul.mubr.bf16.gmra.mxu0 %v1441
      %v1538 = vpop.f32.mrf.mxu0
      %v1539 = vadd.f32 0.0, %v1538
      %v1540 = vpop.f32.mrf.mxu0
      %v1541 = vpop.f32.mrf.mxu0
      %v1542 = vadd.f32 0.0, %v1541
      %v1543 = vpop.f32.mrf.mxu0
      %1544 = vmatprep.mubr.bf16.mxu0 0
      %1545 = vmatmul.mubr.bf16.gmra.mxu0 %v1442
      %v1546 = vpop.f32.mrf.mxu0
      %v1547 = vadd.f32 0.0, %v1546
      %v1548 = vpop.f32.mrf.mxu0
      %v1549 = vpop.f32.mrf.mxu0
      %v1550 = vadd.f32 0.0, %v1549
      %v1551 = vpop.f32.mrf.mxu0
      %1552 = vmatprep.mubr.bf16.mxu0 0
      %1553 = vmatmul.mubr.bf16.gmra.mxu0 %v1443
      %v1554 = vpop.f32.mrf.mxu0
      %v1555 = vadd.f32 0.0, %v1554
      %v1556 = vpop.f32.mrf.mxu0
      %v1557 = vpop.f32.mrf.mxu0
      %v1558 = vadd.f32 0.0, %v1557
      %v1559 = vpop.f32.mrf.mxu0
      %1560 = vdwg.mxu0
      %v1561 = vadd.f32 %v1390, %v1531
      %v1562 = vadd.f32 %v1391, %v1534
      %v1563 = vadd.f32 %v1392, %v1539
      %v1564 = vadd.f32 %v1393, %v1542
      %v1565 = vadd.f32 %v1394, %v1547
      %v1566 = vadd.f32 %v1395, %v1550
      %v1567 = vadd.f32 %v1396, %v1555
      %v1568 = vadd.f32 %v1397, %v1558
      %s1569 = scalar_lea.vmem %s153, 80
      %v1570 = vld [vmem:[%s1569] sm:$0xf]
      %v1571 = vld [vmem:[%s1569 + $0x8] sm:$0xf]
      %v1572 = vld [vmem:[%s1569 + $0x10] sm:$0xf]
      %v1573 = vld [vmem:[%s1569 + $0x18] sm:$0xf]
      %v1574 = vld [vmem:[%s1569 + $0x20] sm:$0xf]
      %v1575 = vld [vmem:[%s1569 + $0x28] sm:$0xf]
      %v1576 = vld [vmem:[%s1569 + $0x30] sm:$0xf]
      %v1577 = vld [vmem:[%s1569 + $0x38] sm:$0xf]
      %s1578 = scalar_lea.vmem %s158, 448
      %v1579 = vld [vmem:[%s1578] sm:$0xf]
      %v1580 = vld [vmem:[%s1578 + $0x4] sm:$0xf]
      %v1581 = vld [vmem:[%s1578 + $0x8] sm:$0xf]
      %v1582 = vld [vmem:[%s1578 + $0xc] sm:$0xf]
      %v1583 = vld [vmem:[%s1578 + $0x10] sm:$0xf]
      %v1584 = vld [vmem:[%s1578 + $0x14] sm:$0xf]
      %v1585 = vld [vmem:[%s1578 + $0x18] sm:$0xf]
      %v1586 = vld [vmem:[%s1578 + $0x1c] sm:$0xf]
      %v1587 = vld [vmem:[%s1578 + $0x20] sm:$0xf]
      %v1588 = vld [vmem:[%s1578 + $0x24] sm:$0xf]
      %v1589 = vld [vmem:[%s1578 + $0x28] sm:$0xf]
      %v1590 = vld [vmem:[%s1578 + $0x2c] sm:$0xf]
      %v1591 = vld [vmem:[%s1578 + $0x30] sm:$0xf]
      %v1592 = vld [vmem:[%s1578 + $0x34] sm:$0xf]
      %v1593 = vld [vmem:[%s1578 + $0x38] sm:$0xf]
      %v1594 = vld [vmem:[%s1578 + $0x3c] sm:$0xf]
      %v1603 = vunpack.c.l.b16 %v1570
      %v1604 = vunpack.c.l.b16 %v1571
      %v1605 = vunpack.c.l.b16 %v1572
      %v1606 = vunpack.c.l.b16 %v1573
      %v1607 = vunpack.c.l.b16 %v1574
      %v1608 = vunpack.c.l.b16 %v1575
      %v1609 = vunpack.c.l.b16 %v1576
      %v1610 = vunpack.c.l.b16 %v1577
      %v1611 = vpack.c.b16 %v1604, %v1603
      %v1612 = vpack.c.b16 %v1606, %v1605
      %v1613 = vpack.c.b16 %v1608, %v1607
      %v1614 = vpack.c.b16 %v1610, %v1609
      %v1635 = vunpack.c.l.b16 %v1579
      %v1636 = vunpack.c.l.b16 %v1580
      %v1637 = vunpack.c.l.b16 %v1581
      %v1638 = vunpack.c.l.b16 %v1582
      %v1639 = vunpack.c.l.b16 %v1583
      %v1640 = vunpack.c.l.b16 %v1584
      %v1641 = vunpack.c.l.b16 %v1585
      %v1642 = vunpack.c.l.b16 %v1586
      %v1643 = vunpack.c.l.b16 %v1587
      %v1644 = vunpack.c.l.b16 %v1588
      %v1645 = vunpack.c.l.b16 %v1589
      %v1646 = vunpack.c.l.b16 %v1590
      %v1647 = vunpack.c.l.b16 %v1591
      %v1648 = vunpack.c.l.b16 %v1592
      %v1649 = vunpack.c.l.b16 %v1593
      %v1650 = vunpack.c.l.b16 %v1594
      %v1651 = vpack.c.b16 %v1636, %v1635
      %v1652 = vpack.c.b16 %v1638, %v1637
      %v1653 = vpack.c.b16 %v1640, %v1639
      %v1654 = vpack.c.b16 %v1642, %v1641
      %v1655 = vpack.c.b16 %v1644, %v1643
      %v1656 = vpack.c.b16 %v1646, %v1645
      %v1657 = vpack.c.b16 %v1648, %v1647
      %v1658 = vpack.c.b16 %v1650, %v1649
      %1667 = vmatprep.subr.bf16.mxu0 0
      %1668 = vmatpush1.bf16.msra.mxu0 %v1658
      %1669 = vmatprep.subr.bf16.mxu0 0
      %1670 = vmatpush1.bf16.msra.mxu0 %v1657
      %1671 = vmatprep.subr.bf16.mxu0 0
      %1672 = vmatpush1.bf16.msra.mxu0 %v1656
      %1673 = vmatprep.subr.bf16.mxu0 0
      %1674 = vmatpush1.bf16.msra.mxu0 %v1655
      %1675 = vmatprep.subr.bf16.mxu0 0
      %1676 = vmatpush1.bf16.msra.mxu0 %v1654
      %1677 = vmatprep.subr.bf16.mxu0 0
      %1678 = vmatpush1.bf16.msra.mxu0 %v1653
      %1679 = vmatprep.subr.bf16.mxu0 0
      %1680 = vmatpush1.bf16.msra.mxu0 %v1652
      %1681 = vmatprep.subr.bf16.mxu0 0
      %1682 = vmatpush1.bf16.msra.mxu0 %v1651
      %1683 = vmatprep.subr.bf16.mxu0 0
      %1684 = vmatpush2.bf16.msra.mxu0 0
      %1685 = vmatprep.subr.bf16.mxu0 0
      %1686 = vmatpush2.bf16.msra.mxu0 0
      %1687 = vmatprep.subr.bf16.mxu0 0
      %1688 = vmatpush2.bf16.msra.mxu0 0
      %1689 = vmatprep.subr.bf16.mxu0 0
      %1690 = vmatpush2.bf16.msra.mxu0 0
      %1691 = vmatprep.subr.bf16.mxu0 0
      %1692 = vmatpush2.bf16.msra.mxu0 0
      %1693 = vmatprep.subr.bf16.mxu0 0
      %1694 = vmatpush2.bf16.msra.mxu0 0
      %1695 = vmatprep.subr.bf16.mxu0 0
      %1696 = vmatpush2.bf16.msra.mxu0 0
      %1697 = vmatprep.subr.bf16.mxu0 0
      %1698 = vmatpush2.bf16.msra.mxu0 0
      %1699 = vmatprep.mubr.bf16.mxu0 0
      %1700 = vmatmul.mubr.bf16.gmra.mxu0 %v1611
      %v1701 = vpop.f32.mrf.mxu0
      %v1702 = vadd.f32 0.0, %v1701
      %v1703 = vpop.f32.mrf.mxu0
      %v1704 = vpop.f32.mrf.mxu0
      %v1705 = vadd.f32 0.0, %v1704
      %v1706 = vpop.f32.mrf.mxu0
      %1707 = vmatprep.mubr.bf16.mxu0 0
      %1708 = vmatmul.mubr.bf16.gmra.mxu0 %v1612
      %v1709 = vpop.f32.mrf.mxu0
      %v1710 = vadd.f32 0.0, %v1709
      %v1711 = vpop.f32.mrf.mxu0
      %v1712 = vpop.f32.mrf.mxu0
      %v1713 = vadd.f32 0.0, %v1712
      %v1714 = vpop.f32.mrf.mxu0
      %1715 = vmatprep.mubr.bf16.mxu0 0
      %1716 = vmatmul.mubr.bf16.gmra.mxu0 %v1613
      %v1717 = vpop.f32.mrf.mxu0
      %v1718 = vadd.f32 0.0, %v1717
      %v1719 = vpop.f32.mrf.mxu0
      %v1720 = vpop.f32.mrf.mxu0
      %v1721 = vadd.f32 0.0, %v1720
      %v1722 = vpop.f32.mrf.mxu0
      %1723 = vmatprep.mubr.bf16.mxu0 0
      %1724 = vmatmul.mubr.bf16.gmra.mxu0 %v1614
      %v1725 = vpop.f32.mrf.mxu0
      %v1726 = vadd.f32 0.0, %v1725
      %v1727 = vpop.f32.mrf.mxu0
      %v1728 = vpop.f32.mrf.mxu0
      %v1729 = vadd.f32 0.0, %v1728
      %v1730 = vpop.f32.mrf.mxu0
      %1731 = vdwg.mxu0
      %v1732 = vadd.f32 %v1561, %v1702
      %v1733 = vadd.f32 %v1562, %v1705
      %v1734 = vadd.f32 %v1563, %v1710
      %v1735 = vadd.f32 %v1564, %v1713
      %v1736 = vadd.f32 %v1565, %v1718
      %v1737 = vadd.f32 %v1566, %v1721
      %v1738 = vadd.f32 %v1567, %v1726
      %v1739 = vadd.f32 %v1568, %v1729
      %v1740 = vld [vmem:[%s1398] sm:$0xf]
      %v1741 = vld [vmem:[%s1398 + $0x4] sm:$0x1]
      %v1742 = vld [vmem:[%s1398 + $0x8] sm:$0xf]
      %v1743 = vld [vmem:[%s1398 + $0xc] sm:$0x1]
      %v1744 = vld [vmem:[%s1398 + $0x10] sm:$0xf]
      %v1745 = vld [vmem:[%s1398 + $0x14] sm:$0x1]
      %v1746 = vld [vmem:[%s1398 + $0x18] sm:$0xf]
      %v1747 = vld [vmem:[%s1398 + $0x1c] sm:$0x1]
      %v1748 = vld [vmem:[%s1398 + $0x20] sm:$0xf]
      %v1749 = vld [vmem:[%s1398 + $0x24] sm:$0x1]
      %v1750 = vld [vmem:[%s1398 + $0x28] sm:$0xf]
      %v1751 = vld [vmem:[%s1398 + $0x2c] sm:$0x1]
      %v1752 = vld [vmem:[%s1398 + $0x30] sm:$0xf]
      %v1753 = vld [vmem:[%s1398 + $0x34] sm:$0x1]
      %v1754 = vld [vmem:[%s1398 + $0x38] sm:$0xf]
      %v1755 = vld [vmem:[%s1398 + $0x3c] sm:$0x1]
      %v1757 = vshrl.u32 %v1740, 16
      %v1759 = vrot.slane %v1757, 4
      %v1760 = vshll.u32 %v1740, 16
      %v1762 = vrot.slane %v1760, 5
      %v1763 = vor.u32 %v1759, %v1762
      %v1764 = vrot.slane %v1763, 4
      %v1766 = vshll.u32 %v1741, 16
      %v1768 = vrot.slane %v1766, 5
      %v1769 = vsel %vm507, %v1764, %v1768
      %v1771 = vshrl.u32 %v1742, 16
      %v1773 = vrot.slane %v1771, 4
      %v1774 = vshll.u32 %v1742, 16
      %v1776 = vrot.slane %v1774, 5
      %v1777 = vor.u32 %v1773, %v1776
      %v1778 = vrot.slane %v1777, 4
      %v1780 = vshll.u32 %v1743, 16
      %v1782 = vrot.slane %v1780, 5
      %v1783 = vsel %vm507, %v1778, %v1782
      %v1785 = vshrl.u32 %v1744, 16
      %v1787 = vrot.slane %v1785, 4
      %v1788 = vshll.u32 %v1744, 16
      %v1790 = vrot.slane %v1788, 5
      %v1791 = vor.u32 %v1787, %v1790
      %v1792 = vrot.slane %v1791, 4
      %v1794 = vshll.u32 %v1745, 16
      %v1796 = vrot.slane %v1794, 5
      %v1797 = vsel %vm507, %v1792, %v1796
      %v1799 = vshrl.u32 %v1746, 16
      %v1801 = vrot.slane %v1799, 4
      %v1802 = vshll.u32 %v1746, 16
      %v1804 = vrot.slane %v1802, 5
      %v1805 = vor.u32 %v1801, %v1804
      %v1806 = vrot.slane %v1805, 4
      %v1808 = vshll.u32 %v1747, 16
      %v1810 = vrot.slane %v1808, 5
      %v1811 = vsel %vm507, %v1806, %v1810
      %v1813 = vshrl.u32 %v1748, 16
      %v1815 = vrot.slane %v1813, 4
      %v1816 = vshll.u32 %v1748, 16
      %v1818 = vrot.slane %v1816, 5
      %v1819 = vor.u32 %v1815, %v1818
      %v1820 = vrot.slane %v1819, 4
      %v1822 = vshll.u32 %v1749, 16
      %v1824 = vrot.slane %v1822, 5
      %v1825 = vsel %vm507, %v1820, %v1824
      %v1827 = vshrl.u32 %v1750, 16
      %v1829 = vrot.slane %v1827, 4
      %v1830 = vshll.u32 %v1750, 16
      %v1832 = vrot.slane %v1830, 5
      %v1833 = vor.u32 %v1829, %v1832
      %v1834 = vrot.slane %v1833, 4
      %v1836 = vshll.u32 %v1751, 16
      %v1838 = vrot.slane %v1836, 5
      %v1839 = vsel %vm507, %v1834, %v1838
      %v1841 = vshrl.u32 %v1752, 16
      %v1843 = vrot.slane %v1841, 4
      %v1844 = vshll.u32 %v1752, 16
      %v1846 = vrot.slane %v1844, 5
      %v1847 = vor.u32 %v1843, %v1846
      %v1848 = vrot.slane %v1847, 4
      %v1850 = vshll.u32 %v1753, 16
      %v1852 = vrot.slane %v1850, 5
      %v1853 = vsel %vm507, %v1848, %v1852
      %v1855 = vshrl.u32 %v1754, 16
      %v1857 = vrot.slane %v1855, 4
      %v1858 = vshll.u32 %v1754, 16
      %v1860 = vrot.slane %v1858, 5
      %v1861 = vor.u32 %v1857, %v1860
      %v1862 = vrot.slane %v1861, 4
      %v1864 = vshll.u32 %v1755, 16
      %v1866 = vrot.slane %v1864, 5
      %v1867 = vsel %vm507, %v1862, %v1866
      %s1868 = scalar_lea.vmem %s158, 512
      %v1869 = vld [vmem:[%s1868] sm:$0xf]
      %v1870 = vld [vmem:[%s1868 + $0x4] sm:$0xf]
      %v1871 = vld [vmem:[%s1868 + $0x8] sm:$0xf]
      %v1872 = vld [vmem:[%s1868 + $0xc] sm:$0xf]
      %v1873 = vld [vmem:[%s1868 + $0x10] sm:$0xf]
      %v1874 = vld [vmem:[%s1868 + $0x14] sm:$0xf]
      %v1875 = vld [vmem:[%s1868 + $0x18] sm:$0xf]
      %v1876 = vld [vmem:[%s1868 + $0x1c] sm:$0xf]
      %v1877 = vld [vmem:[%s1868 + $0x20] sm:$0xf]
      %v1878 = vld [vmem:[%s1868 + $0x24] sm:$0xf]
      %v1879 = vld [vmem:[%s1868 + $0x28] sm:$0xf]
      %v1880 = vld [vmem:[%s1868 + $0x2c] sm:$0xf]
      %v1881 = vld [vmem:[%s1868 + $0x30] sm:$0xf]
      %v1882 = vld [vmem:[%s1868 + $0x34] sm:$0xf]
      %v1883 = vld [vmem:[%s1868 + $0x38] sm:$0xf]
      %v1884 = vld [vmem:[%s1868 + $0x3c] sm:$0xf]
      %v1885 = vunpack.c.l.b16 %v1769
      %v1886 = vunpack.c.l.b16 %v1783
      %v1887 = vunpack.c.l.b16 %v1797
      %v1888 = vunpack.c.l.b16 %v1811
      %v1889 = vunpack.c.l.b16 %v1825
      %v1890 = vunpack.c.l.b16 %v1839
      %v1891 = vunpack.c.l.b16 %v1853
      %v1892 = vunpack.c.l.b16 %v1867
      %v1893 = vpack.c.b16 %v1886, %v1885
      %v1894 = vpack.c.b16 %v1888, %v1887
      %v1895 = vpack.c.b16 %v1890, %v1889
      %v1896 = vpack.c.b16 %v1892, %v1891
      %v1917 = vunpack.c.l.b16 %v1869
      %v1918 = vunpack.c.l.b16 %v1870
      %v1919 = vunpack.c.l.b16 %v1871
      %v1920 = vunpack.c.l.b16 %v1872
      %v1921 = vunpack.c.l.b16 %v1873
      %v1922 = vunpack.c.l.b16 %v1874
      %v1923 = vunpack.c.l.b16 %v1875
      %v1924 = vunpack.c.l.b16 %v1876
      %v1925 = vunpack.c.l.b16 %v1877
      %v1926 = vunpack.c.l.b16 %v1878
      %v1927 = vunpack.c.l.b16 %v1879
      %v1928 = vunpack.c.l.b16 %v1880
      %v1929 = vunpack.c.l.b16 %v1881
      %v1930 = vunpack.c.l.b16 %v1882
      %v1931 = vunpack.c.l.b16 %v1883
      %v1932 = vunpack.c.l.b16 %v1884
      %v1933 = vpack.c.b16 %v1918, %v1917
      %v1934 = vpack.c.b16 %v1920, %v1919
      %v1935 = vpack.c.b16 %v1922, %v1921
      %v1936 = vpack.c.b16 %v1924, %v1923
      %v1937 = vpack.c.b16 %v1926, %v1925
      %v1938 = vpack.c.b16 %v1928, %v1927
      %v1939 = vpack.c.b16 %v1930, %v1929
      %v1940 = vpack.c.b16 %v1932, %v1931
      %1949 = vmatprep.subr.bf16.mxu0 0
      %1950 = vmatpush1.bf16.msra.mxu0 %v1940
      %1951 = vmatprep.subr.bf16.mxu0 0
      %1952 = vmatpush1.bf16.msra.mxu0 %v1939
      %1953 = vmatprep.subr.bf16.mxu0 0
      %1954 = vmatpush1.bf16.msra.mxu0 %v1938
      %1955 = vmatprep.subr.bf16.mxu0 0
      %1956 = vmatpush1.bf16.msra.mxu0 %v1937
      %1957 = vmatprep.subr.bf16.mxu0 0
      %1958 = vmatpush1.bf16.msra.mxu0 %v1936
      %1959 = vmatprep.subr.bf16.mxu0 0
      %1960 = vmatpush1.bf16.msra.mxu0 %v1935
      %1961 = vmatprep.subr.bf16.mxu0 0
      %1962 = vmatpush1.bf16.msra.mxu0 %v1934
      %1963 = vmatprep.subr.bf16.mxu0 0
      %1964 = vmatpush1.bf16.msra.mxu0 %v1933
      %1965 = vmatprep.subr.bf16.mxu0 0
      %1966 = vmatpush2.bf16.msra.mxu0 0
      %1967 = vmatprep.subr.bf16.mxu0 0
      %1968 = vmatpush2.bf16.msra.mxu0 0
      %1969 = vmatprep.subr.bf16.mxu0 0
      %1970 = vmatpush2.bf16.msra.mxu0 0
      %1971 = vmatprep.subr.bf16.mxu0 0
      %1972 = vmatpush2.bf16.msra.mxu0 0
      %1973 = vmatprep.subr.bf16.mxu0 0
      %1974 = vmatpush2.bf16.msra.mxu0 0
      %1975 = vmatprep.subr.bf16.mxu0 0
      %1976 = vmatpush2.bf16.msra.mxu0 0
      %1977 = vmatprep.subr.bf16.mxu0 0
      %1978 = vmatpush2.bf16.msra.mxu0 0
      %1979 = vmatprep.subr.bf16.mxu0 0
      %1980 = vmatpush2.bf16.msra.mxu0 0
      %1981 = vmatprep.mubr.bf16.mxu0 0
      %1982 = vmatmul.mubr.bf16.gmra.mxu0 %v1893
      %v1983 = vpop.f32.mrf.mxu0
      %v1984 = vadd.f32 0.0, %v1983
      %v1985 = vpop.f32.mrf.mxu0
      %v1986 = vpop.f32.mrf.mxu0
      %v1987 = vadd.f32 0.0, %v1986
      %v1988 = vpop.f32.mrf.mxu0
      %1989 = vmatprep.mubr.bf16.mxu0 0
      %1990 = vmatmul.mubr.bf16.gmra.mxu0 %v1894
      %v1991 = vpop.f32.mrf.mxu0
      %v1992 = vadd.f32 0.0, %v1991
      %v1993 = vpop.f32.mrf.mxu0
      %v1994 = vpop.f32.mrf.mxu0
      %v1995 = vadd.f32 0.0, %v1994
      %v1996 = vpop.f32.mrf.mxu0
      %1997 = vmatprep.mubr.bf16.mxu0 0
      %1998 = vmatmul.mubr.bf16.gmra.mxu0 %v1895
      %v1999 = vpop.f32.mrf.mxu0
      %v2000 = vadd.f32 0.0, %v1999
      %v2001 = vpop.f32.mrf.mxu0
      %v2002 = vpop.f32.mrf.mxu0
      %v2003 = vadd.f32 0.0, %v2002
      %v2004 = vpop.f32.mrf.mxu0
      %2005 = vmatprep.mubr.bf16.mxu0 0
      %2006 = vmatmul.mubr.bf16.gmra.mxu0 %v1896
      %v2007 = vpop.f32.mrf.mxu0
      %v2008 = vadd.f32 0.0, %v2007
      %v2009 = vpop.f32.mrf.mxu0
      %v2010 = vpop.f32.mrf.mxu0
      %v2011 = vadd.f32 0.0, %v2010
      %v2012 = vpop.f32.mrf.mxu0
      %2013 = vdwg.mxu0
      %v2014 = vadd.f32 %v1732, %v1984
      %v2015 = vadd.f32 %v1733, %v1987
      %v2016 = vadd.f32 %v1734, %v1992
      %v2017 = vadd.f32 %v1735, %v1995
      %v2018 = vadd.f32 %v1736, %v2000
      %v2019 = vadd.f32 %v1737, %v2003
      %v2020 = vadd.f32 %v1738, %v2008
      %v2021 = vadd.f32 %v1739, %v2011
      %v2022 = vmax.f32 %v2014, 0.0
      %v2023 = vmax.f32 %v2015, 0.0
      %v2024 = vmax.f32 %v2016, 0.0
      %v2025 = vmax.f32 %v2017, 0.0
      %v2026 = vmax.f32 %v2018, 0.0
      %v2027 = vmax.f32 %v2019, 0.0
      %v2028 = vmax.f32 %v2020, 0.0
      %v2029 = vmax.f32 %v2021, 0.0
      %v2030 = vpack.c.bf16 %v2023, %v2022
      %v2031 = vpack.c.bf16 %v2025, %v2024
      %v2032 = vpack.c.bf16 %v2027, %v2026
      %v2033 = vpack.c.bf16 %v2029, %v2028
      %v2038 = vunpack.c.l.b16 %v2030
      %v2039 = vunpack.c.h.b16 %v2030
      %v2040 = vunpack.c.l.b16 %v2031
      %v2041 = vunpack.c.h.b16 %v2031
      %v2042 = vunpack.c.l.b16 %v2032
      %v2043 = vunpack.c.h.b16 %v2032
      %v2044 = vunpack.c.l.b16 %v2033
      %v2045 = vunpack.c.h.b16 %v2033
      %v2046 = vpack.c.b16 %v2038, %v2038
      %v2047 = vpack.c.b16 %v2039, %v2039
      %v2048 = vpack.c.b16 %v2040, %v2040
      %v2049 = vpack.c.b16 %v2041, %v2041
      %v2050 = vpack.c.b16 %v2042, %v2042
      %v2051 = vpack.c.b16 %v2043, %v2043
      %v2052 = vpack.c.b16 %v2044, %v2044
      %v2053 = vpack.c.b16 %v2045, %v2045
      %2062 = vst [vmem:[%s163] sm:$0xf] %v2046
      %2063 = vst [vmem:[%s163 + $0x4] sm:$0xf] %v2047
      %2064 = vst [vmem:[%s163 + $0x8] sm:$0xf] %v2048
      %2065 = vst [vmem:[%s163 + $0xc] sm:$0xf] %v2049
      %2066 = vst [vmem:[%s163 + $0x10] sm:$0xf] %v2050
      %2067 = vst [vmem:[%s163 + $0x14] sm:$0xf] %v2051
      %2068 = vst [vmem:[%s163 + $0x18] sm:$0xf] %v2052
      %2069 = vst [vmem:[%s163 + $0x1c] sm:$0xf] %v2053
      %p2070 = scmp.lt.s32.totalorder %s13, 1
      %s2071 = scalar_select %p2070, %s13, 1
      %s2072 = smul.addr %s2071, 8
      %s2073 = smul.addr %s2072, 4
      %s2074 = scalar_lea.vmem %s2, %s2073
      // Predicated region
      $region29: #{bottleneck_forward.4} parent=27 // pred_check
        %p2075 = pneg %p83
      $region30: #{bottleneck_forward.4} parent=27 // pred_check_branch
        %2077 = sbr.rel (%p2075) target = $region32
      $region31: #{bottleneck_forward.4} parent=27 // pred_region
        _
      $region32: #{bottleneck_forward.4} parent=27 // pred_fallthru
        _
    $region28: #{bottleneck_forward.4} parent=5 // pred_fallthru
      _
    %p2078 = scmp.le.s32.totalorder 2, %s8
    // Predicated region
    $region33: #{bottleneck_forward.4} parent=5 // pred_check
      %p2079 = pneg %p2078
    $region34: #{bottleneck_forward.4} parent=5 // pred_check_branch
      %2081 = sbr.rel (%p2079) target = $region36
    $region35: #{bottleneck_forward.4} parent=5 // pred_region
      %s2082 = ssub.s32 %s8, 2
      // Predicated region
      $region37: #{bottleneck_forward.4} parent=35 // pred_check
        %p2083 = pneg %p89
      $region38: #{bottleneck_forward.4} parent=35 // pred_check_branch
        %2085 = sbr.rel (%p2083) target = $region40
      $region39: #{bottleneck_forward.4} parent=35 // pred_region
        %p2086 = scmp.lt.s32.totalorder %s14, 1
        %s2087 = scalar_select %p2086, %s14, 1
        %s2088 = smul.addr %s2087, 8
        %s2089 = smul.addr %s2088, 4
        %s2090 = scalar_lea.vmem %s2, %s2089
      $region40: #{bottleneck_forward.4} parent=35 // pred_fallthru
        _
    $region36: #{bottleneck_forward.4} parent=5 // pred_fallthru
      _
  $region6: #{bottleneck_forward.4} parent=0 // loop_footer
    %s12 = sadd.s32 1, %s8
  $region7: #{bottleneck_forward.4} parent=0 // loop_footer_branch
    %7 = sbr.rel target = $region3
  $region8: #{bottleneck_forward.4} parent=0 // loop_exit
    _

</llo_original>
